<compile_context>
chip_gen: v7x
topology: tpu7x:2x2x1
jax: 0.10.0
libtpu: 0.0.40
codegen_flags: <defaults>
</compile_context>

<pallas_src>
import functools

import jax
import jax.numpy as jnp
from jax import lax
from jax.experimental import pallas as pl
from jax.experimental.pallas import tpu as pltpu


_LN_EPS = 1e-5
_BN_EPS = 1e-5
_NEG_INF = -1e9

try:
    _VMEM_CAP = int(pltpu.get_tpu_info().vmem_capacity_bytes)
except Exception:                      # not on TPU-info-capable backend
    _VMEM_CAP = 128 * 1024 * 1024

# generation-dependent row tile: bigger on 128 MiB chips (v5e/v6e), smaller on
# 64 MiB chips (v7x).
_ROW_TILE = 1024 if _VMEM_CAP >= (96 << 20) else 512


def _nb(shape, dtype):
    n = 1
    for s in shape:
        n *= int(s)
    return n * jnp.dtype(dtype).itemsize


def _vmem_limit(need_bytes):
    lim = max(2 * int(need_bytes), 16 << 20)
    return int(min(lim, _VMEM_CAP - (8 << 20)))


def _mosaic(sem, need_bytes):
    return pltpu.CompilerParams(dimension_semantics=sem,
                                vmem_limit_bytes=_vmem_limit(need_bytes))


def _const_spec(block_shape):
    """BlockSpec for operands whose block never changes across the grid
    (weights / biases): single-buffered to reclaim VMEM."""
    idx = lambda *_: (0,) * len(block_shape)
    try:
        return pl.BlockSpec(block_shape, idx,
                            pipeline_mode=pl.Buffered(buffer_count=1))
    except Exception:                  # older API without pipeline_mode
        return pl.BlockSpec(block_shape, idx)


def _row_tile(m):
    return m if m <= _ROW_TILE else _ROW_TILE


def _q_tile(t):
    for cand in (128, 64, 32, 16, 8):
        if t % cand == 0:
            return cand
    return t


# ---------------------------------------------------------------------------
# Pallas kernels
# ---------------------------------------------------------------------------

def _linear_kernel(x_ref, w_ref, b_ref, o_ref, *, act):
    """y = act(x @ w + b); bf16 MXU inputs, f32 accumulation."""
    y = jnp.dot(x_ref[...].astype(jnp.bfloat16), w_ref[...],
                preferred_element_type=jnp.float32)
    y = y + b_ref[...]                              # (1, N) broadcast
    if act == "swish":
        y = y * jax.nn.sigmoid(y)                   # f32 elementwise (v5e-safe)
    o_ref[...] = y.astype(o_ref.dtype)


def _linear_add_ln_kernel(x_ref, w_ref, b_ref, r_ref, g_ref, beta_ref, o_ref,
                          *, eps):
    """y = LayerNorm(x @ w + b + residual) — fused matmul epilogue."""
    y = jnp.dot(x_ref[...].astype(jnp.bfloat16), w_ref[...],
                preferred_element_type=jnp.float32)
    y = y + b_ref[...] + r_ref[...]
    mean = jnp.mean(y, axis=-1, keepdims=True)
    c = y - mean
    var = jnp.mean(c * c, axis=-1, keepdims=True)
    o_ref[...] = (c * lax.rsqrt(var + eps) * g_ref[...]
                  + beta_ref[...]).astype(o_ref.dtype)


def _mhsa_kernel(q_ref, kv_ref, bias_ref, res_ref, wo_ref, bo_ref,
                 g_ref, beta_ref, o_ref, *, num_heads, eps):
    """One (batch, query-tile) step: all heads, key-pad bias softmax, per-head
    accumulation into the output projection, + residual + LayerNorm."""
    q = q_ref[0]                                    # (tq, D) bf16, pre-scaled
    kv = kv_ref[0]                                  # (T, 2D) bf16
    bias = bias_ref[0]                              # (1, T) f32
    d_model = o_ref.shape[-1]
    dk = d_model // num_heads
    tq = q.shape[0]

    acc = jnp.zeros((tq, d_model), jnp.float32)
    for h in range(num_heads):                      # static unroll (H small)
        qh = q[:, h * dk:(h + 1) * dk]
        kh = kv[:, h * dk:(h + 1) * dk]
        vh = kv[:, d_model + h * dk:d_model + (h + 1) * dk]
        # scores via contracting last dims (no in-kernel transpose of k);
        # 1/sqrt(dk) already folded into Wq at prep time.
        s = lax.dot_general(qh, kh, (((1,), (1,)), ((), ())),
                            preferred_element_type=jnp.float32)
        s = s + bias
        s = s - jnp.max(s, axis=-1, keepdims=True)
        p = jnp.exp(s)
        inv = pl.reciprocal(jnp.sum(p, axis=-1, keepdims=True), approx=True)
        ctx = jnp.dot(p.astype(jnp.bfloat16), vh,
                      preferred_element_type=jnp.float32) * inv
        # fold the out-projection per head: no lane concat, ctx dies here.
        acc = acc + jnp.dot(ctx.astype(jnp.bfloat16),
                            wo_ref[h * dk:(h + 1) * dk, :],
                            preferred_element_type=jnp.float32)

    y = acc + bo_ref[...] + res_ref[0]
    mean = jnp.mean(y, axis=-1, keepdims=True)
    c = y - mean
    var = jnp.mean(c * c, axis=-1, keepdims=True)
    o_ref[0] = (c * lax.rsqrt(var + eps) * g_ref[...]
                + beta_ref[...]).astype(o_ref.dtype)


def _conv_module_kernel(x_ref, keep_ref, w1_ref, b1_ref, dw_ref,
                        bns_ref, bnb_ref, w2_ref, b2_ref, g_ref, beta_ref,
                        o_ref, *, ksize, pad_l, eps):
    """Whole ConvolutionBlock + residual + LayerNorm for one batch element:
       mask -> pw1 (D->2D) -> GLU -> depthwise conv (rolls) -> BN(eval)+Swish
       -> pw2 -> +res -> LN."""
    x = x_ref[0]                                    # (T, D) f32 (residual)
    keep = keep_ref[0]                              # (T, 1) f32, 1=valid 0=pad
    T = x.shape[0]
    D = x.shape[1]

    # mask padded frames on the conv-module input (residual stays unmasked)
    xm = (x * keep).astype(jnp.bfloat16)

    # pointwise conv 1 (D -> 2D) in one matmul, then GLU halves
    ag = jnp.dot(xm, w1_ref[...], preferred_element_type=jnp.float32) + b1_ref[...]
    u = ag[:, :D] * jax.nn.sigmoid(ag[:, D:])       # (T, D) f32

    # depthwise conv along time with 'same' zero padding (odd ksize assumed):
    # shifted taps built via XLU rolls of u + edge masks — no pad scratch.
    t_idx = lax.broadcasted_iota(jnp.int32, (T, 1), 0)
    acc = jnp.zeros_like(u)
    for k in range(ksize):                          # static unroll over taps
        d = k - pad_l                               # tap offset in time
        tap = dw_ref[k:k + 1, :]                    # (1, D)
        if d == 0:
            acc = acc + u * tap
        else:
            shifted = pltpu.roll(u, shift=(-d) % T, axis=0)  # shifted[t]=u[t+d]
            lo = max(0, -d)
            hi = T - max(0, d)
            edge = jnp.logical_and(t_idx >= lo, t_idx < hi).astype(jnp.float32)
            acc = acc + shifted * edge * tap

    # conv bias + eval BatchNorm folded into scale/shift, then Swish
    y = acc * bns_ref[...] + bnb_ref[...]
    y = y * jax.nn.sigmoid(y)

    # pointwise conv 2 (D -> D), residual add, LayerNorm
    z = jnp.dot(y.astype(jnp.bfloat16), w2_ref[...],
                preferred_element_type=jnp.float32) + b2_ref[...] + x
    mean = jnp.mean(z, axis=-1, keepdims=True)
    c = z - mean
    var = jnp.mean(c * c, axis=-1, keepdims=True)
    o_ref[0] = (c * lax.rsqrt(var + eps) * g_ref[...]
                + beta_ref[...]).astype(o_ref.dtype)


# ---------------------------------------------------------------------------
# Wrappers (pallas_call plumbing)
# ---------------------------------------------------------------------------

def linear(x, w, b, act="none", out_dtype=jnp.bfloat16):
    M, K = x.shape
    N = w.shape[1]
    tm = _row_tile(M)
    need = (2 * _nb((tm, K), x.dtype) + _nb((K, N), w.dtype)
            + _nb((1, N), jnp.float32)
            + 2 * _nb((tm, N), out_dtype) + _nb((tm, N), jnp.float32))
    return pl.pallas_call(
        functools.partial(_linear_kernel, act=act),
        out_shape=jax.ShapeDtypeStruct((M, N), out_dtype),
        grid=(pl.cdiv(M, tm),),
        in_specs=[pl.BlockSpec((tm, K), lambda i: (i, 0)),
                  _const_spec((K, N)),
                  _const_spec((1, N))],
        out_specs=pl.BlockSpec((tm, N), lambda i: (i, 0)),
        compiler_params=_mosaic(("parallel",), need),
    )(x, w, b)


def linear_add_ln(x, w, b, residual, gamma, beta, eps=_LN_EPS):
    M, K = x.shape
    N = w.shape[1]
    tm = _row_tile(M)
    need = (2 * _nb((tm, K), x.dtype) + _nb((K, N), w.dtype)
            + 3 * _nb((1, N), jnp.float32)
            + 2 * _nb((tm, N), jnp.float32)        # residual tile
            + 2 * _nb((tm, N), jnp.float32)        # output tile
            + _nb((tm, N), jnp.float32))           # live accumulator
    return pl.pallas_call(
        functools.partial(_linear_add_ln_kernel, eps=eps),
        out_shape=jax.ShapeDtypeStruct((M, N), jnp.float32),
        grid=(pl.cdiv(M, tm),),
        in_specs=[pl.BlockSpec((tm, K), lambda i: (i, 0)),
                  _const_spec((K, N)),
                  _const_spec((1, N)),
                  pl.BlockSpec((tm, N), lambda i: (i, 0)),
                  _const_spec((1, N)),
                  _const_spec((1, N))],
        out_specs=pl.BlockSpec((tm, N), lambda i: (i, 0)),
        compiler_params=_mosaic(("parallel",), need),
    )(x, w, b, residual, gamma, beta)


def mhsa_out_ln(q3, kv3, attn_bias, residual3, wo, bo, gamma, beta,
                num_heads, eps=_LN_EPS):
    """Fused MHSA + out-projection + residual + LayerNorm, query-tiled."""
    B, T, D = q3.shape
    tq = _q_tile(T)
    nq = pl.cdiv(T, tq)
    need = (2 * _nb((1, tq, D), jnp.bfloat16)
            + 2 * _nb((1, T, 2 * D), jnp.bfloat16)
            + 2 * _nb((1, 1, T), jnp.float32)
            + 2 * _nb((1, tq, D), jnp.float32)     # residual tile
            + 2 * _nb((1, tq, D), jnp.float32)     # output tile
            + _nb((D, D), jnp.bfloat16) + 4 * _nb((1, D), jnp.float32)
            + _nb((tq, T), jnp.float32) + _nb((tq, D), jnp.float32))
    kern = functools.partial(_mhsa_kernel, num_heads=num_heads, eps=eps)
    return pl.pallas_call(
        kern,
        out_shape=jax.ShapeDtypeStruct((B, T, D), jnp.float32),
        grid=(B, nq),
        in_specs=[pl.BlockSpec((1, tq, D), lambda b, i: (b, i, 0)),
                  pl.BlockSpec((1, T, 2 * D), lambda b, i: (b, 0, 0)),
                  pl.BlockSpec((1, 1, T), lambda b, i: (b, 0, 0)),
                  pl.BlockSpec((1, tq, D), lambda b, i: (b, i, 0)),
                  _const_spec((D, D)),
                  _const_spec((1, D)),
                  _const_spec((1, D)),
                  _const_spec((1, D))],
        out_specs=pl.BlockSpec((1, tq, D), lambda b, i: (b, i, 0)),
        compiler_params=_mosaic(("parallel", "parallel"), need),
    )(q3, kv3, attn_bias, residual3, wo, bo, gamma, beta)


def conv_module(x3, keep3, p, eps=_LN_EPS):
    B, T, D = x3.shape
    K = p["dw_w"].shape[0]
    pad_l = (K - 1) // 2            # matches Conv1d(padding=K//2) for odd K
    need = (4 * _nb((1, T, D), jnp.float32)        # x in + out (double-buffered)
            + 2 * _nb((1, T, 1), jnp.float32)
            + _nb((D, 2 * D), jnp.bfloat16) + _nb((D, D), jnp.bfloat16)
            + _nb((K, D), jnp.float32) + 8 * _nb((1, D), jnp.float32)
            + 4 * _nb((T, D), jnp.float32))        # live u / acc / shifted / z
    kern = functools.partial(_conv_module_kernel, ksize=K, pad_l=pad_l, eps=eps)
    return pl.pallas_call(
        kern,
        out_shape=jax.ShapeDtypeStruct((B, T, D), jnp.float32),
        grid=(B,),
        in_specs=[pl.BlockSpec((1, T, D), lambda b: (b, 0, 0)),
                  pl.BlockSpec((1, T, 1), lambda b: (b, 0, 0)),
                  _const_spec((D, 2 * D)),   # pw1 weight (a | gate halves)
                  _const_spec((1, 2 * D)),   # pw1 bias
                  _const_spec((K, D)),       # depthwise conv weight
                  _const_spec((1, D)),       # folded BN scale
                  _const_spec((1, D)),       # folded BN shift (incl. conv bias)
                  _const_spec((D, D)),       # pw2 weight
                  _const_spec((1, D)),       # pw2 bias
                  _const_spec((1, D)),       # LayerNorm gamma
                  _const_spec((1, D))],      # LayerNorm beta
        out_specs=pl.BlockSpec((1, T, D), lambda b: (b, 0, 0)),
        compiler_params=_mosaic(("parallel",), need),
    )(x3, keep3, p["pw1_w"], p["pw1_b"], p["dw_w"], p["bn_scale"],
      p["bn_shift"], p["pw2_w"], p["pw2_b"], p["ln_conv_g"], p["ln_conv_b"])


# ---------------------------------------------------------------------------
# SqueezeformerBlock forward (glue: free reshapes / mask prep only)
# ---------------------------------------------------------------------------

def squeezeformer_block(xs, attn_masks, conv_masks, params, *, num_heads):
    """xs: (B, T, D) f32. attn_masks / conv_masks: (B, T) bool, True = pad."""
    B, T, D = xs.shape
    M = B * T
    p = params
    x2 = xs.reshape(M, D)

    attn_bias = (attn_masks.astype(jnp.float32) * _NEG_INF).reshape(B, 1, T)
    conv_keep = (1.0 - conv_masks.astype(jnp.float32)).reshape(B, T, 1)

    # ---- MHSA: q / kv projections; attention + out-proj + residual + LN fused
    q = linear(x2, p["wq"], p["bq"])                 # (M, D) bf16, scale folded
    kv = linear(x2, p["wkv"], p["bkv"])              # (M, 2D) bf16
    x2 = mhsa_out_ln(q.reshape(B, T, D), kv.reshape(B, T, 2 * D), attn_bias,
                     xs, p["wo"], p["bo"], p["ln_attn_g"], p["ln_attn_b"],
                     num_heads).reshape(M, D)

    # ---- FFN1 + residual + LayerNorm ----
    h = linear(x2, p["ffn1_w1"], p["ffn1_b1"], act="swish")     # (M, 4D) bf16
    x2 = linear_add_ln(h, p["ffn1_w2"], p["ffn1_b2"], x2,
                       p["ln_ffn1_g"], p["ln_ffn1_b"])

    # ---- Convolution module + residual + LayerNorm (fully fused) ----
    x2 = conv_module(x2.reshape(B, T, D), conv_keep, p).reshape(M, D)

    # ---- FFN2 + residual + LayerNorm ----
    h = linear(x2, p["ffn2_w1"], p["ffn2_b1"], act="swish")
    x2 = linear_add_ln(h, p["ffn2_w2"], p["ffn2_b2"], x2,
                       p["ln_ffn2_g"], p["ln_ffn2_b"])

    return x2.reshape(B, T, D)


# ---------------------------------------------------------------------------
# Parameter init (synthetic f32 weights) + one-time prep (fold/concat/bf16)
# ---------------------------------------------------------------------------

def init_params(key, d_model, conv_kernel):
    d_ff = 4 * d_model
    ks = jax.random.split(key, 11)
    w = lambda k, shape: 0.05 * jax.random.normal(k, shape, jnp.float32)
    z = lambda n: jnp.zeros((n,), jnp.float32)
    o = lambda n: jnp.ones((n,), jnp.float32)
    return {
        "wq": w(ks[0], (d_model, d_model)), "bq": z(d_model),
        "wk": w(ks[1], (d_model, d_model)), "bk": z(d_model),
        "wv": w(ks[2], (d_model, d_model)), "bv": z(d_model),
        "wo": w(ks[3], (d_model, d_model)), "bo": z(d_model),
        "ln_attn_g": o(d_model), "ln_attn_b": z(d_model),
        "ffn1_w1": w(ks[4], (d_model, d_ff)), "ffn1_b1": z(d_ff),
        "ffn1_w2": w(ks[5], (d_ff, d_model)), "ffn1_b2": z(d_model),
        "ln_ffn1_g": o(d_model), "ln_ffn1_b": z(d_model),
        "pw1_w": w(ks[6], (d_model, 2 * d_model)), "pw1_b": z(2 * d_model),
        "dw_w": w(ks[7], (conv_kernel, d_model)), "dw_b": z(d_model),
        "bn_g": o(d_model), "bn_b": z(d_model),
        "bn_rm": z(d_model), "bn_rv": o(d_model),
        "pw2_w": w(ks[8], (d_model, d_model)), "pw2_b": z(d_model),
        "ln_conv_g": o(d_model), "ln_conv_b": z(d_model),
        "ffn2_w1": w(ks[9], (d_model, d_ff)), "ffn2_b1": z(d_ff),
        "ffn2_w2": w(ks[10], (d_ff, d_model)), "ffn2_b2": z(d_model),
        "ln_ffn2_g": o(d_model), "ln_ffn2_b": z(d_model),
    }


def prepare_params(r, num_heads):
    """One-time prep: fold attention scale into Wq/bq, concat K/V weights,
    fold BN into scale/shift, cast matmul weights to bf16."""
    D = r["wq"].shape[0]
    dk = D // num_heads
    scale = 1.0 / float(dk) ** 0.5
    bf = jnp.bfloat16
    row = lambda v: v.reshape(1, -1).astype(jnp.float32)
    bn_scale = r["bn_g"] / jnp.sqrt(r["bn_rv"] + _BN_EPS)
    return {
        "wq": (r["wq"] * scale).astype(bf), "bq": row(r["bq"] * scale),
        "wkv": jnp.concatenate([r["wk"], r["wv"]], axis=1).astype(bf),
        "bkv": jnp.concatenate([r["bk"], r["bv"]]).reshape(1, -1),
        "wo": r["wo"].astype(bf), "bo": row(r["bo"]),
        "ln_attn_g": row(r["ln_attn_g"]), "ln_attn_b": row(r["ln_attn_b"]),
        "ffn1_w1": r["ffn1_w1"].astype(bf), "ffn1_b1": row(r["ffn1_b1"]),
        "ffn1_w2": r["ffn1_w2"].astype(bf), "ffn1_b2": row(r["ffn1_b2"]),
        "ln_ffn1_g": row(r["ln_ffn1_g"]), "ln_ffn1_b": row(r["ln_ffn1_b"]),
        "pw1_w": r["pw1_w"].astype(bf), "pw1_b": row(r["pw1_b"]),
        "dw_w": r["dw_w"].astype(jnp.float32),
        "bn_scale": row(bn_scale),
        "bn_shift": row((r["dw_b"] - r["bn_rm"]) * bn_scale + r["bn_b"]),
        "pw2_w": r["pw2_w"].astype(bf), "pw2_b": row(r["pw2_b"]),
        "ln_conv_g": row(r["ln_conv_g"]), "ln_conv_b": row(r["ln_conv_b"]),
        "ffn2_w1": r["ffn2_w1"].astype(bf), "ffn2_b1": row(r["ffn2_b1"]),
        "ffn2_w2": r["ffn2_w2"].astype(bf), "ffn2_b2": row(r["ffn2_b2"]),
        "ln_ffn2_g": row(r["ln_ffn2_g"]), "ln_ffn2_b": row(r["ln_ffn2_b"]),
    }


# ---------------------------------------------------------------------------
# Demo
# ---------------------------------------------------------------------------

if __name__ == "__main__":
    B, T, D, H, CK = 2, 16, 64, 4, 7   # batch, seq, d_model, heads, conv kernel
    assert D % H == 0
    key = jax.random.PRNGKey(0)
    kx, kp = jax.random.split(key)

    xs = jax.random.normal(kx, (B, T, D), jnp.float32)
    lengths = jnp.array([T, T - 4], jnp.int32)
    pad_mask = jnp.arange(T)[None, :] >= lengths[:, None]   # (B, T) True = pad

    params = prepare_params(init_params(kp, D, CK), num_heads=H)

    fwd = jax.jit(functools.partial(squeezeformer_block, num_heads=H))
    out = fwd(xs, pad_mask, pad_mask, params)
    out = jax.block_until_ready(out)

    assert out.shape == (B, T, D)
    assert bool(jnp.all(jnp.isfinite(out)))
    print("KERNEL_OK")
</pallas_src>

<mosaic_0001>
module attributes {stable_mosaic.version = 11 : i64} {
  func.func @_linear_kernel(%arg0: i32, %arg1: memref<32x64xf32, #tpu.memory_space<vmem>>, %arg2: memref<64x64xbf16, #tpu.memory_space<vmem>>, %arg3: memref<1x64xf32, #tpu.memory_space<vmem>>, %arg4: memref<32x64xbf16, #tpu.memory_space<vmem>>) attributes {dimension_semantics = [#tpu.dimension_semantics<parallel>], iteration_bounds = array<i64: 1>, scalar_prefetch = 0 : i64, scratch_operands = 0 : i64, tpu.core_type = #tpu.core_type<tc>, window_params = [{transform_indices = @transform_0, window_bounds = array<i64: 32, 64>}, {pipeline_mode = #tpu.pipeline_mode<synchronous>, transform_indices = @transform_1, window_bounds = array<i64: 64, 64>}, {pipeline_mode = #tpu.pipeline_mode<synchronous>, transform_indices = @transform_2, window_bounds = array<i64: 1, 64>}, {transform_indices = @transform_3, window_bounds = array<i64: 32, 64>}]} {
    %c0 = arith.constant 0 : index
    %c0_0 = arith.constant 0 : index
    %0 = vector.load %arg1[%c0, %c0_0] : memref<32x64xf32, #tpu.memory_space<vmem>>, vector<32x64xf32>
    %1 = arith.truncf %0 : vector<32x64xf32> to vector<32x64xbf16>
    %c0_1 = arith.constant 0 : index
    %c0_2 = arith.constant 0 : index
    %2 = vector.load %arg2[%c0_1, %c0_2] : memref<64x64xbf16, #tpu.memory_space<vmem>>, vector<64x64xbf16>
    %cst = arith.constant dense<0.000000e+00> : vector<32x64xf32>
    %3 = tpu.matmul %1, %2, %cst {dimension_numbers = #tpu.dot_dimension_numbers<[1], [0], [0], [1], [0, 0, 1, 1], [], []>} : vector<32x64xbf16>, vector<64x64xbf16>, vector<32x64xf32> -> vector<32x64xf32>
    %c0_3 = arith.constant 0 : index
    %c0_4 = arith.constant 0 : index
    %4 = vector.load %arg3[%c0_3, %c0_4] : memref<1x64xf32, #tpu.memory_space<vmem>>, vector<1x64xf32>
    %5 = vector.broadcast %4 : vector<1x64xf32> to vector<32x64xf32>
    %6 = arith.addf %3, %5 : vector<32x64xf32>
    %7 = arith.truncf %6 : vector<32x64xf32> to vector<32x64xbf16>
    %c0_5 = arith.constant 0 : index
    %c0_6 = arith.constant 0 : index
    %8 = vector.load %arg4[%c0_5, %c0_6] : memref<32x64xbf16, #tpu.memory_space<vmem>>, vector<32x64xbf16>
    tpu.vector_store %arg4[%c0_5, %c0_6], %7 {strides = array<i32>} : memref<32x64xbf16, #tpu.memory_space<vmem>>, vector<32x64xbf16>,
    return
  }
  func.func @transform_0(%arg0: i32) -> (i32, i32) {
    %c0_i32 = arith.constant 0 : i32
    %c0_i32_0 = arith.constant 0 : i32
    return %arg0, %c0_i32 : i32, i32
  }
  func.func @transform_1(%arg0: i32) -> (i32, i32) {
    %c0_i32 = arith.constant 0 : i32
    %c0_i32_0 = arith.constant 0 : i32
    %c0_i32_1 = arith.constant 0 : i32
    return %c0_i32, %c0_i32_0 : i32, i32
  }
  func.func @transform_2(%arg0: i32) -> (i32, i32) {
    %c0_i32 = arith.constant 0 : i32
    %c0_i32_0 = arith.constant 0 : i32
    %c0_i32_1 = arith.constant 0 : i32
    return %c0_i32, %c0_i32_0 : i32, i32
  }
  func.func @transform_3(%arg0: i32) -> (i32, i32) {
    %c0_i32 = arith.constant 0 : i32
    %c0_i32_0 = arith.constant 0 : i32
    return %arg0, %c0_i32 : i32, i32
  }
}

module attributes {stable_mosaic.version = 11 : i64} {
  func.func @_linear_kernel(%arg0: i32, %arg1: memref<32x64xf32, #tpu.memory_space<vmem>>, %arg2: memref<64x128xbf16, #tpu.memory_space<vmem>>, %arg3: memref<1x128xf32, #tpu.memory_space<vmem>>, %arg4: memref<32x128xbf16, #tpu.memory_space<vmem>>) attributes {dimension_semantics = [#tpu.dimension_semantics<parallel>], iteration_bounds = array<i64: 1>, scalar_prefetch = 0 : i64, scratch_operands = 0 : i64, tpu.core_type = #tpu.core_type<tc>, window_params = [{transform_indices = @transform_0, window_bounds = array<i64: 32, 64>}, {pipeline_mode = #tpu.pipeline_mode<synchronous>, transform_indices = @transform_1, window_bounds = array<i64: 64, 128>}, {pipeline_mode = #tpu.pipeline_mode<synchronous>, transform_indices = @transform_2, window_bounds = array<i64: 1, 128>}, {transform_indices = @transform_3, window_bounds = array<i64: 32, 128>}]} {
    %c0 = arith.constant 0 : index
    %c0_0 = arith.constant 0 : index
    %0 = vector.load %arg1[%c0, %c0_0] : memref<32x64xf32, #tpu.memory_space<vmem>>, vector<32x64xf32>
    %1 = arith.truncf %0 : vector<32x64xf32> to vector<32x64xbf16>
    %c0_1 = arith.constant 0 : index
    %c0_2 = arith.constant 0 : index
    %2 = vector.load %arg2[%c0_1, %c0_2] : memref<64x128xbf16, #tpu.memory_space<vmem>>, vector<64x128xbf16>
    %cst = arith.constant dense<0.000000e+00> : vector<32x128xf32>
    %3 = tpu.matmul %1, %2, %cst {dimension_numbers = #tpu.dot_dimension_numbers<[1], [0], [0], [1], [0, 0, 1, 1], [], []>} : vector<32x64xbf16>, vector<64x128xbf16>, vector<32x128xf32> -> vector<32x128xf32>
    %c0_3 = arith.constant 0 : index
    %c0_4 = arith.constant 0 : index
    %4 = vector.load %arg3[%c0_3, %c0_4] : memref<1x128xf32, #tpu.memory_space<vmem>>, vector<1x128xf32>
    %5 = vector.broadcast %4 : vector<1x128xf32> to vector<32x128xf32>
    %6 = arith.addf %3, %5 : vector<32x128xf32>
    %7 = arith.truncf %6 : vector<32x128xf32> to vector<32x128xbf16>
    %c0_5 = arith.constant 0 : index
    %c0_6 = arith.constant 0 : index
    %8 = vector.load %arg4[%c0_5, %c0_6] : memref<32x128xbf16, #tpu.memory_space<vmem>>, vector<32x128xbf16>
    tpu.vector_store %arg4[%c0_5, %c0_6], %7 {strides = array<i32>} : memref<32x128xbf16, #tpu.memory_space<vmem>>, vector<32x128xbf16>,
    return
  }
  func.func @transform_0(%arg0: i32) -> (i32, i32) {
    %c0_i32 = arith.constant 0 : i32
    %c0_i32_0 = arith.constant 0 : i32
    return %arg0, %c0_i32 : i32, i32
  }
  func.func @transform_1(%arg0: i32) -> (i32, i32) {
    %c0_i32 = arith.constant 0 : i32
    %c0_i32_0 = arith.constant 0 : i32
    %c0_i32_1 = arith.constant 0 : i32
    return %c0_i32, %c0_i32_0 : i32, i32
  }
  func.func @transform_2(%arg0: i32) -> (i32, i32) {
    %c0_i32 = arith.constant 0 : i32
    %c0_i32_0 = arith.constant 0 : i32
    %c0_i32_1 = arith.constant 0 : i32
    return %c0_i32, %c0_i32_0 : i32, i32
  }
  func.func @transform_3(%arg0: i32) -> (i32, i32) {
    %c0_i32 = arith.constant 0 : i32
    %c0_i32_0 = arith.constant 0 : i32
    return %arg0, %c0_i32 : i32, i32
  }
}

module attributes {stable_mosaic.version = 11 : i64} {
  func.func @_mhsa_kernel(%arg0: i32, %arg1: i32, %arg2: memref<1x16x64xbf16, #tpu.memory_space<vmem>>, %arg3: memref<1x16x128xbf16, #tpu.memory_space<vmem>>, %arg4: memref<1x1x16xf32, #tpu.memory_space<vmem>>, %arg5: memref<1x16x64xf32, #tpu.memory_space<vmem>>, %arg6: memref<64x64xbf16, #tpu.memory_space<vmem>>, %arg7: memref<1x64xf32, #tpu.memory_space<vmem>>, %arg8: memref<1x64xf32, #tpu.memory_space<vmem>>, %arg9: memref<1x64xf32, #tpu.memory_space<vmem>>, %arg10: memref<1x16x64xf32, #tpu.memory_space<vmem>>) attributes {dimension_semantics = [#tpu.dimension_semantics<parallel>, #tpu.dimension_semantics<parallel>], iteration_bounds = array<i64: 2, 1>, scalar_prefetch = 0 : i64, scratch_operands = 0 : i64, tpu.core_type = #tpu.core_type<tc>, window_params = [{transform_indices = @transform_0, window_bounds = array<i64: 1, 16, 64>}, {transform_indices = @transform_1, window_bounds = array<i64: 1, 16, 128>}, {transform_indices = @transform_2, window_bounds = array<i64: 1, 1, 16>}, {transform_indices = @transform_3, window_bounds = array<i64: 1, 16, 64>}, {pipeline_mode = #tpu.pipeline_mode<synchronous>, transform_indices = @transform_4, window_bounds = array<i64: 64, 64>}, {pipeline_mode = #tpu.pipeline_mode<synchronous>, transform_indices = @transform_5, window_bounds = array<i64: 1, 64>}, {pipeline_mode = #tpu.pipeline_mode<synchronous>, transform_indices = @transform_6, window_bounds = array<i64: 1, 64>}, {pipeline_mode = #tpu.pipeline_mode<synchronous>, transform_indices = @transform_7, window_bounds = array<i64: 1, 64>}, {transform_indices = @transform_8, window_bounds = array<i64: 1, 16, 64>}]} {
    %c0 = arith.constant 0 : index
    %c0_0 = arith.constant 0 : index
    %c0_1 = arith.constant 0 : index
    %0 = vector.load %arg2[%c0, %c0_0, %c0_1] : memref<1x16x64xbf16, #tpu.memory_space<vmem>>, vector<1x16x64xbf16>
    %1 = vector.shape_cast %0 : vector<1x16x64xbf16> to vector<16x64xbf16>
    %c0_2 = arith.constant 0 : index
    %c0_3 = arith.constant 0 : index
    %c0_4 = arith.constant 0 : index
    %2 = vector.load %arg3[%c0_2, %c0_3, %c0_4] : memref<1x16x128xbf16, #tpu.memory_space<vmem>>, vector<1x16x128xbf16>
    %3 = vector.shape_cast %2 : vector<1x16x128xbf16> to vector<16x128xbf16>
    %c0_5 = arith.constant 0 : index
    %c0_6 = arith.constant 0 : index
    %c0_7 = arith.constant 0 : index
    %4 = vector.load %arg4[%c0_5, %c0_6, %c0_7] : memref<1x1x16xf32, #tpu.memory_space<vmem>>, vector<1x1x16xf32>
    %5 = vector.shape_cast %4 : vector<1x1x16xf32> to vector<1x16xf32>
    %cst = arith.constant 0.000000e+00 : f32
    %6 = vector.broadcast %cst : f32 to vector<16x64xf32>
    %7 = vector.extract_strided_slice %1 {offsets = [0, 0], sizes = [16, 16], strides = [1, 1]} : vector<16x64xbf16> to vector<16x16xbf16>
    %8 = vector.extract_strided_slice %3 {offsets = [0, 0], sizes = [16, 16], strides = [1, 1]} : vector<16x128xbf16> to vector<16x16xbf16>
    %9 = vector.extract_strided_slice %3 {offsets = [0, 64], sizes = [16, 16], strides = [1, 1]} : vector<16x128xbf16> to vector<16x16xbf16>
    %cst_8 = arith.constant dense<0.000000e+00> : vector<16x16xf32>
    %10 = tpu.matmul %7, %8, %cst_8 {dimension_numbers = #tpu.dot_dimension_numbers<[1], [1], [0], [0], [0, 0, 1, 0], [], []>} : vector<16x16xbf16>, vector<16x16xbf16>, vector<16x16xf32> -> vector<16x16xf32>
    %11 = vector.broadcast %5 : vector<1x16xf32> to vector<16x16xf32>
    %12 = arith.addf %10, %11 : vector<16x16xf32>
    %cst_9 = arith.constant dense<0xFF800000> : vector<16xf32>
    %13 = vector.multi_reduction <maximumf>, %12, %cst_9 [1] : vector<16x16xf32> to vector<16xf32>
    %14 = vector.shape_cast %13 : vector<16xf32> to vector<16x1xf32>
    %15 = vector.broadcast %14 : vector<16x1xf32> to vector<16x16xf32>
    %16 = arith.subf %12, %15 : vector<16x16xf32>
    %17 = math.exp %16 : vector<16x16xf32>
    %cst_10 = arith.constant dense<0.000000e+00> : vector<16xf32>
    %18 = vector.multi_reduction <add>, %17, %cst_10 [1] : vector<16x16xf32> to vector<16xf32>
    %19 = vector.shape_cast %18 : vector<16xf32> to vector<16x1xf32>
    %20 = tpu.reciprocal %19 {approx = true} : vector<16x1xf32> -> vector<16x1xf32>
    %21 = arith.truncf %17 : vector<16x16xf32> to vector<16x16xbf16>
    %cst_11 = arith.constant dense<0.000000e+00> : vector<16x16xf32>
    %22 = tpu.matmul %21, %9, %cst_11 {dimension_numbers = #tpu.dot_dimension_numbers<[1], [0], [0], [1], [0, 0, 1, 1], [], []>} : vector<16x16xbf16>, vector<16x16xbf16>, vector<16x16xf32> -> vector<16x16xf32>
    %23 = vector.broadcast %20 : vector<16x1xf32> to vector<16x16xf32>
    %24 = arith.mulf %22, %23 : vector<16x16xf32>
    %25 = arith.truncf %24 : vector<16x16xf32> to vector<16x16xbf16>
    %c0_12 = arith.constant 0 : index
    %c0_13 = arith.constant 0 : index
    %26 = vector.load %arg6[%c0_12, %c0_13] : memref<64x64xbf16, #tpu.memory_space<vmem>>, vector<16x64xbf16>
    %cst_14 = arith.constant dense<0.000000e+00> : vector<16x64xf32>
    %27 = tpu.matmul %25, %26, %cst_14 {dimension_numbers = #tpu.dot_dimension_numbers<[1], [0], [0], [1], [0, 0, 1, 1], [], []>} : vector<16x16xbf16>, vector<16x64xbf16>, vector<16x64xf32> -> vector<16x64xf32>
    %28 = arith.addf %6, %27 : vector<16x64xf32>
    %29 = vector.extract_strided_slice %1 {offsets = [0, 16], sizes = [16, 16], strides = [1, 1]} : vector<16x64xbf16> to vector<16x16xbf16>
    %30 = vector.extract_strided_slice %3 {offsets = [0, 16], sizes = [16, 16], strides = [1, 1]} : vector<16x128xbf16> to vector<16x16xbf16>
    %31 = vector.extract_strided_slice %3 {offsets = [0, 80], sizes = [16, 16], strides = [1, 1]} : vector<16x128xbf16> to vector<16x16xbf16>
    %cst_15 = arith.constant dense<0.000000e+00> : vector<16x16xf32>
    %32 = tpu.matmul %29, %30, %cst_15 {dimension_numbers = #tpu.dot_dimension_numbers<[1], [1], [0], [0], [0, 0, 1, 0], [], []>} : vector<16x16xbf16>, vector<16x16xbf16>, vector<16x16xf32> -> vector<16x16xf32>
    %33 = vector.broadcast %5 : vector<1x16xf32> to vector<16x16xf32>
    %34 = arith.addf %32, %33 : vector<16x16xf32>
    %cst_16 = arith.constant dense<0xFF800000> : vector<16xf32>
    %35 = vector.multi_reduction <maximumf>, %34, %cst_16 [1] : vector<16x16xf32> to vector<16xf32>
    %36 = vector.shape_cast %35 : vector<16xf32> to vector<16x1xf32>
    %37 = vector.broadcast %36 : vector<16x1xf32> to vector<16x16xf32>
    %38 = arith.subf %34, %37 : vector<16x16xf32>
    %39 = math.exp %38 : vector<16x16xf32>
    %cst_17 = arith.constant dense<0.000000e+00> : vector<16xf32>
    %40 = vector.multi_reduction <add>, %39, %cst_17 [1] : vector<16x16xf32> to vector<16xf32>
    %41 = vector.shape_cast %40 : vector<16xf32> to vector<16x1xf32>
    %42 = tpu.reciprocal %41 {approx = true} : vector<16x1xf32> -> vector<16x1xf32>
    %43 = arith.truncf %39 : vector<16x16xf32> to vector<16x16xbf16>
    %cst_18 = arith.constant dense<0.000000e+00> : vector<16x16xf32>
    %44 = tpu.matmul %43, %31, %cst_18 {dimension_numbers = #tpu.dot_dimension_numbers<[1], [0], [0], [1], [0, 0, 1, 1], [], []>} : vector<16x16xbf16>, vector<16x16xbf16>, vector<16x16xf32> -> vector<16x16xf32>
    %45 = vector.broadcast %42 : vector<16x1xf32> to vector<16x16xf32>
    %46 = arith.mulf %44, %45 : vector<16x16xf32>
    %47 = arith.truncf %46 : vector<16x16xf32> to vector<16x16xbf16>
    %c16 = arith.constant 16 : index
    %c0_19 = arith.constant 0 : index
    %48 = vector.load %arg6[%c16, %c0_19] : memref<64x64xbf16, #tpu.memory_space<vmem>>, vector<16x64xbf16>
    %cst_20 = arith.constant dense<0.000000e+00> : vector<16x64xf32>
    %49 = tpu.matmul %47, %48, %cst_20 {dimension_numbers = #tpu.dot_dimension_numbers<[1], [0], [0], [1], [0, 0, 1, 1], [], []>} : vector<16x16xbf16>, vector<16x64xbf16>, vector<16x64xf32> -> vector<16x64xf32>
    %50 = arith.addf %28, %49 : vector<16x64xf32>
    %51 = vector.extract_strided_slice %1 {offsets = [0, 32], sizes = [16, 16], strides = [1, 1]} : vector<16x64xbf16> to vector<16x16xbf16>
    %52 = vector.extract_strided_slice %3 {offsets = [0, 32], sizes = [16, 16], strides = [1, 1]} : vector<16x128xbf16> to vector<16x16xbf16>
    %53 = vector.extract_strided_slice %3 {offsets = [0, 96], sizes = [16, 16], strides = [1, 1]} : vector<16x128xbf16> to vector<16x16xbf16>
    %cst_21 = arith.constant dense<0.000000e+00> : vector<16x16xf32>
    %54 = tpu.matmul %51, %52, %cst_21 {dimension_numbers = #tpu.dot_dimension_numbers<[1], [1], [0], [0], [0, 0, 1, 0], [], []>} : vector<16x16xbf16>, vector<16x16xbf16>, vector<16x16xf32> -> vector<16x16xf32>
    %55 = vector.broadcast %5 : vector<1x16xf32> to vector<16x16xf32>
    %56 = arith.addf %54, %55 : vector<16x16xf32>
    %cst_22 = arith.constant dense<0xFF800000> : vector<16xf32>
    %57 = vector.multi_reduction <maximumf>, %56, %cst_22 [1] : vector<16x16xf32> to vector<16xf32>
    %58 = vector.shape_cast %57 : vector<16xf32> to vector<16x1xf32>
    %59 = vector.broadcast %58 : vector<16x1xf32> to vector<16x16xf32>
    %60 = arith.subf %56, %59 : vector<16x16xf32>
    %61 = math.exp %60 : vector<16x16xf32>
    %cst_23 = arith.constant dense<0.000000e+00> : vector<16xf32>
    %62 = vector.multi_reduction <add>, %61, %cst_23 [1] : vector<16x16xf32> to vector<16xf32>
    %63 = vector.shape_cast %62 : vector<16xf32> to vector<16x1xf32>
    %64 = tpu.reciprocal %63 {approx = true} : vector<16x1xf32> -> vector<16x1xf32>
    %65 = arith.truncf %61 : vector<16x16xf32> to vector<16x16xbf16>
    %cst_24 = arith.constant dense<0.000000e+00> : vector<16x16xf32>
    %66 = tpu.matmul %65, %53, %cst_24 {dimension_numbers = #tpu.dot_dimension_numbers<[1], [0], [0], [1], [0, 0, 1, 1], [], []>} : vector<16x16xbf16>, vector<16x16xbf16>, vector<16x16xf32> -> vector<16x16xf32>
    %67 = vector.broadcast %64 : vector<16x1xf32> to vector<16x16xf32>
    %68 = arith.mulf %66, %67 : vector<16x16xf32>
    %69 = arith.truncf %68 : vector<16x16xf32> to vector<16x16xbf16>
    %c32 = arith.constant 32 : index
    %c0_25 = arith.constant 0 : index
    %70 = vector.load %arg6[%c32, %c0_25] : memref<64x64xbf16, #tpu.memory_space<vmem>>, vector<16x64xbf16>
    %cst_26 = arith.constant dense<0.000000e+00> : vector<16x64xf32>
    %71 = tpu.matmul %69, %70, %cst_26 {dimension_numbers = #tpu.dot_dimension_numbers<[1], [0], [0], [1], [0, 0, 1, 1], [], []>} : vector<16x16xbf16>, vector<16x64xbf16>, vector<16x64xf32> -> vector<16x64xf32>
    %72 = arith.addf %50, %71 : vector<16x64xf32>
    %73 = vector.extract_strided_slice %1 {offsets = [0, 48], sizes = [16, 16], strides = [1, 1]} : vector<16x64xbf16> to vector<16x16xbf16>
    %74 = vector.extract_strided_slice %3 {offsets = [0, 48], sizes = [16, 16], strides = [1, 1]} : vector<16x128xbf16> to vector<16x16xbf16>
    %75 = vector.extract_strided_slice %3 {offsets = [0, 112], sizes = [16, 16], strides = [1, 1]} : vector<16x128xbf16> to vector<16x16xbf16>
    %cst_27 = arith.constant dense<0.000000e+00> : vector<16x16xf32>
    %76 = tpu.matmul %73, %74, %cst_27 {dimension_numbers = #tpu.dot_dimension_numbers<[1], [1], [0], [0], [0, 0, 1, 0], [], []>} : vector<16x16xbf16>, vector<16x16xbf16>, vector<16x16xf32> -> vector<16x16xf32>
    %77 = vector.broadcast %5 : vector<1x16xf32> to vector<16x16xf32>
    %78 = arith.addf %76, %77 : vector<16x16xf32>
    %cst_28 = arith.constant dense<0xFF800000> : vector<16xf32>
    %79 = vector.multi_reduction <maximumf>, %78, %cst_28 [1] : vector<16x16xf32> to vector<16xf32>
    %80 = vector.shape_cast %79 : vector<16xf32> to vector<16x1xf32>
    %81 = vector.broadcast %80 : vector<16x1xf32> to vector<16x16xf32>
    %82 = arith.subf %78, %81 : vector<16x16xf32>
    %83 = math.exp %82 : vector<16x16xf32>
    %cst_29 = arith.constant dense<0.000000e+00> : vector<16xf32>
    %84 = vector.multi_reduction <add>, %83, %cst_29 [1] : vector<16x16xf32> to vector<16xf32>
    %85 = vector.shape_cast %84 : vector<16xf32> to vector<16x1xf32>
    %86 = tpu.reciprocal %85 {approx = true} : vector<16x1xf32> -> vector<16x1xf32>
    %87 = arith.truncf %83 : vector<16x16xf32> to vector<16x16xbf16>
    %cst_30 = arith.constant dense<0.000000e+00> : vector<16x16xf32>
    %88 = tpu.matmul %87, %75, %cst_30 {dimension_numbers = #tpu.dot_dimension_numbers<[1], [0], [0], [1], [0, 0, 1, 1], [], []>} : vector<16x16xbf16>, vector<16x16xbf16>, vector<16x16xf32> -> vector<16x16xf32>
    %89 = vector.broadcast %86 : vector<16x1xf32> to vector<16x16xf32>
    %90 = arith.mulf %88, %89 : vector<16x16xf32>
    %91 = arith.truncf %90 : vector<16x16xf32> to vector<16x16xbf16>
    %c48 = arith.constant 48 : index
    %c0_31 = arith.constant 0 : index
    %92 = vector.load %arg6[%c48, %c0_31] : memref<64x64xbf16, #tpu.memory_space<vmem>>, vector<16x64xbf16>
    %cst_32 = arith.constant dense<0.000000e+00> : vector<16x64xf32>
    %93 = tpu.matmul %91, %92, %cst_32 {dimension_numbers = #tpu.dot_dimension_numbers<[1], [0], [0], [1], [0, 0, 1, 1], [], []>} : vector<16x16xbf16>, vector<16x64xbf16>, vector<16x64xf32> -> vector<16x64xf32>
    %94 = arith.addf %72, %93 : vector<16x64xf32>
    %c0_33 = arith.constant 0 : index
    %c0_34 = arith.constant 0 : index
    %95 = vector.load %arg7[%c0_33, %c0_34] : memref<1x64xf32, #tpu.memory_space<vmem>>, vector<1x64xf32>
    %96 = vector.broadcast %95 : vector<1x64xf32> to vector<16x64xf32>
    %97 = arith.addf %94, %96 : vector<16x64xf32>
    %c0_35 = arith.constant 0 : index
    %c0_36 = arith.constant 0 : index
    %c0_37 = arith.constant 0 : index
    %98 = vector.load %arg5[%c0_35, %c0_36, %c0_37] : memref<1x16x64xf32, #tpu.memory_space<vmem>>, vector<1x16x64xf32>
    %99 = vector.shape_cast %98 : vector<1x16x64xf32> to vector<16x64xf32>
    %100 = arith.addf %97, %99 : vector<16x64xf32>
    %cst_38 = arith.constant dense<0.000000e+00> : vector<16xf32>
    %101 = vector.multi_reduction <add>, %100, %cst_38 [1] : vector<16x64xf32> to vector<16xf32>
    %102 = vector.shape_cast %101 : vector<16xf32> to vector<16x1xf32>
    %cst_39 = arith.constant 6.400000e+01 : f32
    %103 = vector.broadcast %cst_39 : f32 to vector<16x1xf32>
    %104 = arith.divf %102, %103 : vector<16x1xf32>
    %105 = vector.broadcast %104 : vector<16x1xf32> to vector<16x64xf32>
    %106 = arith.subf %100, %105 : vector<16x64xf32>
    %107 = arith.mulf %106, %106 : vector<16x64xf32>
    %cst_40 = arith.constant dense<0.000000e+00> : vector<16xf32>
    %108 = vector.multi_reduction <add>, %107, %cst_40 [1] : vector<16x64xf32> to vector<16xf32>
    %109 = vector.shape_cast %108 : vector<16xf32> to vector<16x1xf32>
    %cst_41 = arith.constant 6.400000e+01 : f32
    %110 = vector.broadcast %cst_41 : f32 to vector<16x1xf32>
    %111 = arith.divf %109, %110 : vector<16x1xf32>
    %cst_42 = arith.constant 9.99999974E-6 : f32
    %112 = vector.broadcast %cst_42 : f32 to vector<16x1xf32>
    %113 = arith.addf %111, %112 : vector<16x1xf32>
    %114 = math.rsqrt %113 : vector<16x1xf32>
    %115 = vector.broadcast %114 : vector<16x1xf32> to vector<16x64xf32>
    %116 = arith.mulf %106, %115 : vector<16x64xf32>
    %c0_43 = arith.constant 0 : index
    %c0_44 = arith.constant 0 : index
    %117 = vector.load %arg8[%c0_43, %c0_44] : memref<1x64xf32, #tpu.memory_space<vmem>>, vector<1x64xf32>
    %118 = vector.broadcast %117 : vector<1x64xf32> to vector<16x64xf32>
    %119 = arith.mulf %116, %118 : vector<16x64xf32>
    %c0_45 = arith.constant 0 : index
    %c0_46 = arith.constant 0 : index
    %120 = vector.load %arg9[%c0_45, %c0_46] : memref<1x64xf32, #tpu.memory_space<vmem>>, vector<1x64xf32>
    %121 = vector.broadcast %120 : vector<1x64xf32> to vector<16x64xf32>
    %122 = arith.addf %119, %121 : vector<16x64xf32>
    %c0_47 = arith.constant 0 : index
    %c0_48 = arith.constant 0 : index
    %c0_49 = arith.constant 0 : index
    %123 = vector.load %arg10[%c0_47, %c0_48, %c0_49] : memref<1x16x64xf32, #tpu.memory_space<vmem>>, vector<1x16x64xf32>
    %124 = vector.shape_cast %123 : vector<1x16x64xf32> to vector<16x64xf32>
    %125 = vector.shape_cast %122 : vector<16x64xf32> to vector<1x16x64xf32>
    tpu.vector_store %arg10[%c0_47, %c0_48, %c0_49], %125 {strides = array<i32>} : memref<1x16x64xf32, #tpu.memory_space<vmem>>, vector<1x16x64xf32>,
    return
  }
  func.func @transform_0(%arg0: i32, %arg1: i32) -> (i32, i32, i32) {
    %c0_i32 = arith.constant 0 : i32
    %c0_i32_0 = arith.constant 0 : i32
    return %arg0, %arg1, %c0_i32 : i32, i32, i32
  }
  func.func @transform_1(%arg0: i32, %arg1: i32) -> (i32, i32, i32) {
    %c0_i32 = arith.constant 0 : i32
    %c0_i32_0 = arith.constant 0 : i32
    %c0_i32_1 = arith.constant 0 : i32
    return %arg0, %c0_i32, %c0_i32_0 : i32, i32, i32
  }
  func.func @transform_2(%arg0: i32, %arg1: i32) -> (i32, i32, i32) {
    %c0_i32 = arith.constant 0 : i32
    %c0_i32_0 = arith.constant 0 : i32
    %c0_i32_1 = arith.constant 0 : i32
    return %arg0, %c0_i32, %c0_i32_0 : i32, i32, i32
  }
  func.func @transform_3(%arg0: i32, %arg1: i32) -> (i32, i32, i32) {
    %c0_i32 = arith.constant 0 : i32
    %c0_i32_0 = arith.constant 0 : i32
    return %arg0, %arg1, %c0_i32 : i32, i32, i32
  }
  func.func @transform_4(%arg0: i32, %arg1: i32) -> (i32, i32) {
    %c0_i32 = arith.constant 0 : i32
    %c0_i32_0 = arith.constant 0 : i32
    %c0_i32_1 = arith.constant 0 : i32
    return %c0_i32, %c0_i32_0 : i32, i32
  }
  func.func @transform_5(%arg0: i32, %arg1: i32) -> (i32, i32) {
    %c0_i32 = arith.constant 0 : i32
    %c0_i32_0 = arith.constant 0 : i32
    %c0_i32_1 = arith.constant 0 : i32
    return %c0_i32, %c0_i32_0 : i32, i32
  }
  func.func @transform_6(%arg0: i32, %arg1: i32) -> (i32, i32) {
    %c0_i32 = arith.constant 0 : i32
    %c0_i32_0 = arith.constant 0 : i32
    %c0_i32_1 = arith.constant 0 : i32
    return %c0_i32, %c0_i32_0 : i32, i32
  }
  func.func @transform_7(%arg0: i32, %arg1: i32) -> (i32, i32) {
    %c0_i32 = arith.constant 0 : i32
    %c0_i32_0 = arith.constant 0 : i32
    %c0_i32_1 = arith.constant 0 : i32
    return %c0_i32, %c0_i32_0 : i32, i32
  }
  func.func @transform_8(%arg0: i32, %arg1: i32) -> (i32, i32, i32) {
    %c0_i32 = arith.constant 0 : i32
    %c0_i32_0 = arith.constant 0 : i32
    return %arg0, %arg1, %c0_i32 : i32, i32, i32
  }
}

module attributes {stable_mosaic.version = 11 : i64} {
  func.func @_linear_kernel(%arg0: i32, %arg1: memref<32x64xf32, #tpu.memory_space<vmem>>, %arg2: memref<64x256xbf16, #tpu.memory_space<vmem>>, %arg3: memref<1x256xf32, #tpu.memory_space<vmem>>, %arg4: memref<32x256xbf16, #tpu.memory_space<vmem>>) attributes {dimension_semantics = [#tpu.dimension_semantics<parallel>], iteration_bounds = array<i64: 1>, scalar_prefetch = 0 : i64, scratch_operands = 0 : i64, tpu.core_type = #tpu.core_type<tc>, window_params = [{transform_indices = @transform_0, window_bounds = array<i64: 32, 64>}, {pipeline_mode = #tpu.pipeline_mode<synchronous>, transform_indices = @transform_1, window_bounds = array<i64: 64, 256>}, {pipeline_mode = #tpu.pipeline_mode<synchronous>, transform_indices = @transform_2, window_bounds = array<i64: 1, 256>}, {transform_indices = @transform_3, window_bounds = array<i64: 32, 256>}]} {
    %c0 = arith.constant 0 : index
    %c0_0 = arith.constant 0 : index
    %0 = vector.load %arg1[%c0, %c0_0] : memref<32x64xf32, #tpu.memory_space<vmem>>, vector<32x64xf32>
    %1 = arith.truncf %0 : vector<32x64xf32> to vector<32x64xbf16>
    %c0_1 = arith.constant 0 : index
    %c0_2 = arith.constant 0 : index
    %2 = vector.load %arg2[%c0_1, %c0_2] : memref<64x256xbf16, #tpu.memory_space<vmem>>, vector<64x256xbf16>
    %cst = arith.constant dense<0.000000e+00> : vector<32x256xf32>
    %3 = tpu.matmul %1, %2, %cst {dimension_numbers = #tpu.dot_dimension_numbers<[1], [0], [0], [1], [0, 0, 1, 1], [], []>} : vector<32x64xbf16>, vector<64x256xbf16>, vector<32x256xf32> -> vector<32x256xf32>
    %c0_3 = arith.constant 0 : index
    %c0_4 = arith.constant 0 : index
    %4 = vector.load %arg3[%c0_3, %c0_4] : memref<1x256xf32, #tpu.memory_space<vmem>>, vector<1x256xf32>
    %5 = vector.broadcast %4 : vector<1x256xf32> to vector<32x256xf32>
    %6 = arith.addf %3, %5 : vector<32x256xf32>
    %7 = arith.negf %6 : vector<32x256xf32>
    %8 = math.exp %7 : vector<32x256xf32>
    %cst_5 = arith.constant 1.000000e+00 : f32
    %9 = vector.broadcast %cst_5 : f32 to vector<32x256xf32>
    %10 = arith.addf %9, %8 : vector<32x256xf32>
    %11 = arith.divf %9, %10 : vector<32x256xf32>
    %12 = arith.mulf %6, %11 : vector<32x256xf32>
    %13 = arith.truncf %12 : vector<32x256xf32> to vector<32x256xbf16>
    %c0_6 = arith.constant 0 : index
    %c0_7 = arith.constant 0 : index
    %14 = vector.load %arg4[%c0_6, %c0_7] : memref<32x256xbf16, #tpu.memory_space<vmem>>, vector<32x256xbf16>
    tpu.vector_store %arg4[%c0_6, %c0_7], %13 {strides = array<i32>} : memref<32x256xbf16, #tpu.memory_space<vmem>>, vector<32x256xbf16>,
    return
  }
  func.func @transform_0(%arg0: i32) -> (i32, i32) {
    %c0_i32 = arith.constant 0 : i32
    %c0_i32_0 = arith.constant 0 : i32
    return %arg0, %c0_i32 : i32, i32
  }
  func.func @transform_1(%arg0: i32) -> (i32, i32) {
    %c0_i32 = arith.constant 0 : i32
    %c0_i32_0 = arith.constant 0 : i32
    %c0_i32_1 = arith.constant 0 : i32
    return %c0_i32, %c0_i32_0 : i32, i32
  }
  func.func @transform_2(%arg0: i32) -> (i32, i32) {
    %c0_i32 = arith.constant 0 : i32
    %c0_i32_0 = arith.constant 0 : i32
    %c0_i32_1 = arith.constant 0 : i32
    return %c0_i32, %c0_i32_0 : i32, i32
  }
  func.func @transform_3(%arg0: i32) -> (i32, i32) {
    %c0_i32 = arith.constant 0 : i32
    %c0_i32_0 = arith.constant 0 : i32
    return %arg0, %c0_i32 : i32, i32
  }
}

module attributes {stable_mosaic.version = 11 : i64} {
  func.func @_linear_add_ln_kernel(%arg0: i32, %arg1: memref<32x256xbf16, #tpu.memory_space<vmem>>, %arg2: memref<256x64xbf16, #tpu.memory_space<vmem>>, %arg3: memref<1x64xf32, #tpu.memory_space<vmem>>, %arg4: memref<32x64xf32, #tpu.memory_space<vmem>>, %arg5: memref<1x64xf32, #tpu.memory_space<vmem>>, %arg6: memref<1x64xf32, #tpu.memory_space<vmem>>, %arg7: memref<32x64xf32, #tpu.memory_space<vmem>>) attributes {dimension_semantics = [#tpu.dimension_semantics<parallel>], iteration_bounds = array<i64: 1>, scalar_prefetch = 0 : i64, scratch_operands = 0 : i64, tpu.core_type = #tpu.core_type<tc>, window_params = [{transform_indices = @transform_0, window_bounds = array<i64: 32, 256>}, {pipeline_mode = #tpu.pipeline_mode<synchronous>, transform_indices = @transform_1, window_bounds = array<i64: 256, 64>}, {pipeline_mode = #tpu.pipeline_mode<synchronous>, transform_indices = @transform_2, window_bounds = array<i64: 1, 64>}, {transform_indices = @transform_3, window_bounds = array<i64: 32, 64>}, {pipeline_mode = #tpu.pipeline_mode<synchronous>, transform_indices = @transform_4, window_bounds = array<i64: 1, 64>}, {pipeline_mode = #tpu.pipeline_mode<synchronous>, transform_indices = @transform_5, window_bounds = array<i64: 1, 64>}, {transform_indices = @transform_6, window_bounds = array<i64: 32, 64>}]} {
    %c0 = arith.constant 0 : index
    %c0_0 = arith.constant 0 : index
    %0 = vector.load %arg1[%c0, %c0_0] : memref<32x256xbf16, #tpu.memory_space<vmem>>, vector<32x256xbf16>
    %c0_1 = arith.constant 0 : index
    %c0_2 = arith.constant 0 : index
    %1 = vector.load %arg2[%c0_1, %c0_2] : memref<256x64xbf16, #tpu.memory_space<vmem>>, vector<256x64xbf16>
    %cst = arith.constant dense<0.000000e+00> : vector<32x64xf32>
    %2 = tpu.matmul %0, %1, %cst {dimension_numbers = #tpu.dot_dimension_numbers<[1], [0], [0], [1], [0, 0, 1, 1], [], []>} : vector<32x256xbf16>, vector<256x64xbf16>, vector<32x64xf32> -> vector<32x64xf32>
    %c0_3 = arith.constant 0 : index
    %c0_4 = arith.constant 0 : index
    %3 = vector.load %arg3[%c0_3, %c0_4] : memref<1x64xf32, #tpu.memory_space<vmem>>, vector<1x64xf32>
    %4 = vector.broadcast %3 : vector<1x64xf32> to vector<32x64xf32>
    %5 = arith.addf %2, %4 : vector<32x64xf32>
    %c0_5 = arith.constant 0 : index
    %c0_6 = arith.constant 0 : index
    %6 = vector.load %arg4[%c0_5, %c0_6] : memref<32x64xf32, #tpu.memory_space<vmem>>, vector<32x64xf32>
    %7 = arith.addf %5, %6 : vector<32x64xf32>
    %cst_7 = arith.constant dense<0.000000e+00> : vector<32xf32>
    %8 = vector.multi_reduction <add>, %7, %cst_7 [1] : vector<32x64xf32> to vector<32xf32>
    %9 = vector.shape_cast %8 : vector<32xf32> to vector<32x1xf32>
    %cst_8 = arith.constant 6.400000e+01 : f32
    %10 = vector.broadcast %cst_8 : f32 to vector<32x1xf32>
    %11 = arith.divf %9, %10 : vector<32x1xf32>
    %12 = vector.broadcast %11 : vector<32x1xf32> to vector<32x64xf32>
    %13 = arith.subf %7, %12 : vector<32x64xf32>
    %14 = arith.mulf %13, %13 : vector<32x64xf32>
    %cst_9 = arith.constant dense<0.000000e+00> : vector<32xf32>
    %15 = vector.multi_reduction <add>, %14, %cst_9 [1] : vector<32x64xf32> to vector<32xf32>
    %16 = vector.shape_cast %15 : vector<32xf32> to vector<32x1xf32>
    %cst_10 = arith.constant 6.400000e+01 : f32
    %17 = vector.broadcast %cst_10 : f32 to vector<32x1xf32>
    %18 = arith.divf %16, %17 : vector<32x1xf32>
    %cst_11 = arith.constant 9.99999974E-6 : f32
    %19 = vector.broadcast %cst_11 : f32 to vector<32x1xf32>
    %20 = arith.addf %18, %19 : vector<32x1xf32>
    %21 = math.rsqrt %20 : vector<32x1xf32>
    %22 = vector.broadcast %21 : vector<32x1xf32> to vector<32x64xf32>
    %23 = arith.mulf %13, %22 : vector<32x64xf32>
    %c0_12 = arith.constant 0 : index
    %c0_13 = arith.constant 0 : index
    %24 = vector.load %arg5[%c0_12, %c0_13] : memref<1x64xf32, #tpu.memory_space<vmem>>, vector<1x64xf32>
    %25 = vector.broadcast %24 : vector<1x64xf32> to vector<32x64xf32>
    %26 = arith.mulf %23, %25 : vector<32x64xf32>
    %c0_14 = arith.constant 0 : index
    %c0_15 = arith.constant 0 : index
    %27 = vector.load %arg6[%c0_14, %c0_15] : memref<1x64xf32, #tpu.memory_space<vmem>>, vector<1x64xf32>
    %28 = vector.broadcast %27 : vector<1x64xf32> to vector<32x64xf32>
    %29 = arith.addf %26, %28 : vector<32x64xf32>
    %c0_16 = arith.constant 0 : index
    %c0_17 = arith.constant 0 : index
    %30 = vector.load %arg7[%c0_16, %c0_17] : memref<32x64xf32, #tpu.memory_space<vmem>>, vector<32x64xf32>
    tpu.vector_store %arg7[%c0_16, %c0_17], %29 {strides = array<i32>} : memref<32x64xf32, #tpu.memory_space<vmem>>, vector<32x64xf32>,
    return
  }
  func.func @transform_0(%arg0: i32) -> (i32, i32) {
    %c0_i32 = arith.constant 0 : i32
    %c0_i32_0 = arith.constant 0 : i32
    return %arg0, %c0_i32 : i32, i32
  }
  func.func @transform_1(%arg0: i32) -> (i32, i32) {
    %c0_i32 = arith.constant 0 : i32
    %c0_i32_0 = arith.constant 0 : i32
    %c0_i32_1 = arith.constant 0 : i32
    return %c0_i32, %c0_i32_0 : i32, i32
  }
  func.func @transform_2(%arg0: i32) -> (i32, i32) {
    %c0_i32 = arith.constant 0 : i32
    %c0_i32_0 = arith.constant 0 : i32
    %c0_i32_1 = arith.constant 0 : i32
    return %c0_i32, %c0_i32_0 : i32, i32
  }
  func.func @transform_3(%arg0: i32) -> (i32, i32) {
    %c0_i32 = arith.constant 0 : i32
    %c0_i32_0 = arith.constant 0 : i32
    return %arg0, %c0_i32 : i32, i32
  }
  func.func @transform_4(%arg0: i32) -> (i32, i32) {
    %c0_i32 = arith.constant 0 : i32
    %c0_i32_0 = arith.constant 0 : i32
    %c0_i32_1 = arith.constant 0 : i32
    return %c0_i32, %c0_i32_0 : i32, i32
  }
  func.func @transform_5(%arg0: i32) -> (i32, i32) {
    %c0_i32 = arith.constant 0 : i32
    %c0_i32_0 = arith.constant 0 : i32
    %c0_i32_1 = arith.constant 0 : i32
    return %c0_i32, %c0_i32_0 : i32, i32
  }
  func.func @transform_6(%arg0: i32) -> (i32, i32) {
    %c0_i32 = arith.constant 0 : i32
    %c0_i32_0 = arith.constant 0 : i32
    return %arg0, %c0_i32 : i32, i32
  }
}

module attributes {stable_mosaic.version = 11 : i64} {
  func.func @_linear_add_ln_kernel(%arg0: i32, %arg1: memref<32x256xbf16, #tpu.memory_space<vmem>>, %arg2: memref<256x64xbf16, #tpu.memory_space<vmem>>, %arg3: memref<1x64xf32, #tpu.memory_space<vmem>>, %arg4: memref<32x64xf32, #tpu.memory_space<vmem>>, %arg5: memref<1x64xf32, #tpu.memory_space<vmem>>, %arg6: memref<1x64xf32, #tpu.memory_space<vmem>>, %arg7: memref<32x64xf32, #tpu.memory_space<vmem>>) attributes {dimension_semantics = [#tpu.dimension_semantics<parallel>], iteration_bounds = array<i64: 1>, scalar_prefetch = 0 : i64, scratch_operands = 0 : i64, tpu.core_type = #tpu.core_type<tc>, window_params = [{transform_indices = @transform_0, window_bounds = array<i64: 32, 256>}, {pipeline_mode = #tpu.pipeline_mode<synchronous>, transform_indices = @transform_1, window_bounds = array<i64: 256, 64>}, {pipeline_mode = #tpu.pipeline_mode<synchronous>, transform_indices = @transform_2, window_bounds = array<i64: 1, 64>}, {transform_indices = @transform_3, window_bounds = array<i64: 32, 64>}, {pipeline_mode = #tpu.pipeline_mode<synchronous>, transform_indices = @transform_4, window_bounds = array<i64: 1, 64>}, {pipeline_mode = #tpu.pipeline_mode<synchronous>, transform_indices = @transform_5, window_bounds = array<i64: 1, 64>}, {transform_indices = @transform_6, window_bounds = array<i64: 32, 64>}]} {
    %c0 = arith.constant 0 : index
    %c0_0 = arith.constant 0 : index
    %0 = vector.load %arg1[%c0, %c0_0] : memref<32x256xbf16, #tpu.memory_space<vmem>>, vector<32x256xbf16>
    %c0_1 = arith.constant 0 : index
    %c0_2 = arith.constant 0 : index
    %1 = vector.load %arg2[%c0_1, %c0_2] : memref<256x64xbf16, #tpu.memory_space<vmem>>, vector<256x64xbf16>
    %cst = arith.constant dense<0.000000e+00> : vector<32x64xf32>
    %2 = tpu.matmul %0, %1, %cst {dimension_numbers = #tpu.dot_dimension_numbers<[1], [0], [0], [1], [0, 0, 1, 1], [], []>} : vector<32x256xbf16>, vector<256x64xbf16>, vector<32x64xf32> -> vector<32x64xf32>
    %c0_3 = arith.constant 0 : index
    %c0_4 = arith.constant 0 : index
    %3 = vector.load %arg3[%c0_3, %c0_4] : memref<1x64xf32, #tpu.memory_space<vmem>>, vector<1x64xf32>
    %4 = vector.broadcast %3 : vector<1x64xf32> to vector<32x64xf32>
    %5 = arith.addf %2, %4 : vector<32x64xf32>
    %c0_5 = arith.constant 0 : index
    %c0_6 = arith.constant 0 : index
    %6 = vector.load %arg4[%c0_5, %c0_6] : memref<32x64xf32, #tpu.memory_space<vmem>>, vector<32x64xf32>
    %7 = arith.addf %5, %6 : vector<32x64xf32>
    %cst_7 = arith.constant dense<0.000000e+00> : vector<32xf32>
    %8 = vector.multi_reduction <add>, %7, %cst_7 [1] : vector<32x64xf32> to vector<32xf32>
    %9 = vector.shape_cast %8 : vector<32xf32> to vector<32x1xf32>
    %cst_8 = arith.constant 6.400000e+01 : f32
    %10 = vector.broadcast %cst_8 : f32 to vector<32x1xf32>
    %11 = arith.divf %9, %10 : vector<32x1xf32>
    %12 = vector.broadcast %11 : vector<32x1xf32> to vector<32x64xf32>
    %13 = arith.subf %7, %12 : vector<32x64xf32>
    %14 = arith.mulf %13, %13 : vector<32x64xf32>
    %cst_9 = arith.constant dense<0.000000e+00> : vector<32xf32>
    %15 = vector.multi_reduction <add>, %14, %cst_9 [1] : vector<32x64xf32> to vector<32xf32>
    %16 = vector.shape_cast %15 : vector<32xf32> to vector<32x1xf32>
    %cst_10 = arith.constant 6.400000e+01 : f32
    %17 = vector.broadcast %cst_10 : f32 to vector<32x1xf32>
    %18 = arith.divf %16, %17 : vector<32x1xf32>
    %cst_11 = arith.constant 9.99999974E-6 : f32
    %19 = vector.broadcast %cst_11 : f32 to vector<32x1xf32>
    %20 = arith.addf %18, %19 : vector<32x1xf32>
    %21 = math.rsqrt %20 : vector<32x1xf32>
    %22 = vector.broadcast %21 : vector<32x1xf32> to vector<32x64xf32>
    %23 = arith.mulf %13, %22 : vector<32x64xf32>
    %c0_12 = arith.constant 0 : index
    %c0_13 = arith.constant 0 : index
    %24 = vector.load %arg5[%c0_12, %c0_13] : memref<1x64xf32, #tpu.memory_space<vmem>>, vector<1x64xf32>
    %25 = vector.broadcast %24 : vector<1x64xf32> to vector<32x64xf32>
    %26 = arith.mulf %23, %25 : vector<32x64xf32>
    %c0_14 = arith.constant 0 : index
    %c0_15 = arith.constant 0 : index
    %27 = vector.load %arg6[%c0_14, %c0_15] : memref<1x64xf32, #tpu.memory_space<vmem>>, vector<1x64xf32>
    %28 = vector.broadcast %27 : vector<1x64xf32> to vector<32x64xf32>
    %29 = arith.addf %26, %28 : vector<32x64xf32>
    %c0_16 = arith.constant 0 : index
    %c0_17 = arith.constant 0 : index
    %30 = vector.load %arg7[%c0_16, %c0_17] : memref<32x64xf32, #tpu.memory_space<vmem>>, vector<32x64xf32>
    tpu.vector_store %arg7[%c0_16, %c0_17], %29 {strides = array<i32>} : memref<32x64xf32, #tpu.memory_space<vmem>>, vector<32x64xf32>,
    return
  }
  func.func @transform_0(%arg0: i32) -> (i32, i32) {
    %c0_i32 = arith.constant 0 : i32
    %c0_i32_0 = arith.constant 0 : i32
    return %arg0, %c0_i32 : i32, i32
  }
  func.func @transform_1(%arg0: i32) -> (i32, i32) {
    %c0_i32 = arith.constant 0 : i32
    %c0_i32_0 = arith.constant 0 : i32
    %c0_i32_1 = arith.constant 0 : i32
    return %c0_i32, %c0_i32_0 : i32, i32
  }
  func.func @transform_2(%arg0: i32) -> (i32, i32) {
    %c0_i32 = arith.constant 0 : i32
    %c0_i32_0 = arith.constant 0 : i32
    %c0_i32_1 = arith.constant 0 : i32
    return %c0_i32, %c0_i32_0 : i32, i32
  }
  func.func @transform_3(%arg0: i32) -> (i32, i32) {
    %c0_i32 = arith.constant 0 : i32
    %c0_i32_0 = arith.constant 0 : i32
    return %arg0, %c0_i32 : i32, i32
  }
  func.func @transform_4(%arg0: i32) -> (i32, i32) {
    %c0_i32 = arith.constant 0 : i32
    %c0_i32_0 = arith.constant 0 : i32
    %c0_i32_1 = arith.constant 0 : i32
    return %c0_i32, %c0_i32_0 : i32, i32
  }
  func.func @transform_5(%arg0: i32) -> (i32, i32) {
    %c0_i32 = arith.constant 0 : i32
    %c0_i32_0 = arith.constant 0 : i32
    %c0_i32_1 = arith.constant 0 : i32
    return %c0_i32, %c0_i32_0 : i32, i32
  }
  func.func @transform_6(%arg0: i32) -> (i32, i32) {
    %c0_i32 = arith.constant 0 : i32
    %c0_i32_0 = arith.constant 0 : i32
    return %arg0, %c0_i32 : i32, i32
  }
}

module attributes {stable_mosaic.version = 11 : i64} {
  func.func @_conv_module_kernel(%arg0: i32, %arg1: memref<1x16x64xf32, #tpu.memory_space<vmem>>, %arg2: memref<1x16x1xf32, #tpu.memory_space<vmem>>, %arg3: memref<64x128xbf16, #tpu.memory_space<vmem>>, %arg4: memref<1x128xf32, #tpu.memory_space<vmem>>, %arg5: memref<7x64xf32, #tpu.memory_space<vmem>>, %arg6: memref<1x64xf32, #tpu.memory_space<vmem>>, %arg7: memref<1x64xf32, #tpu.memory_space<vmem>>, %arg8: memref<64x64xbf16, #tpu.memory_space<vmem>>, %arg9: memref<1x64xf32, #tpu.memory_space<vmem>>, %arg10: memref<1x64xf32, #tpu.memory_space<vmem>>, %arg11: memref<1x64xf32, #tpu.memory_space<vmem>>, %arg12: memref<1x16x64xf32, #tpu.memory_space<vmem>>) attributes {dimension_semantics = [#tpu.dimension_semantics<parallel>], iteration_bounds = array<i64: 2>, scalar_prefetch = 0 : i64, scratch_operands = 0 : i64, tpu.core_type = #tpu.core_type<tc>, window_params = [{transform_indices = @transform_0, window_bounds = array<i64: 1, 16, 64>}, {transform_indices = @transform_1, window_bounds = array<i64: 1, 16, 1>}, {pipeline_mode = #tpu.pipeline_mode<synchronous>, transform_indices = @transform_2, window_bounds = array<i64: 64, 128>}, {pipeline_mode = #tpu.pipeline_mode<synchronous>, transform_indices = @transform_3, window_bounds = array<i64: 1, 128>}, {pipeline_mode = #tpu.pipeline_mode<synchronous>, transform_indices = @transform_4, window_bounds = array<i64: 7, 64>}, {pipeline_mode = #tpu.pipeline_mode<synchronous>, transform_indices = @transform_5, window_bounds = array<i64: 1, 64>}, {pipeline_mode = #tpu.pipeline_mode<synchronous>, transform_indices = @transform_6, window_bounds = array<i64: 1, 64>}, {pipeline_mode = #tpu.pipeline_mode<synchronous>, transform_indices = @transform_7, window_bounds = array<i64: 64, 64>}, {pipeline_mode = #tpu.pipeline_mode<synchronous>, transform_indices = @transform_8, window_bounds = array<i64: 1, 64>}, {pipeline_mode = #tpu.pipeline_mode<synchronous>, transform_indices = @transform_9, window_bounds = array<i64: 1, 64>}, {pipeline_mode = #tpu.pipeline_mode<synchronous>, transform_indices = @transform_10, window_bounds = array<i64: 1, 64>}, {transform_indices = @transform_11, window_bounds = array<i64: 1, 16, 64>}]} {
    %c0 = arith.constant 0 : index
    %c0_0 = arith.constant 0 : index
    %c0_1 = arith.constant 0 : index
    %0 = vector.load %arg1[%c0, %c0_0, %c0_1] : memref<1x16x64xf32, #tpu.memory_space<vmem>>, vector<1x16x64xf32>
    %1 = vector.shape_cast %0 : vector<1x16x64xf32> to vector<16x64xf32>
    %c0_2 = arith.constant 0 : index
    %c0_3 = arith.constant 0 : index
    %c0_4 = arith.constant 0 : index
    %2 = vector.load %arg2[%c0_2, %c0_3, %c0_4] : memref<1x16x1xf32, #tpu.memory_space<vmem>>, vector<1x16x1xf32>
    %3 = vector.shape_cast %2 : vector<1x16x1xf32> to vector<16x1xf32>
    %4 = vector.broadcast %3 : vector<16x1xf32> to vector<16x64xf32>
    %5 = arith.mulf %1, %4 : vector<16x64xf32>
    %6 = arith.truncf %5 : vector<16x64xf32> to vector<16x64xbf16>
    %c0_5 = arith.constant 0 : index
    %c0_6 = arith.constant 0 : index
    %7 = vector.load %arg3[%c0_5, %c0_6] : memref<64x128xbf16, #tpu.memory_space<vmem>>, vector<64x128xbf16>
    %cst = arith.constant dense<0.000000e+00> : vector<16x128xf32>
    %8 = tpu.matmul %6, %7, %cst {dimension_numbers = #tpu.dot_dimension_numbers<[1], [0], [0], [1], [0, 0, 1, 1], [], []>} : vector<16x64xbf16>, vector<64x128xbf16>, vector<16x128xf32> -> vector<16x128xf32>
    %c0_7 = arith.constant 0 : index
    %c0_8 = arith.constant 0 : index
    %9 = vector.load %arg4[%c0_7, %c0_8] : memref<1x128xf32, #tpu.memory_space<vmem>>, vector<1x128xf32>
    %10 = vector.broadcast %9 : vector<1x128xf32> to vector<16x128xf32>
    %11 = arith.addf %8, %10 : vector<16x128xf32>
    %12 = vector.extract_strided_slice %11 {offsets = [0, 0], sizes = [16, 64], strides = [1, 1]} : vector<16x128xf32> to vector<16x64xf32>
    %13 = vector.extract_strided_slice %11 {offsets = [0, 64], sizes = [16, 64], strides = [1, 1]} : vector<16x128xf32> to vector<16x64xf32>
    %14 = arith.negf %13 : vector<16x64xf32>
    %15 = math.exp %14 : vector<16x64xf32>
    %cst_9 = arith.constant 1.000000e+00 : f32
    %16 = vector.broadcast %cst_9 : f32 to vector<16x64xf32>
    %17 = arith.addf %16, %15 : vector<16x64xf32>
    %18 = arith.divf %16, %17 : vector<16x64xf32>
    %19 = arith.mulf %12, %18 : vector<16x64xf32>
    %20 = tpu.iota {dimensions = array<i32: 0>} : vector<16x1xi32>
    %cst_10 = arith.constant 0.000000e+00 : f32
    %21 = vector.broadcast %cst_10 : f32 to vector<16x64xf32>
    %c0_11 = arith.constant 0 : index
    %c0_12 = arith.constant 0 : index
    %22 = vector.load %arg5[%c0_11, %c0_12] : memref<7x64xf32, #tpu.memory_space<vmem>>, vector<1x64xf32>
    %c3_i32 = arith.constant 3 : i32
    %23 = tpu.dynamic_rotate %19 by %c3_i32 dim 0 : vector<16x64xf32>, i32 -> vector<16x64xf32>
    %c3_i32_13 = arith.constant 3 : i32
    %24 = vector.broadcast %c3_i32_13 : i32 to vector<16x1xi32>
    %25 = arith.cmpi sge, %20, %24 : vector<16x1xi32>
    %c16_i32 = arith.constant 16 : i32
    %26 = vector.broadcast %c16_i32 : i32 to vector<16x1xi32>
    %27 = arith.cmpi slt, %20, %26 : vector<16x1xi32>
    %28 = arith.andi %25, %27 : vector<16x1xi1>
    %29 = arith.extui %28 : vector<16x1xi1> to vector<16x1xi32>
    %30 = arith.sitofp %29 : vector<16x1xi32> to vector<16x1xf32>
    %31 = vector.broadcast %30 : vector<16x1xf32> to vector<16x64xf32>
    %32 = arith.mulf %23, %31 : vector<16x64xf32>
    %33 = vector.broadcast %22 : vector<1x64xf32> to vector<16x64xf32>
    %34 = arith.mulf %32, %33 : vector<16x64xf32>
    %35 = arith.addf %21, %34 : vector<16x64xf32>
    %c1 = arith.constant 1 : index
    %c0_14 = arith.constant 0 : index
    %36 = vector.load %arg5[%c1, %c0_14] : memref<7x64xf32, #tpu.memory_space<vmem>>, vector<1x64xf32>
    %c2_i32 = arith.constant 2 : i32
    %37 = tpu.dynamic_rotate %19 by %c2_i32 dim 0 : vector<16x64xf32>, i32 -> vector<16x64xf32>
    %c2_i32_15 = arith.constant 2 : i32
    %38 = vector.broadcast %c2_i32_15 : i32 to vector<16x1xi32>
    %39 = arith.cmpi sge, %20, %38 : vector<16x1xi32>
    %c16_i32_16 = arith.constant 16 : i32
    %40 = vector.broadcast %c16_i32_16 : i32 to vector<16x1xi32>
    %41 = arith.cmpi slt, %20, %40 : vector<16x1xi32>
    %42 = arith.andi %39, %41 : vector<16x1xi1>
    %43 = arith.extui %42 : vector<16x1xi1> to vector<16x1xi32>
    %44 = arith.sitofp %43 : vector<16x1xi32> to vector<16x1xf32>
    %45 = vector.broadcast %44 : vector<16x1xf32> to vector<16x64xf32>
    %46 = arith.mulf %37, %45 : vector<16x64xf32>
    %47 = vector.broadcast %36 : vector<1x64xf32> to vector<16x64xf32>
    %48 = arith.mulf %46, %47 : vector<16x64xf32>
    %49 = arith.addf %35, %48 : vector<16x64xf32>
    %c2 = arith.constant 2 : index
    %c0_17 = arith.constant 0 : index
    %50 = vector.load %arg5[%c2, %c0_17] : memref<7x64xf32, #tpu.memory_space<vmem>>, vector<1x64xf32>
    %c1_i32 = arith.constant 1 : i32
    %51 = tpu.dynamic_rotate %19 by %c1_i32 dim 0 : vector<16x64xf32>, i32 -> vector<16x64xf32>
    %c1_i32_18 = arith.constant 1 : i32
    %52 = vector.broadcast %c1_i32_18 : i32 to vector<16x1xi32>
    %53 = arith.cmpi sge, %20, %52 : vector<16x1xi32>
    %c16_i32_19 = arith.constant 16 : i32
    %54 = vector.broadcast %c16_i32_19 : i32 to vector<16x1xi32>
    %55 = arith.cmpi slt, %20, %54 : vector<16x1xi32>
    %56 = arith.andi %53, %55 : vector<16x1xi1>
    %57 = arith.extui %56 : vector<16x1xi1> to vector<16x1xi32>
    %58 = arith.sitofp %57 : vector<16x1xi32> to vector<16x1xf32>
    %59 = vector.broadcast %58 : vector<16x1xf32> to vector<16x64xf32>
    %60 = arith.mulf %51, %59 : vector<16x64xf32>
    %61 = vector.broadcast %50 : vector<1x64xf32> to vector<16x64xf32>
    %62 = arith.mulf %60, %61 : vector<16x64xf32>
    %63 = arith.addf %49, %62 : vector<16x64xf32>
    %c3 = arith.constant 3 : index
    %c0_20 = arith.constant 0 : index
    %64 = vector.load %arg5[%c3, %c0_20] : memref<7x64xf32, #tpu.memory_space<vmem>>, vector<1x64xf32>
    %65 = vector.broadcast %64 : vector<1x64xf32> to vector<16x64xf32>
    %66 = arith.mulf %19, %65 : vector<16x64xf32>
    %67 = arith.addf %63, %66 : vector<16x64xf32>
    %c4 = arith.constant 4 : index
    %c0_21 = arith.constant 0 : index
    %68 = vector.load %arg5[%c4, %c0_21] : memref<7x64xf32, #tpu.memory_space<vmem>>, vector<1x64xf32>
    %c15_i32 = arith.constant 15 : i32
    %69 = tpu.dynamic_rotate %19 by %c15_i32 dim 0 : vector<16x64xf32>, i32 -> vector<16x64xf32>
    %c0_i32 = arith.constant 0 : i32
    %70 = vector.broadcast %c0_i32 : i32 to vector<16x1xi32>
    %71 = arith.cmpi sge, %20, %70 : vector<16x1xi32>
    %c15_i32_22 = arith.constant 15 : i32
    %72 = vector.broadcast %c15_i32_22 : i32 to vector<16x1xi32>
    %73 = arith.cmpi slt, %20, %72 : vector<16x1xi32>
    %74 = arith.andi %71, %73 : vector<16x1xi1>
    %75 = arith.extui %74 : vector<16x1xi1> to vector<16x1xi32>
    %76 = arith.sitofp %75 : vector<16x1xi32> to vector<16x1xf32>
    %77 = vector.broadcast %76 : vector<16x1xf32> to vector<16x64xf32>
    %78 = arith.mulf %69, %77 : vector<16x64xf32>
    %79 = vector.broadcast %68 : vector<1x64xf32> to vector<16x64xf32>
    %80 = arith.mulf %78, %79 : vector<16x64xf32>
    %81 = arith.addf %67, %80 : vector<16x64xf32>
    %c5 = arith.constant 5 : index
    %c0_23 = arith.constant 0 : index
    %82 = vector.load %arg5[%c5, %c0_23] : memref<7x64xf32, #tpu.memory_space<vmem>>, vector<1x64xf32>
    %c14_i32 = arith.constant 14 : i32
    %83 = tpu.dynamic_rotate %19 by %c14_i32 dim 0 : vector<16x64xf32>, i32 -> vector<16x64xf32>
    %c0_i32_24 = arith.constant 0 : i32
    %84 = vector.broadcast %c0_i32_24 : i32 to vector<16x1xi32>
    %85 = arith.cmpi sge, %20, %84 : vector<16x1xi32>
    %c14_i32_25 = arith.constant 14 : i32
    %86 = vector.broadcast %c14_i32_25 : i32 to vector<16x1xi32>
    %87 = arith.cmpi slt, %20, %86 : vector<16x1xi32>
    %88 = arith.andi %85, %87 : vector<16x1xi1>
    %89 = arith.extui %88 : vector<16x1xi1> to vector<16x1xi32>
    %90 = arith.sitofp %89 : vector<16x1xi32> to vector<16x1xf32>
    %91 = vector.broadcast %90 : vector<16x1xf32> to vector<16x64xf32>
    %92 = arith.mulf %83, %91 : vector<16x64xf32>
    %93 = vector.broadcast %82 : vector<1x64xf32> to vector<16x64xf32>
    %94 = arith.mulf %92, %93 : vector<16x64xf32>
    %95 = arith.addf %81, %94 : vector<16x64xf32>
    %c6 = arith.constant 6 : index
    %c0_26 = arith.constant 0 : index
    %96 = vector.load %arg5[%c6, %c0_26] : memref<7x64xf32, #tpu.memory_space<vmem>>, vector<1x64xf32>
    %c13_i32 = arith.constant 13 : i32
    %97 = tpu.dynamic_rotate %19 by %c13_i32 dim 0 : vector<16x64xf32>, i32 -> vector<16x64xf32>
    %c0_i32_27 = arith.constant 0 : i32
    %98 = vector.broadcast %c0_i32_27 : i32 to vector<16x1xi32>
    %99 = arith.cmpi sge, %20, %98 : vector<16x1xi32>
    %c13_i32_28 = arith.constant 13 : i32
    %100 = vector.broadcast %c13_i32_28 : i32 to vector<16x1xi32>
    %101 = arith.cmpi slt, %20, %100 : vector<16x1xi32>
    %102 = arith.andi %99, %101 : vector<16x1xi1>
    %103 = arith.extui %102 : vector<16x1xi1> to vector<16x1xi32>
    %104 = arith.sitofp %103 : vector<16x1xi32> to vector<16x1xf32>
    %105 = vector.broadcast %104 : vector<16x1xf32> to vector<16x64xf32>
    %106 = arith.mulf %97, %105 : vector<16x64xf32>
    %107 = vector.broadcast %96 : vector<1x64xf32> to vector<16x64xf32>
    %108 = arith.mulf %106, %107 : vector<16x64xf32>
    %109 = arith.addf %95, %108 : vector<16x64xf32>
    %c0_29 = arith.constant 0 : index
    %c0_30 = arith.constant 0 : index
    %110 = vector.load %arg6[%c0_29, %c0_30] : memref<1x64xf32, #tpu.memory_space<vmem>>, vector<1x64xf32>
    %111 = vector.broadcast %110 : vector<1x64xf32> to vector<16x64xf32>
    %112 = arith.mulf %109, %111 : vector<16x64xf32>
    %c0_31 = arith.constant 0 : index
    %c0_32 = arith.constant 0 : index
    %113 = vector.load %arg7[%c0_31, %c0_32] : memref<1x64xf32, #tpu.memory_space<vmem>>, vector<1x64xf32>
    %114 = vector.broadcast %113 : vector<1x64xf32> to vector<16x64xf32>
    %115 = arith.addf %112, %114 : vector<16x64xf32>
    %116 = arith.negf %115 : vector<16x64xf32>
    %117 = math.exp %116 : vector<16x64xf32>
    %cst_33 = arith.constant 1.000000e+00 : f32
    %118 = vector.broadcast %cst_33 : f32 to vector<16x64xf32>
    %119 = arith.addf %118, %117 : vector<16x64xf32>
    %120 = arith.divf %118, %119 : vector<16x64xf32>
    %121 = arith.mulf %115, %120 : vector<16x64xf32>
    %122 = arith.truncf %121 : vector<16x64xf32> to vector<16x64xbf16>
    %c0_34 = arith.constant 0 : index
    %c0_35 = arith.constant 0 : index
    %123 = vector.load %arg8[%c0_34, %c0_35] : memref<64x64xbf16, #tpu.memory_space<vmem>>, vector<64x64xbf16>
    %cst_36 = arith.constant dense<0.000000e+00> : vector<16x64xf32>
    %124 = tpu.matmul %122, %123, %cst_36 {dimension_numbers = #tpu.dot_dimension_numbers<[1], [0], [0], [1], [0, 0, 1, 1], [], []>} : vector<16x64xbf16>, vector<64x64xbf16>, vector<16x64xf32> -> vector<16x64xf32>
    %c0_37 = arith.constant 0 : index
    %c0_38 = arith.constant 0 : index
    %125 = vector.load %arg9[%c0_37, %c0_38] : memref<1x64xf32, #tpu.memory_space<vmem>>, vector<1x64xf32>
    %126 = vector.broadcast %125 : vector<1x64xf32> to vector<16x64xf32>
    %127 = arith.addf %124, %126 : vector<16x64xf32>
    %128 = arith.addf %127, %1 : vector<16x64xf32>
    %cst_39 = arith.constant dense<0.000000e+00> : vector<16xf32>
    %129 = vector.multi_reduction <add>, %128, %cst_39 [1] : vector<16x64xf32> to vector<16xf32>
    %130 = vector.shape_cast %129 : vector<16xf32> to vector<16x1xf32>
    %cst_40 = arith.constant 6.400000e+01 : f32
    %131 = vector.broadcast %cst_40 : f32 to vector<16x1xf32>
    %132 = arith.divf %130, %131 : vector<16x1xf32>
    %133 = vector.broadcast %132 : vector<16x1xf32> to vector<16x64xf32>
    %134 = arith.subf %128, %133 : vector<16x64xf32>
    %135 = arith.mulf %134, %134 : vector<16x64xf32>
    %cst_41 = arith.constant dense<0.000000e+00> : vector<16xf32>
    %136 = vector.multi_reduction <add>, %135, %cst_41 [1] : vector<16x64xf32> to vector<16xf32>
    %137 = vector.shape_cast %136 : vector<16xf32> to vector<16x1xf32>
    %cst_42 = arith.constant 6.400000e+01 : f32
    %138 = vector.broadcast %cst_42 : f32 to vector<16x1xf32>
    %139 = arith.divf %137, %138 : vector<16x1xf32>
    %cst_43 = arith.constant 9.99999974E-6 : f32
    %140 = vector.broadcast %cst_43 : f32 to vector<16x1xf32>
    %141 = arith.addf %139, %140 : vector<16x1xf32>
    %142 = math.rsqrt %141 : vector<16x1xf32>
    %143 = vector.broadcast %142 : vector<16x1xf32> to vector<16x64xf32>
    %144 = arith.mulf %134, %143 : vector<16x64xf32>
    %c0_44 = arith.constant 0 : index
    %c0_45 = arith.constant 0 : index
    %145 = vector.load %arg10[%c0_44, %c0_45] : memref<1x64xf32, #tpu.memory_space<vmem>>, vector<1x64xf32>
    %146 = vector.broadcast %145 : vector<1x64xf32> to vector<16x64xf32>
    %147 = arith.mulf %144, %146 : vector<16x64xf32>
    %c0_46 = arith.constant 0 : index
    %c0_47 = arith.constant 0 : index
    %148 = vector.load %arg11[%c0_46, %c0_47] : memref<1x64xf32, #tpu.memory_space<vmem>>, vector<1x64xf32>
    %149 = vector.broadcast %148 : vector<1x64xf32> to vector<16x64xf32>
    %150 = arith.addf %147, %149 : vector<16x64xf32>
    %c0_48 = arith.constant 0 : index
    %c0_49 = arith.constant 0 : index
    %c0_50 = arith.constant 0 : index
    %151 = vector.load %arg12[%c0_48, %c0_49, %c0_50] : memref<1x16x64xf32, #tpu.memory_space<vmem>>, vector<1x16x64xf32>
    %152 = vector.shape_cast %151 : vector<1x16x64xf32> to vector<16x64xf32>
    %153 = vector.shape_cast %150 : vector<16x64xf32> to vector<1x16x64xf32>
    tpu.vector_store %arg12[%c0_48, %c0_49, %c0_50], %153 {strides = array<i32>} : memref<1x16x64xf32, #tpu.memory_space<vmem>>, vector<1x16x64xf32>,
    return
  }
  func.func @transform_0(%arg0: i32) -> (i32, i32, i32) {
    %c0_i32 = arith.constant 0 : i32
    %c0_i32_0 = arith.constant 0 : i32
    %c0_i32_1 = arith.constant 0 : i32
    return %arg0, %c0_i32, %c0_i32_0 : i32, i32, i32
  }
  func.func @transform_1(%arg0: i32) -> (i32, i32, i32) {
    %c0_i32 = arith.constant 0 : i32
    %c0_i32_0 = arith.constant 0 : i32
    %c0_i32_1 = arith.constant 0 : i32
    return %arg0, %c0_i32, %c0_i32_0 : i32, i32, i32
  }
  func.func @transform_2(%arg0: i32) -> (i32, i32) {
    %c0_i32 = arith.constant 0 : i32
    %c0_i32_0 = arith.constant 0 : i32
    %c0_i32_1 = arith.constant 0 : i32
    return %c0_i32, %c0_i32_0 : i32, i32
  }
  func.func @transform_3(%arg0: i32) -> (i32, i32) {
    %c0_i32 = arith.constant 0 : i32
    %c0_i32_0 = arith.constant 0 : i32
    %c0_i32_1 = arith.constant 0 : i32
    return %c0_i32, %c0_i32_0 : i32, i32
  }
  func.func @transform_4(%arg0: i32) -> (i32, i32) {
    %c0_i32 = arith.constant 0 : i32
    %c0_i32_0 = arith.constant 0 : i32
    %c0_i32_1 = arith.constant 0 : i32
    return %c0_i32, %c0_i32_0 : i32, i32
  }
  func.func @transform_5(%arg0: i32) -> (i32, i32) {
    %c0_i32 = arith.constant 0 : i32
    %c0_i32_0 = arith.constant 0 : i32
    %c0_i32_1 = arith.constant 0 : i32
    return %c0_i32, %c0_i32_0 : i32, i32
  }
  func.func @transform_6(%arg0: i32) -> (i32, i32) {
    %c0_i32 = arith.constant 0 : i32
    %c0_i32_0 = arith.constant 0 : i32
    %c0_i32_1 = arith.constant 0 : i32
    return %c0_i32, %c0_i32_0 : i32, i32
  }
  func.func @transform_7(%arg0: i32) -> (i32, i32) {
    %c0_i32 = arith.constant 0 : i32
    %c0_i32_0 = arith.constant 0 : i32
    %c0_i32_1 = arith.constant 0 : i32
    return %c0_i32, %c0_i32_0 : i32, i32
  }
  func.func @transform_8(%arg0: i32) -> (i32, i32) {
    %c0_i32 = arith.constant 0 : i32
    %c0_i32_0 = arith.constant 0 : i32
    %c0_i32_1 = arith.constant 0 : i32
    return %c0_i32, %c0_i32_0 : i32, i32
  }
  func.func @transform_9(%arg0: i32) -> (i32, i32) {
    %c0_i32 = arith.constant 0 : i32
    %c0_i32_0 = arith.constant 0 : i32
    %c0_i32_1 = arith.constant 0 : i32
    return %c0_i32, %c0_i32_0 : i32, i32
  }
  func.func @transform_10(%arg0: i32) -> (i32, i32) {
    %c0_i32 = arith.constant 0 : i32
    %c0_i32_0 = arith.constant 0 : i32
    %c0_i32_1 = arith.constant 0 : i32
    return %c0_i32, %c0_i32_0 : i32, i32
  }
  func.func @transform_11(%arg0: i32) -> (i32, i32, i32) {
    %c0_i32 = arith.constant 0 : i32
    %c0_i32_0 = arith.constant 0 : i32
    %c0_i32_1 = arith.constant 0 : i32
    return %arg0, %c0_i32, %c0_i32_0 : i32, i32, i32
  }
}

</mosaic_0001>

<llo_original>
// kernel: squeezeformer_block.8
$region0: #{squeezeformer_block.8}
  #allocation0 [shape = 'u32[]', space=smem, size = 0x4, offset = 0x4, fixed_abs, tag = 'smem constant byte address 0x4 - core index']
  #allocation1 [shape = 'u32[144,128]{1,0:T(1,128)}', space=vmem, size = 0x12000, scoped, tag = 'internal scratch']
  %s0 = inlined_call_operand.vmem [shape: f32[32,64], index: 0, kind: input, shape index: {}]
  %s1 = inlined_call_operand.vmem [shape: bf16[64,64], index: 1, kind: input, shape index: {}]
  %s2 = inlined_call_operand.vmem [shape: f32[1,64], index: 2, kind: input, shape index: {}]
  %s3 = inlined_call_operand.vmem [shape: bf16[32,64], index: 3, kind: output, shape index: {}]
  %s4 = sld [smem:[#allocation0]]
  $region22: #{squeezeformer_block.8} parent=0
    _
  %s6 = ssub.s32 1, %s4
  %s7 = scalar_select 0, %s6, %s4
  // Predicated region
  $region2: #{squeezeformer_block.8} parent=0 // pred_check
    _
  $region3: #{squeezeformer_block.8} parent=0 // pred_check_branch
    %9 = sbr.rel (0) target = $region5
  $region4: #{squeezeformer_block.8} parent=0 // pred_region
    _
  $region5: #{squeezeformer_block.8} parent=0 // pred_fallthru
    _
  // Predicated region
  $region6: #{squeezeformer_block.8} parent=0 // pred_check
    _
  $region7: #{squeezeformer_block.8} parent=0 // pred_check_branch
    %11 = sbr.rel (0) target = $region9
  $region8: #{squeezeformer_block.8} parent=0 // pred_region
    _
  $region9: #{squeezeformer_block.8} parent=0 // pred_fallthru
    _
  // Predicated region
  $region10: #{squeezeformer_block.8} parent=0 // pred_check
    _
  $region11: #{squeezeformer_block.8} parent=0 // pred_check_branch
    %13 = sbr.rel (0) target = $region13
  $region12: #{squeezeformer_block.8} parent=0 // pred_region
    _
  $region13: #{squeezeformer_block.8} parent=0 // pred_fallthru
    _
  %v15 = vld [vmem:[%s0] sm:$0xff]
  %v16 = vld [vmem:[%s0 + $0x8] sm:$0xff]
  %v17 = vld [vmem:[%s0 + $0x10] sm:$0xff]
  %v18 = vld [vmem:[%s0 + $0x18] sm:$0xff]
  %v19 = vpack.c.bf16 %v16, %v15
  %v20 = vpack.c.bf16 %v18, %v17
  %v21 = vld [vmem:[%s1] sm:$0xf]
  %v22 = vld [vmem:[%s1 + $0x4] sm:$0xf]
  %v23 = vld [vmem:[%s1 + $0x8] sm:$0xf]
  %v24 = vld [vmem:[%s1 + $0xc] sm:$0xf]
  %v25 = vld [vmem:[%s1 + $0x10] sm:$0xf]
  %v26 = vld [vmem:[%s1 + $0x14] sm:$0xf]
  %v27 = vld [vmem:[%s1 + $0x18] sm:$0xf]
  %v28 = vld [vmem:[%s1 + $0x1c] sm:$0xf]
  %v29 = vld [vmem:[%s2] sm:$0x1]
  %v31 = vlaneseq
  %v32 = vshrl.u32 %v31, 7
  %v33 = vsub.s32 0, %v32
  %v34 = vrot.slane %v29, %v33
  %v44 = vunpack.c.l.b16 %v21
  %v45 = vunpack.c.l.b16 %v22
  %v46 = vunpack.c.l.b16 %v23
  %v47 = vunpack.c.l.b16 %v24
  %v48 = vunpack.c.l.b16 %v25
  %v49 = vunpack.c.l.b16 %v26
  %v50 = vunpack.c.l.b16 %v27
  %v51 = vunpack.c.l.b16 %v28
  %v52 = vpack.c.b16 %v45, %v44
  %v53 = vpack.c.b16 %v47, %v46
  %v54 = vpack.c.b16 %v49, %v48
  %v55 = vpack.c.b16 %v51, %v50
  %vm60 = vcmask 523264
  %v62 = vsel %vm60, %v19, 0
  %v65 = vsel %vm60, %v20, 0
  %67 = vmatprep.subr.bf16.mxu0 0
  %68 = vmatpush1.bf16.msra.mxu0 %v52
  %69 = vmatprep.subr.bf16.mxu0 0
  %70 = vmatpush1.bf16.msra.mxu0 %v53
  %71 = vmatprep.subr.bf16.mxu0 0
  %72 = vmatpush1.bf16.msra.mxu0 %v54
  %73 = vmatprep.subr.bf16.mxu0 0
  %74 = vmatpush1.bf16.msra.mxu0 %v55
  %75 = vmatprep.subr.bf16.mxu0 0
  %76 = vmatpush1.bf16.msra.mxu0 0
  %77 = vmatprep.subr.bf16.mxu0 0
  %78 = vmatpush1.bf16.msra.mxu0 0
  %79 = vmatprep.subr.bf16.mxu0 0
  %80 = vmatpush1.bf16.msra.mxu0 0
  %81 = vmatprep.subr.bf16.mxu0 0
  %82 = vmatpush1.bf16.msra.mxu0 0
  %83 = vmatprep.subr.bf16.mxu0 0
  %84 = vmatpush1.bf16.msra.mxu0 0
  %85 = vmatprep.subr.bf16.mxu0 0
  %86 = vmatpush1.bf16.msra.mxu0 0
  %87 = vmatprep.subr.bf16.mxu0 0
  %88 = vmatpush1.bf16.msra.mxu0 0
  %89 = vmatprep.subr.bf16.mxu0 0
  %90 = vmatpush1.bf16.msra.mxu0 0
  %91 = vmatprep.subr.bf16.mxu0 0
  %92 = vmatpush1.bf16.msra.mxu0 0
  %93 = vmatprep.subr.bf16.mxu0 0
  %94 = vmatpush1.bf16.msra.mxu0 0
  %95 = vmatprep.subr.bf16.mxu0 0
  %96 = vmatpush1.bf16.msra.mxu0 0
  %97 = vmatprep.subr.bf16.mxu0 0
  %98 = vmatpush1.bf16.msra.mxu0 0
  %99 = vmatprep.mubr.bf16.mxu0 0
  %100 = vmatmul.mubr.bf16.gmra.mrb[0].mxu0 %v62
  %v101 = vpop.f32.mrb[0].mxu0
  %v102 = vadd.f32 %v34, %v101
  %v103 = vpop.f32.mrb[0].mxu0
  %v104 = vpop.f32.mrb[0].mxu0
  %v105 = vadd.f32 %v34, %v104
  %v106 = vpop.f32.mrb[0].mxu0
  %107 = vmatprep.mubr.bf16.mxu0 0
  %108 = vmatmul.mubr.bf16.gmra.mrb[0].mxu0 %v65
  %v109 = vpop.f32.mrb[0].mxu0
  %v110 = vadd.f32 %v34, %v109
  %v111 = vpop.f32.mrb[0].mxu0
  %v112 = vpop.f32.mrb[0].mxu0
  %v113 = vadd.f32 %v34, %v112
  %v114 = vpop.f32.mrb[0].mxu0
  %115 = vdwg.mxu0
  %v116 = vpack.c.bf16 %v105, %v102
  %v117 = vpack.c.bf16 %v113, %v110
  %v120 = vunpack.c.l.b16 %v116
  %v121 = vunpack.c.h.b16 %v116
  %v122 = vunpack.c.l.b16 %v117
  %v123 = vunpack.c.h.b16 %v117
  %v124 = vpack.c.b16 %v120, %v120
  %v125 = vpack.c.b16 %v121, %v121
  %v126 = vpack.c.b16 %v122, %v122
  %v127 = vpack.c.b16 %v123, %v123
  %vm132 = vcmask 519168
  %133 = vst.msk [vmem:[%s3] sm:$0xf] %vm132, %v124
  %134 = vst.msk [vmem:[%s3 + $0x4] sm:$0xf] %vm132, %v125
  %135 = vst.msk [vmem:[%s3 + $0x8] sm:$0xf] %vm132, %v126
  %136 = vst.msk [vmem:[%s3 + $0xc] sm:$0xf] %vm132, %v127
  // Predicated region
  $region14: #{squeezeformer_block.8} parent=0 // pred_check
    _
  $region15: #{squeezeformer_block.8} parent=0 // pred_check_branch
    %138 = sbr.rel (0) target = $region17
  $region16: #{squeezeformer_block.8} parent=0 // pred_region
    _
  $region17: #{squeezeformer_block.8} parent=0 // pred_fallthru
    _
  // Predicated region
  $region18: #{squeezeformer_block.8} parent=0 // pred_check
    _
  $region19: #{squeezeformer_block.8} parent=0 // pred_check_branch
    %140 = sbr.rel (0) target = $region21
  $region20: #{squeezeformer_block.8} parent=0 // pred_region
    _
  $region21: #{squeezeformer_block.8} parent=0 // pred_fallthru
    _

// kernel: squeezeformer_block.9
$region0: #{squeezeformer_block.9}
  #allocation0 [shape = 'u32[]', space=smem, size = 0x4, offset = 0x4, fixed_abs, tag = 'smem constant byte address 0x4 - core index']
  #allocation1 [shape = 'u32[144,128]{1,0:T(1,128)}', space=vmem, size = 0x12000, scoped, tag = 'internal scratch']
  %s0 = inlined_call_operand.vmem [shape: f32[32,64], index: 0, kind: input, shape index: {}]
  %s1 = inlined_call_operand.vmem [shape: bf16[64,128], index: 1, kind: input, shape index: {}]
  %s2 = inlined_call_operand.vmem [shape: f32[1,128], index: 2, kind: input, shape index: {}]
  %s3 = inlined_call_operand.vmem [shape: bf16[32,128], index: 3, kind: output, shape index: {}]
  %s4 = sld [smem:[#allocation0]]
  $region22: #{squeezeformer_block.9} parent=0
    _
  %s6 = ssub.s32 1, %s4
  %s7 = scalar_select 0, %s6, %s4
  // Predicated region
  $region2: #{squeezeformer_block.9} parent=0 // pred_check
    _
  $region3: #{squeezeformer_block.9} parent=0 // pred_check_branch
    %9 = sbr.rel (0) target = $region5
  $region4: #{squeezeformer_block.9} parent=0 // pred_region
    _
  $region5: #{squeezeformer_block.9} parent=0 // pred_fallthru
    _
  // Predicated region
  $region6: #{squeezeformer_block.9} parent=0 // pred_check
    _
  $region7: #{squeezeformer_block.9} parent=0 // pred_check_branch
    %11 = sbr.rel (0) target = $region9
  $region8: #{squeezeformer_block.9} parent=0 // pred_region
    _
  $region9: #{squeezeformer_block.9} parent=0 // pred_fallthru
    _
  // Predicated region
  $region10: #{squeezeformer_block.9} parent=0 // pred_check
    _
  $region11: #{squeezeformer_block.9} parent=0 // pred_check_branch
    %13 = sbr.rel (0) target = $region13
  $region12: #{squeezeformer_block.9} parent=0 // pred_region
    _
  $region13: #{squeezeformer_block.9} parent=0 // pred_fallthru
    _
  %v15 = vld [vmem:[%s0] sm:$0xff]
  %v16 = vld [vmem:[%s0 + $0x8] sm:$0xff]
  %v17 = vld [vmem:[%s0 + $0x10] sm:$0xff]
  %v18 = vld [vmem:[%s0 + $0x18] sm:$0xff]
  %v19 = vpack.c.bf16 %v16, %v15
  %v20 = vpack.c.bf16 %v18, %v17
  %v21 = vld [vmem:[%s1] sm:$0xf]
  %v22 = vld [vmem:[%s1 + $0x4] sm:$0xf]
  %v23 = vld [vmem:[%s1 + $0x8] sm:$0xf]
  %v24 = vld [vmem:[%s1 + $0xc] sm:$0xf]
  %v25 = vld [vmem:[%s1 + $0x10] sm:$0xf]
  %v26 = vld [vmem:[%s1 + $0x14] sm:$0xf]
  %v27 = vld [vmem:[%s1 + $0x18] sm:$0xf]
  %v28 = vld [vmem:[%s1 + $0x1c] sm:$0xf]
  %v29 = vld [vmem:[%s2] sm:$0x1]
  %v31 = vlaneseq
  %v32 = vshrl.u32 %v31, 7
  %v33 = vsub.s32 0, %v32
  %v34 = vrot.slane %v29, %v33
  %v44 = vunpack.c.l.b16 %v21
  %v45 = vunpack.c.l.b16 %v22
  %v46 = vunpack.c.l.b16 %v23
  %v47 = vunpack.c.l.b16 %v24
  %v48 = vunpack.c.l.b16 %v25
  %v49 = vunpack.c.l.b16 %v26
  %v50 = vunpack.c.l.b16 %v27
  %v51 = vunpack.c.l.b16 %v28
  %v52 = vpack.c.b16 %v45, %v44
  %v53 = vpack.c.b16 %v47, %v46
  %v54 = vpack.c.b16 %v49, %v48
  %v55 = vpack.c.b16 %v51, %v50
  %vm60 = vcmask 523264
  %v62 = vsel %vm60, %v19, 0
  %v65 = vsel %vm60, %v20, 0
  %67 = vmatprep.subr.bf16.mxu0 0
  %68 = vmatpush1.bf16.msra.mxu0 %v52
  %69 = vmatprep.subr.bf16.mxu0 0
  %70 = vmatpush1.bf16.msra.mxu0 %v53
  %71 = vmatprep.subr.bf16.mxu0 0
  %72 = vmatpush1.bf16.msra.mxu0 %v54
  %73 = vmatprep.subr.bf16.mxu0 0
  %74 = vmatpush1.bf16.msra.mxu0 %v55
  %75 = vmatprep.subr.bf16.mxu0 0
  %76 = vmatpush1.bf16.msra.mxu0 0
  %77 = vmatprep.subr.bf16.mxu0 0
  %78 = vmatpush1.bf16.msra.mxu0 0
  %79 = vmatprep.subr.bf16.mxu0 0
  %80 = vmatpush1.bf16.msra.mxu0 0
  %81 = vmatprep.subr.bf16.mxu0 0
  %82 = vmatpush1.bf16.msra.mxu0 0
  %83 = vmatprep.subr.bf16.mxu0 0
  %84 = vmatpush1.bf16.msra.mxu0 0
  %85 = vmatprep.subr.bf16.mxu0 0
  %86 = vmatpush1.bf16.msra.mxu0 0
  %87 = vmatprep.subr.bf16.mxu0 0
  %88 = vmatpush1.bf16.msra.mxu0 0
  %89 = vmatprep.subr.bf16.mxu0 0
  %90 = vmatpush1.bf16.msra.mxu0 0
  %91 = vmatprep.subr.bf16.mxu0 0
  %92 = vmatpush1.bf16.msra.mxu0 0
  %93 = vmatprep.subr.bf16.mxu0 0
  %94 = vmatpush1.bf16.msra.mxu0 0
  %95 = vmatprep.subr.bf16.mxu0 0
  %96 = vmatpush1.bf16.msra.mxu0 0
  %97 = vmatprep.subr.bf16.mxu0 0
  %98 = vmatpush1.bf16.msra.mxu0 0
  %99 = vmatprep.mubr.bf16.mxu0 0
  %100 = vmatmul.mubr.bf16.gmra.mrb[0].mxu0 %v62
  %v101 = vpop.f32.mrb[0].mxu0
  %v102 = vadd.f32 %v34, %v101
  %v103 = vpop.f32.mrb[0].mxu0
  %v104 = vpop.f32.mrb[0].mxu0
  %v105 = vadd.f32 %v34, %v104
  %v106 = vpop.f32.mrb[0].mxu0
  %107 = vmatprep.mubr.bf16.mxu0 0
  %108 = vmatmul.mubr.bf16.gmra.mrb[0].mxu0 %v65
  %v109 = vpop.f32.mrb[0].mxu0
  %v110 = vadd.f32 %v34, %v109
  %v111 = vpop.f32.mrb[0].mxu0
  %v112 = vpop.f32.mrb[0].mxu0
  %v113 = vadd.f32 %v34, %v112
  %v114 = vpop.f32.mrb[0].mxu0
  %115 = vdwg.mxu0
  %v116 = vpack.c.bf16 %v105, %v102
  %v117 = vpack.c.bf16 %v113, %v110
  %v120 = vunpack.c.l.b16 %v116
  %v121 = vunpack.c.h.b16 %v116
  %v122 = vunpack.c.l.b16 %v117
  %v123 = vunpack.c.h.b16 %v117
  %v124 = vpack.c.b16 %v120, %v120
  %v125 = vpack.c.b16 %v121, %v121
  %v126 = vpack.c.b16 %v122, %v122
  %v127 = vpack.c.b16 %v123, %v123
  %132 = vst [vmem:[%s3] sm:$0xf] %v124
  %133 = vst [vmem:[%s3 + $0x4] sm:$0xf] %v125
  %134 = vst [vmem:[%s3 + $0x8] sm:$0xf] %v126
  %135 = vst [vmem:[%s3 + $0xc] sm:$0xf] %v127
  // Predicated region
  $region14: #{squeezeformer_block.9} parent=0 // pred_check
    _
  $region15: #{squeezeformer_block.9} parent=0 // pred_check_branch
    %137 = sbr.rel (0) target = $region17
  $region16: #{squeezeformer_block.9} parent=0 // pred_region
    _
  $region17: #{squeezeformer_block.9} parent=0 // pred_fallthru
    _
  // Predicated region
  $region18: #{squeezeformer_block.9} parent=0 // pred_check
    _
  $region19: #{squeezeformer_block.9} parent=0 // pred_check_branch
    %139 = sbr.rel (0) target = $region21
  $region20: #{squeezeformer_block.9} parent=0 // pred_region
    _
  $region21: #{squeezeformer_block.9} parent=0 // pred_fallthru
    _

// kernel: squeezeformer_block.11
$region0: #{squeezeformer_block.11}
  #allocation0 [shape = 'u32[]', space=smem, size = 0x4, offset = 0x4, fixed_abs, tag = 'smem constant byte address 0x4 - core index']
  #allocation1 [shape = 'u32[144,128]{1,0:T(1,128)}', space=vmem, size = 0x12000, scoped, tag = 'internal scratch']
  %s0 = inlined_call_operand.vmem [shape: f32[32,64], index: 0, kind: input, shape index: {}]
  %s1 = inlined_call_operand.vmem [shape: bf16[64,256], index: 1, kind: input, shape index: {}]
  %s2 = inlined_call_operand.vmem [shape: f32[1,256], index: 2, kind: input, shape index: {}]
  %s3 = inlined_call_operand.vmem [shape: bf16[32,256], index: 3, kind: output, shape index: {}]
  %s4 = sld [smem:[#allocation0]]
  $region22: #{squeezeformer_block.11} parent=0
    _
  %s6 = ssub.s32 1, %s4
  %s7 = scalar_select 0, %s6, %s4
  // Predicated region
  $region2: #{squeezeformer_block.11} parent=0 // pred_check
    _
  $region3: #{squeezeformer_block.11} parent=0 // pred_check_branch
    %9 = sbr.rel (0) target = $region5
  $region4: #{squeezeformer_block.11} parent=0 // pred_region
    _
  $region5: #{squeezeformer_block.11} parent=0 // pred_fallthru
    _
  // Predicated region
  $region6: #{squeezeformer_block.11} parent=0 // pred_check
    _
  $region7: #{squeezeformer_block.11} parent=0 // pred_check_branch
    %11 = sbr.rel (0) target = $region9
  $region8: #{squeezeformer_block.11} parent=0 // pred_region
    _
  $region9: #{squeezeformer_block.11} parent=0 // pred_fallthru
    _
  // Predicated region
  $region10: #{squeezeformer_block.11} parent=0 // pred_check
    _
  $region11: #{squeezeformer_block.11} parent=0 // pred_check_branch
    %13 = sbr.rel (0) target = $region13
  $region12: #{squeezeformer_block.11} parent=0 // pred_region
    _
  $region13: #{squeezeformer_block.11} parent=0 // pred_fallthru
    _
  %v15 = vld [vmem:[%s0] sm:$0xff]
  %v16 = vld [vmem:[%s0 + $0x8] sm:$0xff]
  %v17 = vld [vmem:[%s0 + $0x10] sm:$0xff]
  %v18 = vld [vmem:[%s0 + $0x18] sm:$0xff]
  %v19 = vpack.c.bf16 %v16, %v15
  %v20 = vpack.c.bf16 %v18, %v17
  %v21 = vld [vmem:[%s1] sm:$0xff]
  %v22 = vld [vmem:[%s1 + $0x8] sm:$0xff]
  %v23 = vld [vmem:[%s1 + $0x10] sm:$0xff]
  %v24 = vld [vmem:[%s1 + $0x18] sm:$0xff]
  %v25 = vld [vmem:[%s1 + $0x20] sm:$0xff]
  %v26 = vld [vmem:[%s1 + $0x28] sm:$0xff]
  %v27 = vld [vmem:[%s1 + $0x30] sm:$0xff]
  %v28 = vld [vmem:[%s1 + $0x38] sm:$0xff]
  %v29 = vld [vmem:[%s2] sm:$0x3]
  %v31 = vlaneseq
  %v32 = vshrl.u32 %v31, 7
  %v33 = vsub.s32 0, %v32
  %v34 = vrot.slane %v29, %v33
  %v35 = vlaneseq
  %v36 = vshrl.u32 %v35, 7
  %v37 = vsub.s32 1, %v36
  %v38 = vrot.slane %v29, %v37
  %v49 = vunpack.c.l.b16 %v21
  %v50 = vunpack.c.h.b16 %v21
  %v51 = vunpack.c.l.b16 %v22
  %v52 = vunpack.c.h.b16 %v22
  %v53 = vunpack.c.l.b16 %v23
  %v54 = vunpack.c.h.b16 %v23
  %v55 = vunpack.c.l.b16 %v24
  %v56 = vunpack.c.h.b16 %v24
  %v57 = vunpack.c.l.b16 %v25
  %v58 = vunpack.c.h.b16 %v25
  %v59 = vunpack.c.l.b16 %v26
  %v60 = vunpack.c.h.b16 %v26
  %v61 = vunpack.c.l.b16 %v27
  %v62 = vunpack.c.h.b16 %v27
  %v63 = vunpack.c.l.b16 %v28
  %v64 = vunpack.c.h.b16 %v28
  %v65 = vpack.c.b16 %v51, %v49
  %v66 = vpack.c.b16 %v52, %v50
  %v67 = vpack.c.b16 %v55, %v53
  %v68 = vpack.c.b16 %v56, %v54
  %v69 = vpack.c.b16 %v59, %v57
  %v70 = vpack.c.b16 %v60, %v58
  %v71 = vpack.c.b16 %v63, %v61
  %v72 = vpack.c.b16 %v64, %v62
  %vm81 = vcmask 523264
  %v83 = vsel %vm81, %v19, 0
  %v86 = vsel %vm81, %v20, 0
  %88 = vmatprep.subr.bf16.mxu0 %v66
  %89 = vmatpush1.bf16.msra.mxu0 %v65
  %90 = vmatprep.subr.bf16.mxu0 %v68
  %91 = vmatpush1.bf16.msra.mxu0 %v67
  %92 = vmatprep.subr.bf16.mxu0 %v70
  %93 = vmatpush1.bf16.msra.mxu0 %v69
  %94 = vmatprep.subr.bf16.mxu0 %v72
  %95 = vmatpush1.bf16.msra.mxu0 %v71
  %96 = vmatprep.subr.bf16.mxu0 0
  %97 = vmatpush1.bf16.msra.mxu0 0
  %98 = vmatprep.subr.bf16.mxu0 0
  %99 = vmatpush1.bf16.msra.mxu0 0
  %100 = vmatprep.subr.bf16.mxu0 0
  %101 = vmatpush1.bf16.msra.mxu0 0
  %102 = vmatprep.subr.bf16.mxu0 0
  %103 = vmatpush1.bf16.msra.mxu0 0
  %104 = vmatprep.subr.bf16.mxu0 0
  %105 = vmatpush1.bf16.msra.mxu0 0
  %106 = vmatprep.subr.bf16.mxu0 0
  %107 = vmatpush1.bf16.msra.mxu0 0
  %108 = vmatprep.subr.bf16.mxu0 0
  %109 = vmatpush1.bf16.msra.mxu0 0
  %110 = vmatprep.subr.bf16.mxu0 0
  %111 = vmatpush1.bf16.msra.mxu0 0
  %112 = vmatprep.subr.bf16.mxu0 0
  %113 = vmatpush1.bf16.msra.mxu0 0
  %114 = vmatprep.subr.bf16.mxu0 0
  %115 = vmatpush1.bf16.msra.mxu0 0
  %116 = vmatprep.subr.bf16.mxu0 0
  %117 = vmatpush1.bf16.msra.mxu0 0
  %118 = vmatprep.subr.bf16.mxu0 0
  %119 = vmatpush1.bf16.msra.mxu0 0
  %120 = vmatprep.mubr.bf16.mxu0 0
  %121 = vmatmul.mubr.bf16.gmra.mrb[0].mxu0 %v83
  %v122 = vpop.f32.mrb[0].mxu0
  %v123 = vadd.f32 %v34, %v122
  %v124 = vpop.f32.mrb[0].mxu0
  %v125 = vadd.f32 %v38, %v124
  %v126 = vpop.f32.mrb[0].mxu0
  %v127 = vadd.f32 %v34, %v126
  %v128 = vpop.f32.mrb[0].mxu0
  %v129 = vadd.f32 %v38, %v128
  %130 = vmatprep.mubr.bf16.mxu0 0
  %131 = vmatmul.mubr.bf16.gmra.mrb[0].mxu0 %v86
  %v132 = vpop.f32.mrb[0].mxu0
  %v133 = vadd.f32 %v34, %v132
  %v134 = vpop.f32.mrb[0].mxu0
  %v135 = vadd.f32 %v38, %v134
  %v136 = vpop.f32.mrb[0].mxu0
  %v137 = vadd.f32 %v34, %v136
  %v138 = vpop.f32.mrb[0].mxu0
  %v139 = vadd.f32 %v38, %v138
  %140 = vdwg.mxu0
  %v141 = vxor.u32 %v123, 2147483648
  %v142 = vxor.u32 %v125, 2147483648
  %v143 = vxor.u32 %v127, 2147483648
  %v144 = vxor.u32 %v129, 2147483648
  %v145 = vxor.u32 %v133, 2147483648
  %v146 = vxor.u32 %v135, 2147483648
  %v147 = vxor.u32 %v137, 2147483648
  %v148 = vxor.u32 %v139, 2147483648
  %v149 = vmul.f32 %v141, 1.442695
  %v150 = vpow.pop %v149
  %v151 = vmul.f32 %v142, 1.442695
  %v152 = vpow.pop %v151
  %v153 = vmul.f32 %v143, 1.442695
  %v154 = vpow.pop %v153
  %v155 = vmul.f32 %v144, 1.442695
  %v156 = vpow.pop %v155
  %v157 = vmul.f32 %v145, 1.442695
  %v158 = vpow.pop %v157
  %v159 = vmul.f32 %v146, 1.442695
  %v160 = vpow.pop %v159
  %v161 = vmul.f32 %v147, 1.442695
  %v162 = vpow.pop %v161
  %v163 = vmul.f32 %v148, 1.442695
  %v164 = vpow.pop %v163
  %v165 = vadd.f32 %v150, 1.0
  %v166 = vadd.f32 %v152, 1.0
  %v167 = vadd.f32 %v154, 1.0
  %v168 = vadd.f32 %v156, 1.0
  %v169 = vadd.f32 %v158, 1.0
  %v170 = vadd.f32 %v160, 1.0
  %v171 = vadd.f32 %v162, 1.0
  %v172 = vadd.f32 %v164, 1.0
  %v173 = vrcp.pop %v165
  %v174 = vmul.f32 1.0, %v173
  %v175 = vrcp.pop %v166
  %v176 = vmul.f32 1.0, %v175
  %v177 = vrcp.pop %v167
  %v178 = vmul.f32 1.0, %v177
  %v179 = vrcp.pop %v168
  %v180 = vmul.f32 1.0, %v179
  %v181 = vrcp.pop %v169
  %v182 = vmul.f32 1.0, %v181
  %v183 = vrcp.pop %v170
  %v184 = vmul.f32 1.0, %v183
  %v185 = vrcp.pop %v171
  %v186 = vmul.f32 1.0, %v185
  %v187 = vrcp.pop %v172
  %v188 = vmul.f32 1.0, %v187
  %v189 = vmul.f32 %v123, %v174
  %v190 = vmul.f32 %v125, %v176
  %v191 = vmul.f32 %v127, %v178
  %v192 = vmul.f32 %v129, %v180
  %v193 = vmul.f32 %v133, %v182
  %v194 = vmul.f32 %v135, %v184
  %v195 = vmul.f32 %v137, %v186
  %v196 = vmul.f32 %v139, %v188
  %v197 = vpack.c.bf16 %v191, %v189
  %v198 = vpack.c.bf16 %v192, %v190
  %v199 = vpack.c.bf16 %v195, %v193
  %v200 = vpack.c.bf16 %v196, %v194
  %v205 = vunpack.c.l.b16 %v197
  %v206 = vunpack.c.l.b16 %v198
  %v207 = vunpack.c.h.b16 %v197
  %v208 = vunpack.c.h.b16 %v198
  %v209 = vunpack.c.l.b16 %v199
  %v210 = vunpack.c.l.b16 %v200
  %v211 = vunpack.c.h.b16 %v199
  %v212 = vunpack.c.h.b16 %v200
  %v213 = vpack.c.b16 %v206, %v205
  %v214 = vpack.c.b16 %v208, %v207
  %v215 = vpack.c.b16 %v210, %v209
  %v216 = vpack.c.b16 %v212, %v211
  %221 = vst [vmem:[%s3] sm:$0xff] %v213
  %222 = vst [vmem:[%s3 + $0x8] sm:$0xff] %v214
  %223 = vst [vmem:[%s3 + $0x10] sm:$0xff] %v215
  %224 = vst [vmem:[%s3 + $0x18] sm:$0xff] %v216
  // Predicated region
  $region14: #{squeezeformer_block.11} parent=0 // pred_check
    _
  $region15: #{squeezeformer_block.11} parent=0 // pred_check_branch
    %226 = sbr.rel (0) target = $region17
  $region16: #{squeezeformer_block.11} parent=0 // pred_region
    _
  $region17: #{squeezeformer_block.11} parent=0 // pred_fallthru
    _
  // Predicated region
  $region18: #{squeezeformer_block.11} parent=0 // pred_check
    _
  $region19: #{squeezeformer_block.11} parent=0 // pred_check_branch
    %228 = sbr.rel (0) target = $region21
  $region20: #{squeezeformer_block.11} parent=0 // pred_region
    _
  $region21: #{squeezeformer_block.11} parent=0 // pred_fallthru
    _

// kernel: squeezeformer_block.10
$region0: #{squeezeformer_block.10}
  #allocation0 [shape = 'u32[]', space=smem, size = 0x4, offset = 0x4, fixed_abs, tag = 'smem constant byte address 0x4 - core index']
  #allocation1 [shape = 'u32[144,128]{1,0:T(1,128)}', space=vmem, size = 0x12000, scoped, tag = 'internal scratch']
  %s0 = inlined_call_operand.vmem [shape: bf16[2,16,64], index: 0, kind: input, shape index: {}]
  %s1 = inlined_call_operand.vmem [shape: bf16[2,16,128], index: 1, kind: input, shape index: {}]
  %s2 = inlined_call_operand.vmem [shape: f32[2,1,16], index: 2, kind: input, shape index: {}]
  %s3 = inlined_call_operand.vmem [shape: f32[2,16,64], index: 3, kind: input, shape index: {}]
  %s4 = inlined_call_operand.vmem [shape: bf16[64,64], index: 4, kind: input, shape index: {}]
  %s5 = inlined_call_operand.vmem [shape: f32[1,64], index: 5, kind: input, shape index: {}]
  %s6 = inlined_call_operand.vmem [shape: f32[1,64], index: 6, kind: input, shape index: {}]
  %s7 = inlined_call_operand.vmem [shape: f32[1,64], index: 7, kind: input, shape index: {}]
  %s8 = inlined_call_operand.vmem [shape: f32[2,16,64], index: 8, kind: output, shape index: {}]
  %s9 = sld [smem:[#allocation0]]
  $region65: #{squeezeformer_block.10} parent=0
    _
  %s11 = ssub.s32 1, %s9
  %s12 = scalar_select 0, %s11, %s9
  loop: start=0, step=1, limit=4
  $region2: #{squeezeformer_block.10} parent=0 // loop_pre_header
    _
  $region3: #{squeezeformer_block.10} parent=0 // loop_header
    %s14 = sphi 0, %s18
    %p15 = scmp.ge.s32.totalorder %s14, 4
    %s21 = sphi 0, %s33
    %s22 = sphi 0, %s29
    %s23 = sphi 0, %s21
    %s24 = sphi 0, %s22
    %s25 = sphi 0, %s23
    %s26 = sphi 0, %s24
    %s38 = sphi 0, %s40
    %s41 = sphi 0, %s38
    %s42 = sphi 0, %s41
    %s58 = sphi 0, %s42
    %s64 = sphi 0, %s66
    %s67 = sphi 0, %s64
    %s68 = sphi 0, %s67
    %s84 = sphi 0, %s68
    %s90 = sphi 0, %s92
    %s93 = sphi 0, %s90
    %s94 = sphi 0, %s93
    %s110 = sphi 0, %s94
    %s118 = sphi 0, %s120
    %s121 = sphi 0, %s118
    %s122 = sphi 0, %s121
    %s138 = sphi 0, %s122
    %s142 = sphi 0, %s142
    %s144 = sphi 0, %s142
    %s145 = sphi 0, %s144
    %s159 = sphi 0, %s145
    %s163 = sphi 0, %s163
    %s165 = sphi 0, %s163
    %s166 = sphi 0, %s165
    %s180 = sphi 0, %s166
    %s184 = sphi 0, %s184
    %s186 = sphi 0, %s184
    %s187 = sphi 0, %s186
    %s201 = sphi 0, %s187
    %s205 = sphi 0, %s205
    %s207 = sphi 0, %s205
    %s208 = sphi 0, %s207
    %s222 = sphi 0, %s208
    %s230 = sphi 0, %s232
    %s233 = sphi 0, %s230
    %s234 = sphi 0, %s233
    %s250 = sphi 0, %s234
  $region4: #{squeezeformer_block.10} parent=0 // loop_header_branch
    %17 = sbr.rel (%p15) target = $region8
  $region5: #{squeezeformer_block.10} parent=0 // loop_body
    %s19 = ssub.s32 %s14, 1
    %s20 = ssub.s32 %s14, 2
    %s27 = sadd.s32 1, %s22
    %p28 = scmp.ge.s32.totalorder %s27, 1
    %s29 = scalar_select %p28, 0, %s27
    %s30 = sadd.s32 1, %s21
    %s31 = scalar_select %p28, %s30, %s21
    %p32 = scmp.ge.s32.totalorder %s31, 2
    %s33 = scalar_select %p32, 0, %s31
    %s34 = ssub.s32 %s21, %s33
    %s35 = ssub.s32 %s22, %s29
    %s36 = sor.u32 %s34, %s35
    %p37 = scmp.eq.s32.totalorder %s36, 0
    %s39 = sadd.s32 %s38, 1
    %s40 = scalar_select %p37, %s38, %s39
    %p43 = pneg %p37
    %p44 = scmp.eq.s32.totalorder %s14, 1
    %p45 = por %p43, %p44
    %p46 = scmp.ne.s32.totalorder %s38, %s41
    %p47 = scmp.eq.s32.totalorder %s14, 0
    %p48 = por %p46, %p47
    %p49 = scmp.ne.s32.totalorder %s38, %s41
    %p50 = scmp.eq.s32.totalorder %s19, 1
    %p51 = por %p49, %p50
    %p52 = scmp.ne.s32.totalorder %s41, %s42
    %p53 = scmp.eq.s32.totalorder %s19, 0
    %p54 = por %p52, %p53
    %p55 = scmp.ne.s32.totalorder %s41, %s42
    %p56 = scmp.eq.s32.totalorder %s20, 1
    %p57 = por %p55, %p56
    %p59 = scmp.ne.s32.totalorder %s42, %s58
    %p60 = scmp.eq.s32.totalorder %s20, 0
    %p61 = por %p59, %p60
    %s62 = ssub.s32 %s21, %s33
    %p63 = scmp.eq.s32.totalorder %s62, 0
    %s65 = sadd.s32 %s64, 1
    %s66 = scalar_select %p63, %s64, %s65
    %p69 = pneg %p63
    %p70 = scmp.eq.s32.totalorder %s14, 1
    %p71 = por %p69, %p70
    %p72 = scmp.ne.s32.totalorder %s64, %s67
    %p73 = scmp.eq.s32.totalorder %s14, 0
    %p74 = por %p72, %p73
    %p75 = scmp.ne.s32.totalorder %s64, %s67
    %p76 = scmp.eq.s32.totalorder %s19, 1
    %p77 = por %p75, %p76
    %p78 = scmp.ne.s32.totalorder %s67, %s68
    %p79 = scmp.eq.s32.totalorder %s19, 0
    %p80 = por %p78, %p79
    %p81 = scmp.ne.s32.totalorder %s67, %s68
    %p82 = scmp.eq.s32.totalorder %s20, 1
    %p83 = por %p81, %p82
    %p85 = scmp.ne.s32.totalorder %s68, %s84
    %p86 = scmp.eq.s32.totalorder %s20, 0
    %p87 = por %p85, %p86
    %s88 = ssub.s32 %s21, %s33
    %p89 = scmp.eq.s32.totalorder %s88, 0
    %s91 = sadd.s32 %s90, 1
    %s92 = scalar_select %p89, %s90, %s91
    %p95 = pneg %p89
    %p96 = scmp.eq.s32.totalorder %s14, 1
    %p97 = por %p95, %p96
    %p98 = scmp.ne.s32.totalorder %s90, %s93
    %p99 = scmp.eq.s32.totalorder %s14, 0
    %p100 = por %p98, %p99
    %p101 = scmp.ne.s32.totalorder %s90, %s93
    %p102 = scmp.eq.s32.totalorder %s19, 1
    %p103 = por %p101, %p102
    %p104 = scmp.ne.s32.totalorder %s93, %s94
    %p105 = scmp.eq.s32.totalorder %s19, 0
    %p106 = por %p104, %p105
    %p107 = scmp.ne.s32.totalorder %s93, %s94
    %p108 = scmp.eq.s32.totalorder %s20, 1
    %p109 = por %p107, %p108
    %p111 = scmp.ne.s32.totalorder %s94, %s110
    %p112 = scmp.eq.s32.totalorder %s20, 0
    %p113 = por %p111, %p112
    %s114 = ssub.s32 %s21, %s33
    %s115 = ssub.s32 %s22, %s29
    %s116 = sor.u32 %s114, %s115
    %p117 = scmp.eq.s32.totalorder %s116, 0
    %s119 = sadd.s32 %s118, 1
    %s120 = scalar_select %p117, %s118, %s119
    %p123 = pneg %p117
    %p124 = scmp.eq.s32.totalorder %s14, 1
    %p125 = por %p123, %p124
    %p126 = scmp.ne.s32.totalorder %s118, %s121
    %p127 = scmp.eq.s32.totalorder %s14, 0
    %p128 = por %p126, %p127
    %p129 = scmp.ne.s32.totalorder %s118, %s121
    %p130 = scmp.eq.s32.totalorder %s19, 1
    %p131 = por %p129, %p130
    %p132 = scmp.ne.s32.totalorder %s121, %s122
    %p133 = scmp.eq.s32.totalorder %s19, 0
    %p134 = por %p132, %p133
    %p135 = scmp.ne.s32.totalorder %s121, %s122
    %p136 = scmp.eq.s32.totalorder %s20, 1
    %p137 = por %p135, %p136
    %p139 = scmp.ne.s32.totalorder %s122, %s138
    %p140 = scmp.eq.s32.totalorder %s20, 0
    %p141 = por %p139, %p140
    %s143 = sadd.s32 %s142, 1
    %p146 = scmp.eq.s32.totalorder %s14, 1
    %p147 = scmp.ne.s32.totalorder %s142, %s144
    %p148 = scmp.eq.s32.totalorder %s14, 0
    %p149 = por %p147, %p148
    %p150 = scmp.ne.s32.totalorder %s142, %s144
    %p151 = scmp.eq.s32.totalorder %s19, 1
    %p152 = por %p150, %p151
    %p153 = scmp.ne.s32.totalorder %s144, %s145
    %p154 = scmp.eq.s32.totalorder %s19, 0
    %p155 = por %p153, %p154
    %p156 = scmp.ne.s32.totalorder %s144, %s145
    %p157 = scmp.eq.s32.totalorder %s20, 1
    %p158 = por %p156, %p157
    %p160 = scmp.ne.s32.totalorder %s145, %s159
    %p161 = scmp.eq.s32.totalorder %s20, 0
    %p162 = por %p160, %p161
    %s164 = sadd.s32 %s163, 1
    %p167 = scmp.eq.s32.totalorder %s14, 1
    %p168 = scmp.ne.s32.totalorder %s163, %s165
    %p169 = scmp.eq.s32.totalorder %s14, 0
    %p170 = por %p168, %p169
    %p171 = scmp.ne.s32.totalorder %s163, %s165
    %p172 = scmp.eq.s32.totalorder %s19, 1
    %p173 = por %p171, %p172
    %p174 = scmp.ne.s32.totalorder %s165, %s166
    %p175 = scmp.eq.s32.totalorder %s19, 0
    %p176 = por %p174, %p175
    %p177 = scmp.ne.s32.totalorder %s165, %s166
    %p178 = scmp.eq.s32.totalorder %s20, 1
    %p179 = por %p177, %p178
    %p181 = scmp.ne.s32.totalorder %s166, %s180
    %p182 = scmp.eq.s32.totalorder %s20, 0
    %p183 = por %p181, %p182
    %s185 = sadd.s32 %s184, 1
    %p188 = scmp.eq.s32.totalorder %s14, 1
    %p189 = scmp.ne.s32.totalorder %s184, %s186
    %p190 = scmp.eq.s32.totalorder %s14, 0
    %p191 = por %p189, %p190
    %p192 = scmp.ne.s32.totalorder %s184, %s186
    %p193 = scmp.eq.s32.totalorder %s19, 1
    %p194 = por %p192, %p193
    %p195 = scmp.ne.s32.totalorder %s186, %s187
    %p196 = scmp.eq.s32.totalorder %s19, 0
    %p197 = por %p195, %p196
    %p198 = scmp.ne.s32.totalorder %s186, %s187
    %p199 = scmp.eq.s32.totalorder %s20, 1
    %p200 = por %p198, %p199
    %p202 = scmp.ne.s32.totalorder %s187, %s201
    %p203 = scmp.eq.s32.totalorder %s20, 0
    %p204 = por %p202, %p203
    %s206 = sadd.s32 %s205, 1
    %p209 = scmp.eq.s32.totalorder %s14, 1
    %p210 = scmp.ne.s32.totalorder %s205, %s207
    %p211 = scmp.eq.s32.totalorder %s14, 0
    %p212 = por %p210, %p211
    %p213 = scmp.ne.s32.totalorder %s205, %s207
    %p214 = scmp.eq.s32.totalorder %s19, 1
    %p215 = por %p213, %p214
    %p216 = scmp.ne.s32.totalorder %s207, %s208
    %p217 = scmp.eq.s32.totalorder %s19, 0
    %p218 = por %p216, %p217
    %p219 = scmp.ne.s32.totalorder %s207, %s208
    %p220 = scmp.eq.s32.totalorder %s20, 1
    %p221 = por %p219, %p220
    %p223 = scmp.ne.s32.totalorder %s208, %s222
    %p224 = scmp.eq.s32.totalorder %s20, 0
    %p225 = por %p223, %p224
    %s226 = ssub.s32 %s21, %s33
    %s227 = ssub.s32 %s22, %s29
    %s228 = sor.u32 %s226, %s227
    %p229 = scmp.eq.s32.totalorder %s228, 0
    %s231 = sadd.s32 %s230, 1
    %s232 = scalar_select %p229, %s230, %s231
    %p235 = pneg %p229
    %p236 = scmp.eq.s32.totalorder %s14, 1
    %p237 = por %p235, %p236
    %p238 = scmp.ne.s32.totalorder %s230, %s233
    %p239 = scmp.eq.s32.totalorder %s14, 0
    %p240 = por %p238, %p239
    %p241 = scmp.ne.s32.totalorder %s230, %s233
    %p242 = scmp.eq.s32.totalorder %s19, 1
    %p243 = por %p241, %p242
    %p244 = scmp.ne.s32.totalorder %s233, %s234
    %p245 = scmp.eq.s32.totalorder %s19, 0
    %p246 = por %p244, %p245
    %p247 = scmp.ne.s32.totalorder %s233, %s234
    %p248 = scmp.eq.s32.totalorder %s20, 1
    %p249 = por %p247, %p248
    %p251 = scmp.ne.s32.totalorder %s234, %s250
    %p252 = scmp.eq.s32.totalorder %s20, 0
    %p253 = por %p251, %p252
    %p254 = scmp.le.s32.totalorder 1, %s14
    %p255 = scmp.lt.s32.totalorder %s14, 3
    %p256 = pnand %p254, %p255
    %p257 = pneg %p256
    // Predicated region
    $region9: #{squeezeformer_block.10} parent=5 // pred_check
      _
    $region10: #{squeezeformer_block.10} parent=5 // pred_check_branch
      %259 = sbr.rel (%p256) target = $region12
    $region11: #{squeezeformer_block.10} parent=5 // pred_region
      %s260 = ssub.s32 %s14, 1
      // Predicated region
      $region13: #{squeezeformer_block.10} parent=11 // pred_check
        %p261 = pneg %p155
      $region14: #{squeezeformer_block.10} parent=11 // pred_check_branch
        %263 = sbr.rel (%p261) target = $region16
      $region15: #{squeezeformer_block.10} parent=11 // pred_region
        _
      $region16: #{squeezeformer_block.10} parent=11 // pred_fallthru
        _
      // Predicated region
      $region17: #{squeezeformer_block.10} parent=11 // pred_check
        %p264 = pneg %p176
      $region18: #{squeezeformer_block.10} parent=11 // pred_check_branch
        %266 = sbr.rel (%p264) target = $region20
      $region19: #{squeezeformer_block.10} parent=11 // pred_region
        _
      $region20: #{squeezeformer_block.10} parent=11 // pred_fallthru
        _
      // Predicated region
      $region21: #{squeezeformer_block.10} parent=11 // pred_check
        %p267 = pneg %p197
      $region22: #{squeezeformer_block.10} parent=11 // pred_check_branch
        %269 = sbr.rel (%p267) target = $region24
      $region23: #{squeezeformer_block.10} parent=11 // pred_region
        _
      $region24: #{squeezeformer_block.10} parent=11 // pred_fallthru
        _
      // Predicated region
      $region25: #{squeezeformer_block.10} parent=11 // pred_check
        %p270 = pneg %p218
      $region26: #{squeezeformer_block.10} parent=11 // pred_check_branch
        %272 = sbr.rel (%p270) target = $region28
      $region27: #{squeezeformer_block.10} parent=11 // pred_region
        _
      $region28: #{squeezeformer_block.10} parent=11 // pred_fallthru
        _
    $region12: #{squeezeformer_block.10} parent=5 // pred_fallthru
      _
    %p273 = scmp.lt.s32.totalorder %s14, 2
    // Predicated region
    $region29: #{squeezeformer_block.10} parent=5 // pred_check
      %p274 = pneg %p273
    $region30: #{squeezeformer_block.10} parent=5 // pred_check_branch
      %276 = sbr.rel (%p274) target = $region32
    $region31: #{squeezeformer_block.10} parent=5 // pred_region
      // Predicated region
      $region33: #{squeezeformer_block.10} parent=31 // pred_check
        %p277 = pneg %p48
      $region34: #{squeezeformer_block.10} parent=31 // pred_check_branch
        %279 = sbr.rel (%p277) target = $region36
      $region35: #{squeezeformer_block.10} parent=31 // pred_region
        %s280 = smul.u32 2, %s22
        %p281 = scmp.lt.s32.totalorder %s21, 1
        %s282 = scalar_select %p281, %s21, 1
        %p283 = scmp.lt.s32.totalorder %s280, 1
        %s284 = scalar_select %p283, %s280, 1
        %s285 = smul.addr %s282, 2
        %s286 = sadd.s32 %s284, %s285
        %s287 = smul.addr %s286, 4
        %s288 = scalar_lea.vmem %s0, %s287
        %s289 = smul.u32 2, %s22
      $region36: #{squeezeformer_block.10} parent=31 // pred_fallthru
        _
      // Predicated region
      $region37: #{squeezeformer_block.10} parent=31 // pred_check
        %p290 = pneg %p74
      $region38: #{squeezeformer_block.10} parent=31 // pred_check_branch
        %292 = sbr.rel (%p290) target = $region40
      $region39: #{squeezeformer_block.10} parent=31 // pred_region
        %p293 = scmp.lt.s32.totalorder %s21, 1
        %s294 = scalar_select %p293, %s21, 1
        %s295 = smul.addr %s294, 2
        %s296 = smul.addr %s295, 4
        %s297 = scalar_lea.vmem %s1, %s296
      $region40: #{squeezeformer_block.10} parent=31 // pred_fallthru
        _
      // Predicated region
      $region41: #{squeezeformer_block.10} parent=31 // pred_check
        %p298 = pneg %p100
      $region42: #{squeezeformer_block.10} parent=31 // pred_check_branch
        %300 = sbr.rel (%p298) target = $region44
      $region43: #{squeezeformer_block.10} parent=31 // pred_region
        %p301 = scmp.lt.s32.totalorder %s21, 1
        %s302 = scalar_select %p301, %s21, 1
        %s303 = scalar_lea.vmem %s2, %s302
      $region44: #{squeezeformer_block.10} parent=31 // pred_fallthru
        _
      // Predicated region
      $region45: #{squeezeformer_block.10} parent=31 // pred_check
        %p304 = pneg %p128
      $region46: #{squeezeformer_block.10} parent=31 // pred_check_branch
        %306 = sbr.rel (%p304) target = $region48
      $region47: #{squeezeformer_block.10} parent=31 // pred_region
        %s307 = smul.u32 2, %s22
        %p308 = scmp.lt.s32.totalorder %s21, 1
        %s309 = scalar_select %p308, %s21, 1
        %p310 = scmp.lt.s32.totalorder %s307, 1
        %s311 = scalar_select %p310, %s307, 1
        %s312 = smul.addr %s309, 2
        %s313 = sadd.s32 %s311, %s312
        %s314 = smul.addr %s313, 8
        %s315 = scalar_lea.vmem %s3, %s314
        %s316 = smul.u32 2, %s22
      $region48: #{squeezeformer_block.10} parent=31 // pred_fallthru
        _
    $region32: #{squeezeformer_block.10} parent=5 // pred_fallthru
      _
    %p317 = scmp.le.s32.totalorder 1, %s14
    %p318 = scmp.lt.s32.totalorder %s14, 3
    %p319 = pnand %p317, %p318
    %p320 = pneg %p319
    // Predicated region
    $region49: #{squeezeformer_block.10} parent=5 // pred_check
      _
    $region50: #{squeezeformer_block.10} parent=5 // pred_check_branch
      %322 = sbr.rel (%p319) target = $region52
    $region51: #{squeezeformer_block.10} parent=5 // pred_region
      %s323 = ssub.s32 %s14, 1
      %s324 = smul.u32 2, %s24
      %p325 = scmp.lt.s32.totalorder %s23, 1
      %s326 = scalar_select %p325, %s23, 1
      %p327 = scmp.lt.s32.totalorder %s324, 1
      %s328 = scalar_select %p327, %s324, 1
      %s329 = smul.addr %s326, 2
      %s330 = sadd.s32 %s328, %s329
      %s331 = smul.addr %s330, 4
      %s332 = scalar_lea.vmem %s0, %s331
      %p333 = pneg %p54
      %p334 = pneg %p51
      %p335 = scmp.lt.s32.totalorder %s23, 1
      %s336 = scalar_select %p335, %s23, 1
      %s337 = smul.addr %s336, 2
      %s338 = smul.addr %s337, 4
      %s339 = scalar_lea.vmem %s1, %s338
      %p340 = pneg %p80
      %p341 = pneg %p77
      %p342 = scmp.lt.s32.totalorder %s23, 1
      %s343 = scalar_select %p342, %s23, 1
      %s344 = scalar_lea.vmem %s2, %s343
      %p345 = pneg %p106
      %p346 = pneg %p103
      %s347 = smul.u32 2, %s24
      %p348 = scmp.lt.s32.totalorder %s23, 1
      %s349 = scalar_select %p348, %s23, 1
      %p350 = scmp.lt.s32.totalorder %s347, 1
      %s351 = scalar_select %p350, %s347, 1
      %s352 = smul.addr %s349, 2
      %s353 = sadd.s32 %s351, %s352
      %s354 = smul.addr %s353, 8
      %s355 = scalar_lea.vmem %s3, %s354
      %p356 = pneg %p134
      %p357 = pneg %p131
      %p358 = pneg %p155
      %p359 = pneg %p152
      %p360 = pneg %p176
      %p361 = pneg %p173
      %p362 = pneg %p197
      %p363 = pneg %p194
      %p364 = pneg %p218
      %p365 = pneg %p215
      %p366 = pneg %p246
      %p367 = pneg %p243
      %s368 = smul.u32 2, %s24
      %p369 = scmp.lt.s32.totalorder %s23, 1
      %s370 = scalar_select %p369, %s23, 1
      %p371 = scmp.lt.s32.totalorder %s368, 1
      %s372 = scalar_select %p371, %s368, 1
      %s373 = smul.addr %s370, 2
      %s374 = sadd.s32 %s372, %s373
      %s375 = smul.addr %s374, 8
      %s376 = scalar_lea.vmem %s8, %s375
      %s377 = smul.u32 2, %s24
      %p378 = scmp.lt.s32.totalorder %s23, 1
      %s379 = scalar_select %p378, %s23, 1
      %p380 = scmp.lt.s32.totalorder %s377, 1
      %s381 = scalar_select %p380, %s377, 1
      %s382 = smul.addr %s379, 2
      %s383 = sadd.s32 %s381, %s382
      %s384 = smul.addr %s383, 4
      %s385 = scalar_lea.vmem %s0, %s384
      %s386 = smul.u32 2, %s24
      %p387 = scmp.lt.s32.totalorder %s23, 1
      %s388 = scalar_select %p387, %s23, 1
      %s389 = smul.addr %s388, 2
      %s390 = smul.addr %s389, 4
      %s391 = scalar_lea.vmem %s1, %s390
      %p392 = scmp.lt.s32.totalorder %s23, 1
      %s393 = scalar_select %p392, %s23, 1
      %s394 = scalar_lea.vmem %s2, %s393
      %s395 = smul.u32 2, %s24
      %p396 = scmp.lt.s32.totalorder %s23, 1
      %s397 = scalar_select %p396, %s23, 1
      %p398 = scmp.lt.s32.totalorder %s395, 1
      %s399 = scalar_select %p398, %s395, 1
      %s400 = smul.addr %s397, 2
      %s401 = sadd.s32 %s399, %s400
      %s402 = smul.addr %s401, 8
      %s403 = scalar_lea.vmem %s3, %s402
      %s404 = smul.u32 2, %s24
      %s405 = smul.u32 2, %s24
      %p406 = scmp.lt.s32.totalorder %s23, 1
      %s407 = scalar_select %p406, %s23, 1
      %p408 = scmp.lt.s32.totalorder %s405, 1
      %s409 = scalar_select %p408, %s405, 1
      %s410 = smul.addr %s407, 2
      %s411 = sadd.s32 %s409, %s410
      %s412 = smul.addr %s411, 8
      %s413 = scalar_lea.vmem %s8, %s412
      %s414 = smul.u32 2, %s24
      %v416 = vld [vmem:[%s385] sm:$0xf]
      %v417 = vld [vmem:[%s385 + $0x4] sm:$0xf]
      %v418 = vld [vmem:[%s391] sm:$0xf]
      %v419 = vld [vmem:[%s391 + $0x4] sm:$0xf]
      %v420 = vld [vmem:[%s394] sm:$0x1]
      %v422 = vlaneseq
      %v423 = vshrl.u32 %v422, 7
      %v424 = vsub.s32 0, %v423
      %v425 = vrot.slane %v420, %v424
      %v429 = vunpack.c.l.b16 %v416
      %v430 = vunpack.c.l.b16 %v417
      %v431 = vpack.c.b16 %v430, %v429
      %v434 = vunpack.c.l.b16 %v418
      %v435 = vunpack.c.l.b16 %v419
      %v436 = vpack.c.b16 %v435, %v434
      %vm437 = vcmask 130048
      %v439 = vsel %vm437, %v431, 0
      %v442 = vsel %vm437, %v436, 0
      %444 = vmatprep.subr.bf16.mxu0 0
      %445 = vmatpush1.bf16.xpose.msra.mxu0 %v442
      %446 = vmatprep.subr.bf16.mxu0 0
      %447 = vmatpush1.bf16.xpose.msra.mxu0 0
      %448 = vmatprep.subr.bf16.mxu0 0
      %449 = vmatpush1.bf16.xpose.msra.mxu0 0
      %450 = vmatprep.subr.bf16.mxu0 0
      %451 = vmatpush1.bf16.xpose.msra.mxu0 0
      %452 = vmatprep.subr.bf16.mxu0 0
      %453 = vmatpush1.bf16.xpose.msra.mxu0 0
      %454 = vmatprep.subr.bf16.mxu0 0
      %455 = vmatpush1.bf16.xpose.msra.mxu0 0
      %456 = vmatprep.subr.bf16.mxu0 0
      %457 = vmatpush1.bf16.xpose.msra.mxu0 0
      %458 = vmatprep.subr.bf16.mxu0 0
      %459 = vmatpush1.bf16.xpose.msra.mxu0 0
      %460 = vmatprep.subr.bf16.mxu0 0
      %461 = vmatpush1.bf16.xpose.msra.mxu0 0
      %462 = vmatprep.subr.bf16.mxu0 0
      %463 = vmatpush1.bf16.xpose.msra.mxu0 0
      %464 = vmatprep.subr.bf16.mxu0 0
      %465 = vmatpush1.bf16.xpose.msra.mxu0 0
      %466 = vmatprep.subr.bf16.mxu0 0
      %467 = vmatpush1.bf16.xpose.msra.mxu0 0
      %468 = vmatprep.subr.bf16.mxu0 0
      %469 = vmatpush1.bf16.xpose.msra.mxu0 0
      %470 = vmatprep.subr.bf16.mxu0 0
      %471 = vmatpush1.bf16.xpose.msra.mxu0 0
      %472 = vmatprep.subr.bf16.mxu0 0
      %473 = vmatpush1.bf16.xpose.msra.mxu0 0
      %474 = vmatprep.subr.bf16.mxu0 0
      %475 = vmatpush1.bf16.xpose.msra.mxu0 0
      %476 = vmatprep.mubr.bf16.mxu0 0
      %477 = vmatmul.mubr.bf16.gmra.mrb[0].mxu0 %v439
      %v478 = vpop.f32.mrb[0].mxu0
      %v479 = vadd.f32 %v425, %v478
      %v480 = vpop.f32.mrb[0].mxu0
      %v481 = vpop.f32.mrb[0].mxu0
      %v482 = vadd.f32 %v425, %v481
      %v483 = vpop.f32.mrb[0].mxu0
      %484 = vdwg.mxu0
      %v485 = vsel %vm437, %v479, -inf
      %486 = vmax.xlane.f32.xlu0 %v485
      %v487 = vpop.xlane.xlu0 %486
      %v488 = vsel %vm437, %v482, -inf
      %489 = vmax.xlane.f32.xlu0 %v488
      %v490 = vpop.xlane.xlu0 %489
      %v491 = vsub.f32 %v479, %v487
      %v492 = vsub.f32 %v482, %v490
      %v493 = vmul.f32 %v491, 1.442695
      %v494 = vpow.pop %v493
      %v495 = vmul.f32 %v492, 1.442695
      %v496 = vpow.pop %v495
      %v497 = vsel %vm437, %v494, 0.0
      %498 = vadd.xlane.f32.xlu0 %v497
      %v499 = vpop.xlane.xlu0 %498
      %v500 = vsel %vm437, %v496, 0.0
      %501 = vadd.xlane.f32.xlu0 %v500
      %v502 = vpop.xlane.xlu0 %501
      %v503 = vrcp.pop %v499
      %v504 = vrcp.pop %v502
      %v505 = vpack.c.bf16 %v496, %v494
      %506 = vrot.lane.b32.xlu0 %v436, 64
      %v507 = vpop.permute.xlu0 %506
      %v510 = vsel %vm437, %v505, 0
      %512 = vmatprep.subr.bf16.mxu0 0
      %513 = vmatpush1.bf16.msra.mxu0 %v507
      %514 = vmatprep.subr.bf16.mxu0 0
      %515 = vmatpush1.bf16.msra.mxu0 0
      %516 = vmatprep.subr.bf16.mxu0 0
      %517 = vmatpush1.bf16.msra.mxu0 0
      %518 = vmatprep.subr.bf16.mxu0 0
      %519 = vmatpush1.bf16.msra.mxu0 0
      %520 = vmatprep.subr.bf16.mxu0 0
      %521 = vmatpush1.bf16.msra.mxu0 0
      %522 = vmatprep.subr.bf16.mxu0 0
      %523 = vmatpush1.bf16.msra.mxu0 0
      %524 = vmatprep.subr.bf16.mxu0 0
      %525 = vmatpush1.bf16.msra.mxu0 0
      %526 = vmatprep.subr.bf16.mxu0 0
      %527 = vmatpush1.bf16.msra.mxu0 0
      %528 = vmatprep.subr.bf16.mxu0 0
      %529 = vmatpush1.bf16.msra.mxu0 0
      %530 = vmatprep.subr.bf16.mxu0 0
      %531 = vmatpush1.bf16.msra.mxu0 0
      %532 = vmatprep.subr.bf16.mxu0 0
      %533 = vmatpush1.bf16.msra.mxu0 0
      %534 = vmatprep.subr.bf16.mxu0 0
      %535 = vmatpush1.bf16.msra.mxu0 0
      %536 = vmatprep.subr.bf16.mxu0 0
      %537 = vmatpush1.bf16.msra.mxu0 0
      %538 = vmatprep.subr.bf16.mxu0 0
      %539 = vmatpush1.bf16.msra.mxu0 0
      %540 = vmatprep.subr.bf16.mxu0 0
      %541 = vmatpush1.bf16.msra.mxu0 0
      %542 = vmatprep.subr.bf16.mxu0 0
      %543 = vmatpush1.bf16.msra.mxu0 0
      %544 = vmatprep.mubr.bf16.mxu0 0
      %545 = vmatmul.mubr.bf16.gmra.mrb[0].mxu0 %v510
      %v546 = vpop.f32.mrb[0].mxu0
      %v547 = vadd.f32 0.0, %v546
      %v548 = vpop.f32.mrb[0].mxu0
      %v549 = vpop.f32.mrb[0].mxu0
      %v550 = vadd.f32 0.0, %v549
      %v551 = vpop.f32.mrb[0].mxu0
      %552 = vdwg.mxu0
      %v553 = vmul.f32 %v547, %v503
      %v554 = vmul.f32 %v550, %v504
      %v555 = vpack.c.bf16 %v554, %v553
      %v556 = vld [vmem:[%s4] sm:$0xf]
      %v557 = vld [vmem:[%s4 + $0x4] sm:$0xf]
      %558 = vrot.lane.b32.xlu0 %v431, 112
      %v559 = vpop.permute.xlu0 %558
      %560 = vrot.lane.b32.xlu0 %v436, 112
      %v561 = vpop.permute.xlu0 %560
      %v563 = vsel %vm437, %v559, 0
      %v566 = vsel %vm437, %v561, 0
      %568 = vmatprep.subr.bf16.mxu0 0
      %569 = vmatpush1.bf16.xpose.msra.mxu0 %v566
      %570 = vmatprep.subr.bf16.mxu0 0
      %571 = vmatpush1.bf16.xpose.msra.mxu0 0
      %572 = vmatprep.subr.bf16.mxu0 0
      %573 = vmatpush1.bf16.xpose.msra.mxu0 0
      %574 = vmatprep.subr.bf16.mxu0 0
      %575 = vmatpush1.bf16.xpose.msra.mxu0 0
      %576 = vmatprep.subr.bf16.mxu0 0
      %577 = vmatpush1.bf16.xpose.msra.mxu0 0
      %578 = vmatprep.subr.bf16.mxu0 0
      %579 = vmatpush1.bf16.xpose.msra.mxu0 0
      %580 = vmatprep.subr.bf16.mxu0 0
      %581 = vmatpush1.bf16.xpose.msra.mxu0 0
      %582 = vmatprep.subr.bf16.mxu0 0
      %583 = vmatpush1.bf16.xpose.msra.mxu0 0
      %584 = vmatprep.subr.bf16.mxu0 0
      %585 = vmatpush1.bf16.xpose.msra.mxu0 0
      %586 = vmatprep.subr.bf16.mxu0 0
      %587 = vmatpush1.bf16.xpose.msra.mxu0 0
      %588 = vmatprep.subr.bf16.mxu0 0
      %589 = vmatpush1.bf16.xpose.msra.mxu0 0
      %590 = vmatprep.subr.bf16.mxu0 0
      %591 = vmatpush1.bf16.xpose.msra.mxu0 0
      %592 = vmatprep.subr.bf16.mxu0 0
      %593 = vmatpush1.bf16.xpose.msra.mxu0 0
      %594 = vmatprep.subr.bf16.mxu0 0
      %595 = vmatpush1.bf16.xpose.msra.mxu0 0
      %596 = vmatprep.subr.bf16.mxu0 0
      %597 = vmatpush1.bf16.xpose.msra.mxu0 0
      %598 = vmatprep.subr.bf16.mxu0 0
      %599 = vmatpush1.bf16.xpose.msra.mxu0 0
      %600 = vmatprep.mubr.bf16.mxu0 0
      %601 = vmatmul.mubr.bf16.gmra.mrb[0].mxu0 %v563
      %v602 = vpop.f32.mrb[0].mxu0
      %v603 = vadd.f32 %v425, %v602
      %v604 = vpop.f32.mrb[0].mxu0
      %v605 = vpop.f32.mrb[0].mxu0
      %v606 = vadd.f32 %v425, %v605
      %v607 = vpop.f32.mrb[0].mxu0
      %608 = vdwg.mxu0
      %v609 = vsel %vm437, %v603, -inf
      %610 = vmax.xlane.f32.xlu0 %v609
      %v611 = vpop.xlane.xlu0 %610
      %v612 = vsel %vm437, %v606, -inf
      %613 = vmax.xlane.f32.xlu0 %v612
      %v614 = vpop.xlane.xlu0 %613
      %v615 = vsub.f32 %v603, %v611
      %v616 = vsub.f32 %v606, %v614
      %v617 = vmul.f32 %v615, 1.442695
      %v618 = vpow.pop %v617
      %v619 = vmul.f32 %v616, 1.442695
      %v620 = vpow.pop %v619
      %v621 = vsel %vm437, %v618, 0.0
      %622 = vadd.xlane.f32.xlu0 %v621
      %v623 = vpop.xlane.xlu0 %622
      %v624 = vsel %vm437, %v620, 0.0
      %625 = vadd.xlane.f32.xlu0 %v624
      %v626 = vpop.xlane.xlu0 %625
      %v627 = vrcp.pop %v623
      %v628 = vrcp.pop %v626
      %v629 = vpack.c.bf16 %v620, %v618
      %630 = vrot.lane.b32.xlu0 %v436, 48
      %v631 = vpop.permute.xlu0 %630
      %v634 = vsel %vm437, %v629, 0
      %636 = vmatprep.subr.bf16.mxu0 0
      %637 = vmatpush1.bf16.msra.mxu0 %v631
      %638 = vmatprep.subr.bf16.mxu0 0
      %639 = vmatpush1.bf16.msra.mxu0 0
      %640 = vmatprep.subr.bf16.mxu0 0
      %641 = vmatpush1.bf16.msra.mxu0 0
      %642 = vmatprep.subr.bf16.mxu0 0
      %643 = vmatpush1.bf16.msra.mxu0 0
      %644 = vmatprep.subr.bf16.mxu0 0
      %645 = vmatpush1.bf16.msra.mxu0 0
      %646 = vmatprep.subr.bf16.mxu0 0
      %647 = vmatpush1.bf16.msra.mxu0 0
      %648 = vmatprep.subr.bf16.mxu0 0
      %649 = vmatpush1.bf16.msra.mxu0 0
      %650 = vmatprep.subr.bf16.mxu0 0
      %651 = vmatpush1.bf16.msra.mxu0 0
      %652 = vmatprep.subr.bf16.mxu0 0
      %653 = vmatpush1.bf16.msra.mxu0 0
      %654 = vmatprep.subr.bf16.mxu0 0
      %655 = vmatpush1.bf16.msra.mxu0 0
      %656 = vmatprep.subr.bf16.mxu0 0
      %657 = vmatpush1.bf16.msra.mxu0 0
      %658 = vmatprep.subr.bf16.mxu0 0
      %659 = vmatpush1.bf16.msra.mxu0 0
      %660 = vmatprep.subr.bf16.mxu0 0
      %661 = vmatpush1.bf16.msra.mxu0 0
      %662 = vmatprep.subr.bf16.mxu0 0
      %663 = vmatpush1.bf16.msra.mxu0 0
      %664 = vmatprep.subr.bf16.mxu0 0
      %665 = vmatpush1.bf16.msra.mxu0 0
      %666 = vmatprep.subr.bf16.mxu0 0
      %667 = vmatpush1.bf16.msra.mxu0 0
      %668 = vmatprep.mubr.bf16.mxu0 0
      %669 = vmatmul.mubr.bf16.gmra.mrb[0].mxu0 %v634
      %v670 = vpop.f32.mrb[0].mxu0
      %v671 = vadd.f32 0.0, %v670
      %v672 = vpop.f32.mrb[0].mxu0
      %v673 = vpop.f32.mrb[0].mxu0
      %v674 = vadd.f32 0.0, %v673
      %v675 = vpop.f32.mrb[0].mxu0
      %676 = vdwg.mxu0
      %v677 = vmul.f32 %v671, %v627
      %v678 = vmul.f32 %v674, %v628
      %v679 = vpack.c.bf16 %v678, %v677
      %v680 = vld [vmem:[%s4 + $0x8] sm:$0xf]
      %v681 = vld [vmem:[%s4 + $0xc] sm:$0xf]
      %v684 = vunpack.c.l.b16 %v680
      %v685 = vunpack.c.l.b16 %v681
      %v686 = vpack.c.b16 %v685, %v684
      %v689 = vsel %vm437, %v679, 0
      %691 = vmatprep.subr.bf16.mxu0 0
      %692 = vmatpush1.bf16.msra.mxu0 %v686
      %693 = vmatprep.subr.bf16.mxu0 0
      %694 = vmatpush1.bf16.msra.mxu0 0
      %695 = vmatprep.subr.bf16.mxu0 0
      %696 = vmatpush1.bf16.msra.mxu0 0
      %697 = vmatprep.subr.bf16.mxu0 0
      %698 = vmatpush1.bf16.msra.mxu0 0
      %699 = vmatprep.subr.bf16.mxu0 0
      %700 = vmatpush1.bf16.msra.mxu0 0
      %701 = vmatprep.subr.bf16.mxu0 0
      %702 = vmatpush1.bf16.msra.mxu0 0
      %703 = vmatprep.subr.bf16.mxu0 0
      %704 = vmatpush1.bf16.msra.mxu0 0
      %705 = vmatprep.subr.bf16.mxu0 0
      %706 = vmatpush1.bf16.msra.mxu0 0
      %707 = vmatprep.subr.bf16.mxu0 0
      %708 = vmatpush1.bf16.msra.mxu0 0
      %709 = vmatprep.subr.bf16.mxu0 0
      %710 = vmatpush1.bf16.msra.mxu0 0
      %711 = vmatprep.subr.bf16.mxu0 0
      %712 = vmatpush1.bf16.msra.mxu0 0
      %713 = vmatprep.subr.bf16.mxu0 0
      %714 = vmatpush1.bf16.msra.mxu0 0
      %715 = vmatprep.subr.bf16.mxu0 0
      %716 = vmatpush1.bf16.msra.mxu0 0
      %717 = vmatprep.subr.bf16.mxu0 0
      %718 = vmatpush1.bf16.msra.mxu0 0
      %719 = vmatprep.subr.bf16.mxu0 0
      %720 = vmatpush1.bf16.msra.mxu0 0
      %721 = vmatprep.subr.bf16.mxu0 0
      %722 = vmatpush1.bf16.msra.mxu0 0
      %723 = vmatprep.mubr.bf16.mxu0 0
      %724 = vmatmul.mubr.bf16.gmra.mrb[0].mxu0 %v689
      %v725 = vpop.f32.mrb[0].mxu0
      %v726 = vadd.f32 0.0, %v725
      %v727 = vpop.f32.mrb[0].mxu0
      %v728 = vpop.f32.mrb[0].mxu0
      %v729 = vadd.f32 0.0, %v728
      %v730 = vpop.f32.mrb[0].mxu0
      %731 = vdwg.mxu0
      %v734 = vunpack.c.l.b16 %v556
      %v735 = vunpack.c.l.b16 %v557
      %v736 = vpack.c.b16 %v735, %v734
      %v739 = vsel %vm437, %v555, 0
      %741 = vmatprep.subr.bf16.mxu0 0
      %742 = vmatpush1.bf16.msra.mxu0 %v736
      %743 = vmatprep.subr.bf16.mxu0 0
      %744 = vmatpush1.bf16.msra.mxu0 0
      %745 = vmatprep.subr.bf16.mxu0 0
      %746 = vmatpush1.bf16.msra.mxu0 0
      %747 = vmatprep.subr.bf16.mxu0 0
      %748 = vmatpush1.bf16.msra.mxu0 0
      %749 = vmatprep.subr.bf16.mxu0 0
      %750 = vmatpush1.bf16.msra.mxu0 0
      %751 = vmatprep.subr.bf16.mxu0 0
      %752 = vmatpush1.bf16.msra.mxu0 0
      %753 = vmatprep.subr.bf16.mxu0 0
      %754 = vmatpush1.bf16.msra.mxu0 0
      %755 = vmatprep.subr.bf16.mxu0 0
      %756 = vmatpush1.bf16.msra.mxu0 0
      %757 = vmatprep.subr.bf16.mxu0 0
      %758 = vmatpush1.bf16.msra.mxu0 0
      %759 = vmatprep.subr.bf16.mxu0 0
      %760 = vmatpush1.bf16.msra.mxu0 0
      %761 = vmatprep.subr.bf16.mxu0 0
      %762 = vmatpush1.bf16.msra.mxu0 0
      %763 = vmatprep.subr.bf16.mxu0 0
      %764 = vmatpush1.bf16.msra.mxu0 0
      %765 = vmatprep.subr.bf16.mxu0 0
      %766 = vmatpush1.bf16.msra.mxu0 0
      %767 = vmatprep.subr.bf16.mxu0 0
      %768 = vmatpush1.bf16.msra.mxu0 0
      %769 = vmatprep.subr.bf16.mxu0 0
      %770 = vmatpush1.bf16.msra.mxu0 0
      %771 = vmatprep.subr.bf16.mxu0 0
      %772 = vmatpush1.bf16.msra.mxu0 0
      %773 = vmatprep.mubr.bf16.mxu0 0
      %774 = vmatmul.mubr.bf16.gmra.mrb[0].mxu0 %v739
      %v775 = vpop.f32.mrb[0].mxu0
      %v776 = vadd.f32 %v726, %v775
      %v777 = vpop.f32.mrb[0].mxu0
      %v778 = vpop.f32.mrb[0].mxu0
      %v779 = vadd.f32 %v729, %v778
      %v780 = vpop.f32.mrb[0].mxu0
      %781 = vdwg.mxu0
      %782 = vrot.lane.b32.xlu0 %v431, 96
      %v783 = vpop.permute.xlu0 %782
      %784 = vrot.lane.b32.xlu0 %v436, 96
      %v785 = vpop.permute.xlu0 %784
      %v787 = vsel %vm437, %v783, 0
      %v790 = vsel %vm437, %v785, 0
      %792 = vmatprep.subr.bf16.mxu0 0
      %793 = vmatpush1.bf16.xpose.msra.mxu0 %v790
      %794 = vmatprep.subr.bf16.mxu0 0
      %795 = vmatpush1.bf16.xpose.msra.mxu0 0
      %796 = vmatprep.subr.bf16.mxu0 0
      %797 = vmatpush1.bf16.xpose.msra.mxu0 0
      %798 = vmatprep.subr.bf16.mxu0 0
      %799 = vmatpush1.bf16.xpose.msra.mxu0 0
      %800 = vmatprep.subr.bf16.mxu0 0
      %801 = vmatpush1.bf16.xpose.msra.mxu0 0
      %802 = vmatprep.subr.bf16.mxu0 0
      %803 = vmatpush1.bf16.xpose.msra.mxu0 0
      %804 = vmatprep.subr.bf16.mxu0 0
      %805 = vmatpush1.bf16.xpose.msra.mxu0 0
      %806 = vmatprep.subr.bf16.mxu0 0
      %807 = vmatpush1.bf16.xpose.msra.mxu0 0
      %808 = vmatprep.subr.bf16.mxu0 0
      %809 = vmatpush1.bf16.xpose.msra.mxu0 0
      %810 = vmatprep.subr.bf16.mxu0 0
      %811 = vmatpush1.bf16.xpose.msra.mxu0 0
      %812 = vmatprep.subr.bf16.mxu0 0
      %813 = vmatpush1.bf16.xpose.msra.mxu0 0
      %814 = vmatprep.subr.bf16.mxu0 0
      %815 = vmatpush1.bf16.xpose.msra.mxu0 0
      %816 = vmatprep.subr.bf16.mxu0 0
      %817 = vmatpush1.bf16.xpose.msra.mxu0 0
      %818 = vmatprep.subr.bf16.mxu0 0
      %819 = vmatpush1.bf16.xpose.msra.mxu0 0
      %820 = vmatprep.subr.bf16.mxu0 0
      %821 = vmatpush1.bf16.xpose.msra.mxu0 0
      %822 = vmatprep.subr.bf16.mxu0 0
      %823 = vmatpush1.bf16.xpose.msra.mxu0 0
      %824 = vmatprep.mubr.bf16.mxu0 0
      %825 = vmatmul.mubr.bf16.gmra.mrb[0].mxu0 %v787
      %v826 = vpop.f32.mrb[0].mxu0
      %v827 = vadd.f32 %v425, %v826
      %v828 = vpop.f32.mrb[0].mxu0
      %v829 = vpop.f32.mrb[0].mxu0
      %v830 = vadd.f32 %v425, %v829
      %v831 = vpop.f32.mrb[0].mxu0
      %832 = vdwg.mxu0
      %v833 = vsel %vm437, %v827, -inf
      %834 = vmax.xlane.f32.xlu0 %v833
      %v835 = vpop.xlane.xlu0 %834
      %v836 = vsel %vm437, %v830, -inf
      %837 = vmax.xlane.f32.xlu0 %v836
      %v838 = vpop.xlane.xlu0 %837
      %v839 = vsub.f32 %v827, %v835
      %v840 = vsub.f32 %v830, %v838
      %v841 = vmul.f32 %v839, 1.442695
      %v842 = vpow.pop %v841
      %v843 = vmul.f32 %v840, 1.442695
      %v844 = vpow.pop %v843
      %v845 = vsel %vm437, %v842, 0.0
      %846 = vadd.xlane.f32.xlu0 %v845
      %v847 = vpop.xlane.xlu0 %846
      %v848 = vsel %vm437, %v844, 0.0
      %849 = vadd.xlane.f32.xlu0 %v848
      %v850 = vpop.xlane.xlu0 %849
      %v851 = vrcp.pop %v847
      %v852 = vrcp.pop %v850
      %v853 = vpack.c.bf16 %v844, %v842
      %854 = vrot.lane.b32.xlu0 %v436, 32
      %v855 = vpop.permute.xlu0 %854
      %v858 = vsel %vm437, %v853, 0
      %860 = vmatprep.subr.bf16.mxu0 0
      %861 = vmatpush1.bf16.msra.mxu0 %v855
      %862 = vmatprep.subr.bf16.mxu0 0
      %863 = vmatpush1.bf16.msra.mxu0 0
      %864 = vmatprep.subr.bf16.mxu0 0
      %865 = vmatpush1.bf16.msra.mxu0 0
      %866 = vmatprep.subr.bf16.mxu0 0
      %867 = vmatpush1.bf16.msra.mxu0 0
      %868 = vmatprep.subr.bf16.mxu0 0
      %869 = vmatpush1.bf16.msra.mxu0 0
      %870 = vmatprep.subr.bf16.mxu0 0
      %871 = vmatpush1.bf16.msra.mxu0 0
      %872 = vmatprep.subr.bf16.mxu0 0
      %873 = vmatpush1.bf16.msra.mxu0 0
      %874 = vmatprep.subr.bf16.mxu0 0
      %875 = vmatpush1.bf16.msra.mxu0 0
      %876 = vmatprep.subr.bf16.mxu0 0
      %877 = vmatpush1.bf16.msra.mxu0 0
      %878 = vmatprep.subr.bf16.mxu0 0
      %879 = vmatpush1.bf16.msra.mxu0 0
      %880 = vmatprep.subr.bf16.mxu0 0
      %881 = vmatpush1.bf16.msra.mxu0 0
      %882 = vmatprep.subr.bf16.mxu0 0
      %883 = vmatpush1.bf16.msra.mxu0 0
      %884 = vmatprep.subr.bf16.mxu0 0
      %885 = vmatpush1.bf16.msra.mxu0 0
      %886 = vmatprep.subr.bf16.mxu0 0
      %887 = vmatpush1.bf16.msra.mxu0 0
      %888 = vmatprep.subr.bf16.mxu0 0
      %889 = vmatpush1.bf16.msra.mxu0 0
      %890 = vmatprep.subr.bf16.mxu0 0
      %891 = vmatpush1.bf16.msra.mxu0 0
      %892 = vmatprep.mubr.bf16.mxu0 0
      %893 = vmatmul.mubr.bf16.gmra.mrb[0].mxu0 %v858
      %v894 = vpop.f32.mrb[0].mxu0
      %v895 = vadd.f32 0.0, %v894
      %v896 = vpop.f32.mrb[0].mxu0
      %v897 = vpop.f32.mrb[0].mxu0
      %v898 = vadd.f32 0.0, %v897
      %v899 = vpop.f32.mrb[0].mxu0
      %900 = vdwg.mxu0
      %v901 = vmul.f32 %v895, %v851
      %v902 = vmul.f32 %v898, %v852
      %v903 = vpack.c.bf16 %v902, %v901
      %v904 = vld [vmem:[%s4 + $0x10] sm:$0xf]
      %v905 = vld [vmem:[%s4 + $0x14] sm:$0xf]
      %v908 = vunpack.c.l.b16 %v904
      %v909 = vunpack.c.l.b16 %v905
      %v910 = vpack.c.b16 %v909, %v908
      %v913 = vsel %vm437, %v903, 0
      %915 = vmatprep.subr.bf16.mxu0 0
      %916 = vmatpush1.bf16.msra.mxu0 %v910
      %917 = vmatprep.subr.bf16.mxu0 0
      %918 = vmatpush1.bf16.msra.mxu0 0
      %919 = vmatprep.subr.bf16.mxu0 0
      %920 = vmatpush1.bf16.msra.mxu0 0
      %921 = vmatprep.subr.bf16.mxu0 0
      %922 = vmatpush1.bf16.msra.mxu0 0
      %923 = vmatprep.subr.bf16.mxu0 0
      %924 = vmatpush1.bf16.msra.mxu0 0
      %925 = vmatprep.subr.bf16.mxu0 0
      %926 = vmatpush1.bf16.msra.mxu0 0
      %927 = vmatprep.subr.bf16.mxu0 0
      %928 = vmatpush1.bf16.msra.mxu0 0
      %929 = vmatprep.subr.bf16.mxu0 0
      %930 = vmatpush1.bf16.msra.mxu0 0
      %931 = vmatprep.subr.bf16.mxu0 0
      %932 = vmatpush1.bf16.msra.mxu0 0
      %933 = vmatprep.subr.bf16.mxu0 0
      %934 = vmatpush1.bf16.msra.mxu0 0
      %935 = vmatprep.subr.bf16.mxu0 0
      %936 = vmatpush1.bf16.msra.mxu0 0
      %937 = vmatprep.subr.bf16.mxu0 0
      %938 = vmatpush1.bf16.msra.mxu0 0
      %939 = vmatprep.subr.bf16.mxu0 0
      %940 = vmatpush1.bf16.msra.mxu0 0
      %941 = vmatprep.subr.bf16.mxu0 0
      %942 = vmatpush1.bf16.msra.mxu0 0
      %943 = vmatprep.subr.bf16.mxu0 0
      %944 = vmatpush1.bf16.msra.mxu0 0
      %945 = vmatprep.subr.bf16.mxu0 0
      %946 = vmatpush1.bf16.msra.mxu0 0
      %947 = vmatprep.mubr.bf16.mxu0 0
      %948 = vmatmul.mubr.bf16.gmra.mrb[0].mxu0 %v913
      %v949 = vpop.f32.mrb[0].mxu0
      %v950 = vadd.f32 0.0, %v949
      %v951 = vpop.f32.mrb[0].mxu0
      %v952 = vpop.f32.mrb[0].mxu0
      %v953 = vadd.f32 0.0, %v952
      %v954 = vpop.f32.mrb[0].mxu0
      %955 = vdwg.mxu0
      %v956 = vadd.f32 %v776, %v950
      %v957 = vadd.f32 %v779, %v953
      %958 = vrot.lane.b32.xlu0 %v431, 80
      %v959 = vpop.permute.xlu0 %958
      %960 = vrot.lane.b32.xlu0 %v436, 80
      %v961 = vpop.permute.xlu0 %960
      %v963 = vsel %vm437, %v959, 0
      %v966 = vsel %vm437, %v961, 0
      %968 = vmatprep.subr.bf16.mxu0 0
      %969 = vmatpush1.bf16.xpose.msra.mxu0 %v966
      %970 = vmatprep.subr.bf16.mxu0 0
      %971 = vmatpush1.bf16.xpose.msra.mxu0 0
      %972 = vmatprep.subr.bf16.mxu0 0
      %973 = vmatpush1.bf16.xpose.msra.mxu0 0
      %974 = vmatprep.subr.bf16.mxu0 0
      %975 = vmatpush1.bf16.xpose.msra.mxu0 0
      %976 = vmatprep.subr.bf16.mxu0 0
      %977 = vmatpush1.bf16.xpose.msra.mxu0 0
      %978 = vmatprep.subr.bf16.mxu0 0
      %979 = vmatpush1.bf16.xpose.msra.mxu0 0
      %980 = vmatprep.subr.bf16.mxu0 0
      %981 = vmatpush1.bf16.xpose.msra.mxu0 0
      %982 = vmatprep.subr.bf16.mxu0 0
      %983 = vmatpush1.bf16.xpose.msra.mxu0 0
      %984 = vmatprep.subr.bf16.mxu0 0
      %985 = vmatpush1.bf16.xpose.msra.mxu0 0
      %986 = vmatprep.subr.bf16.mxu0 0
      %987 = vmatpush1.bf16.xpose.msra.mxu0 0
      %988 = vmatprep.subr.bf16.mxu0 0
      %989 = vmatpush1.bf16.xpose.msra.mxu0 0
      %990 = vmatprep.subr.bf16.mxu0 0
      %991 = vmatpush1.bf16.xpose.msra.mxu0 0
      %992 = vmatprep.subr.bf16.mxu0 0
      %993 = vmatpush1.bf16.xpose.msra.mxu0 0
      %994 = vmatprep.subr.bf16.mxu0 0
      %995 = vmatpush1.bf16.xpose.msra.mxu0 0
      %996 = vmatprep.subr.bf16.mxu0 0
      %997 = vmatpush1.bf16.xpose.msra.mxu0 0
      %998 = vmatprep.subr.bf16.mxu0 0
      %999 = vmatpush1.bf16.xpose.msra.mxu0 0
      %1000 = vmatprep.mubr.bf16.mxu0 0
      %1001 = vmatmul.mubr.bf16.gmra.mrb[0].mxu0 %v963
      %v1002 = vpop.f32.mrb[0].mxu0
      %v1003 = vadd.f32 %v425, %v1002
      %v1004 = vpop.f32.mrb[0].mxu0
      %v1005 = vpop.f32.mrb[0].mxu0
      %v1006 = vadd.f32 %v425, %v1005
      %v1007 = vpop.f32.mrb[0].mxu0
      %1008 = vdwg.mxu0
      %v1009 = vsel %vm437, %v1003, -inf
      %1010 = vmax.xlane.f32.xlu0 %v1009
      %v1011 = vpop.xlane.xlu0 %1010
      %v1012 = vsel %vm437, %v1006, -inf
      %1013 = vmax.xlane.f32.xlu0 %v1012
      %v1014 = vpop.xlane.xlu0 %1013
      %v1015 = vsub.f32 %v1003, %v1011
      %v1016 = vsub.f32 %v1006, %v1014
      %v1017 = vmul.f32 %v1015, 1.442695
      %v1018 = vpow.pop %v1017
      %v1019 = vmul.f32 %v1016, 1.442695
      %v1020 = vpow.pop %v1019
      %v1021 = vsel %vm437, %v1018, 0.0
      %1022 = vadd.xlane.f32.xlu0 %v1021
      %v1023 = vpop.xlane.xlu0 %1022
      %v1024 = vsel %vm437, %v1020, 0.0
      %1025 = vadd.xlane.f32.xlu0 %v1024
      %v1026 = vpop.xlane.xlu0 %1025
      %v1027 = vrcp.pop %v1023
      %v1028 = vrcp.pop %v1026
      %v1029 = vpack.c.bf16 %v1020, %v1018
      %1030 = vrot.lane.b32.xlu0 %v436, 16
      %v1031 = vpop.permute.xlu0 %1030
      %v1034 = vsel %vm437, %v1029, 0
      %1036 = vmatprep.subr.bf16.mxu0 0
      %1037 = vmatpush1.bf16.msra.mxu0 %v1031
      %1038 = vmatprep.subr.bf16.mxu0 0
      %1039 = vmatpush1.bf16.msra.mxu0 0
      %1040 = vmatprep.subr.bf16.mxu0 0
      %1041 = vmatpush1.bf16.msra.mxu0 0
      %1042 = vmatprep.subr.bf16.mxu0 0
      %1043 = vmatpush1.bf16.msra.mxu0 0
      %1044 = vmatprep.subr.bf16.mxu0 0
      %1045 = vmatpush1.bf16.msra.mxu0 0
      %1046 = vmatprep.subr.bf16.mxu0 0
      %1047 = vmatpush1.bf16.msra.mxu0 0
      %1048 = vmatprep.subr.bf16.mxu0 0
      %1049 = vmatpush1.bf16.msra.mxu0 0
      %1050 = vmatprep.subr.bf16.mxu0 0
      %1051 = vmatpush1.bf16.msra.mxu0 0
      %1052 = vmatprep.subr.bf16.mxu0 0
      %1053 = vmatpush1.bf16.msra.mxu0 0
      %1054 = vmatprep.subr.bf16.mxu0 0
      %1055 = vmatpush1.bf16.msra.mxu0 0
      %1056 = vmatprep.subr.bf16.mxu0 0
      %1057 = vmatpush1.bf16.msra.mxu0 0
      %1058 = vmatprep.subr.bf16.mxu0 0
      %1059 = vmatpush1.bf16.msra.mxu0 0
      %1060 = vmatprep.subr.bf16.mxu0 0
      %1061 = vmatpush1.bf16.msra.mxu0 0
      %1062 = vmatprep.subr.bf16.mxu0 0
      %1063 = vmatpush1.bf16.msra.mxu0 0
      %1064 = vmatprep.subr.bf16.mxu0 0
      %1065 = vmatpush1.bf16.msra.mxu0 0
      %1066 = vmatprep.subr.bf16.mxu0 0
      %1067 = vmatpush1.bf16.msra.mxu0 0
      %1068 = vmatprep.mubr.bf16.mxu0 0
      %1069 = vmatmul.mubr.bf16.gmra.mrb[0].mxu0 %v1034
      %v1070 = vpop.f32.mrb[0].mxu0
      %v1071 = vadd.f32 0.0, %v1070
      %v1072 = vpop.f32.mrb[0].mxu0
      %v1073 = vpop.f32.mrb[0].mxu0
      %v1074 = vadd.f32 0.0, %v1073
      %v1075 = vpop.f32.mrb[0].mxu0
      %1076 = vdwg.mxu0
      %v1077 = vmul.f32 %v1071, %v1027
      %v1078 = vmul.f32 %v1074, %v1028
      %v1079 = vpack.c.bf16 %v1078, %v1077
      %v1080 = vld [vmem:[%s4 + $0x18] sm:$0xf]
      %v1081 = vld [vmem:[%s4 + $0x1c] sm:$0xf]
      %v1084 = vunpack.c.l.b16 %v1080
      %v1085 = vunpack.c.l.b16 %v1081
      %v1086 = vpack.c.b16 %v1085, %v1084
      %v1089 = vsel %vm437, %v1079, 0
      %1091 = vmatprep.subr.bf16.mxu0 0
      %1092 = vmatpush1.bf16.msra.mxu0 %v1086
      %1093 = vmatprep.subr.bf16.mxu0 0
      %1094 = vmatpush1.bf16.msra.mxu0 0
      %1095 = vmatprep.subr.bf16.mxu0 0
      %1096 = vmatpush1.bf16.msra.mxu0 0
      %1097 = vmatprep.subr.bf16.mxu0 0
      %1098 = vmatpush1.bf16.msra.mxu0 0
      %1099 = vmatprep.subr.bf16.mxu0 0
      %1100 = vmatpush1.bf16.msra.mxu0 0
      %1101 = vmatprep.subr.bf16.mxu0 0
      %1102 = vmatpush1.bf16.msra.mxu0 0
      %1103 = vmatprep.subr.bf16.mxu0 0
      %1104 = vmatpush1.bf16.msra.mxu0 0
      %1105 = vmatprep.subr.bf16.mxu0 0
      %1106 = vmatpush1.bf16.msra.mxu0 0
      %1107 = vmatprep.subr.bf16.mxu0 0
      %1108 = vmatpush1.bf16.msra.mxu0 0
      %1109 = vmatprep.subr.bf16.mxu0 0
      %1110 = vmatpush1.bf16.msra.mxu0 0
      %1111 = vmatprep.subr.bf16.mxu0 0
      %1112 = vmatpush1.bf16.msra.mxu0 0
      %1113 = vmatprep.subr.bf16.mxu0 0
      %1114 = vmatpush1.bf16.msra.mxu0 0
      %1115 = vmatprep.subr.bf16.mxu0 0
      %1116 = vmatpush1.bf16.msra.mxu0 0
      %1117 = vmatprep.subr.bf16.mxu0 0
      %1118 = vmatpush1.bf16.msra.mxu0 0
      %1119 = vmatprep.subr.bf16.mxu0 0
      %1120 = vmatpush1.bf16.msra.mxu0 0
      %1121 = vmatprep.subr.bf16.mxu0 0
      %1122 = vmatpush1.bf16.msra.mxu0 0
      %1123 = vmatprep.mubr.bf16.mxu0 0
      %1124 = vmatmul.mubr.bf16.gmra.mrb[0].mxu0 %v1089
      %v1125 = vpop.f32.mrb[0].mxu0
      %v1126 = vadd.f32 0.0, %v1125
      %v1127 = vpop.f32.mrb[0].mxu0
      %v1128 = vpop.f32.mrb[0].mxu0
      %v1129 = vadd.f32 0.0, %v1128
      %v1130 = vpop.f32.mrb[0].mxu0
      %1131 = vdwg.mxu0
      %v1132 = vadd.f32 %v956, %v1126
      %v1133 = vadd.f32 %v957, %v1129
      %v1134 = vld [vmem:[%s5] sm:$0x1]
      %v1136 = vlaneseq
      %v1137 = vshrl.u32 %v1136, 7
      %v1138 = vsub.s32 0, %v1137
      %v1139 = vrot.slane %v1134, %v1138
      %v1141 = vadd.f32 %v1132, %v1139
      %v1142 = vadd.f32 %v1133, %v1139
      %v1143 = vld [vmem:[%s403] sm:$0xff]
      %v1144 = vld [vmem:[%s403 + $0x8] sm:$0xff]
      %v1145 = vadd.f32 %v1141, %v1143
      %v1146 = vadd.f32 %v1142, %v1144
      %vm1147 = vcmask 523264
      %v1148 = vsel %vm1147, %v1145, 0.0
      %1149 = vadd.xlane.f32.xlu0 %v1148
      %v1150 = vpop.xlane.xlu0 %1149
      %v1151 = vsel %vm1147, %v1146, 0.0
      %1152 = vadd.xlane.f32.xlu0 %v1151
      %v1153 = vpop.xlane.xlu0 %1152
      %v1154 = vrcp.pop 64.0
      %v1155 = vmul.f32 %v1150, %v1154
      %v1156 = vmul.f32 %v1153, %v1154
      %v1157 = vsub.f32 %v1145, %v1155
      %v1158 = vsub.f32 %v1146, %v1156
      %v1159 = vmul.f32 %v1157, %v1157
      %v1160 = vmul.f32 %v1158, %v1158
      %v1161 = vsel %vm1147, %v1159, 0.0
      %1162 = vadd.xlane.f32.xlu0 %v1161
      %v1163 = vpop.xlane.xlu0 %1162
      %v1164 = vsel %vm1147, %v1160, 0.0
      %1165 = vadd.xlane.f32.xlu0 %v1164
      %v1166 = vpop.xlane.xlu0 %1165
      %v1167 = vmul.f32 %v1163, %v1154
      %v1168 = vmul.f32 %v1166, %v1154
      %v1169 = vadd.f32 %v1167, 1e-05
      %v1170 = vadd.f32 %v1168, 1e-05
      %v1171 = vrsqrt.pop %v1169
      %v1172 = vrsqrt.pop %v1170
      %v1173 = vmul.f32 %v1157, %v1171
      %v1174 = vmul.f32 %v1158, %v1172
      %v1175 = vld [vmem:[%s6] sm:$0x1]
      %v1177 = vlaneseq
      %v1178 = vshrl.u32 %v1177, 7
      %v1179 = vsub.s32 0, %v1178
      %v1180 = vrot.slane %v1175, %v1179
      %v1182 = vmul.f32 %v1173, %v1180
      %v1183 = vmul.f32 %v1174, %v1180
      %v1184 = vld [vmem:[%s7] sm:$0x1]
      %v1186 = vlaneseq
      %v1187 = vshrl.u32 %v1186, 7
      %v1188 = vsub.s32 0, %v1187
      %v1189 = vrot.slane %v1184, %v1188
      %v1191 = vadd.f32 %v1182, %v1189
      %v1192 = vadd.f32 %v1183, %v1189
      %1193 = vst.msk [vmem:[%s413] sm:$0xff] %vm1147, %v1191
      %1194 = vst.msk [vmem:[%s413 + $0x8] sm:$0xff] %vm1147, %v1192
      %s1195 = smul.u32 2, %s24
      %p1196 = scmp.lt.s32.totalorder %s23, 1
      %s1197 = scalar_select %p1196, %s23, 1
      %p1198 = scmp.lt.s32.totalorder %s1195, 1
      %s1199 = scalar_select %p1198, %s1195, 1
      %s1200 = smul.addr %s1197, 2
      %s1201 = sadd.s32 %s1199, %s1200
      %s1202 = smul.addr %s1201, 8
      %s1203 = scalar_lea.vmem %s8, %s1202
      // Predicated region
      $region53: #{squeezeformer_block.10} parent=51 // pred_check
        %p1204 = pneg %p243
      $region54: #{squeezeformer_block.10} parent=51 // pred_check_branch
        %1206 = sbr.rel (%p1204) target = $region56
      $region55: #{squeezeformer_block.10} parent=51 // pred_region
        %s1207 = smul.u32 2, %s24
      $region56: #{squeezeformer_block.10} parent=51 // pred_fallthru
        _
    $region52: #{squeezeformer_block.10} parent=5 // pred_fallthru
      _
    %p1208 = scmp.le.s32.totalorder 2, %s14
    // Predicated region
    $region57: #{squeezeformer_block.10} parent=5 // pred_check
      %p1209 = pneg %p1208
    $region58: #{squeezeformer_block.10} parent=5 // pred_check_branch
      %1211 = sbr.rel (%p1209) target = $region60
    $region59: #{squeezeformer_block.10} parent=5 // pred_region
      %s1212 = ssub.s32 %s14, 2
      // Predicated region
      $region61: #{squeezeformer_block.10} parent=59 // pred_check
        %p1213 = pneg %p249
      $region62: #{squeezeformer_block.10} parent=59 // pred_check_branch
        %1215 = sbr.rel (%p1213) target = $region64
      $region63: #{squeezeformer_block.10} parent=59 // pred_region
        %s1216 = smul.u32 2, %s26
        %p1217 = scmp.lt.s32.totalorder %s25, 1
        %s1218 = scalar_select %p1217, %s25, 1
        %p1219 = scmp.lt.s32.totalorder %s1216, 1
        %s1220 = scalar_select %p1219, %s1216, 1
        %s1221 = smul.addr %s1218, 2
        %s1222 = sadd.s32 %s1220, %s1221
        %s1223 = smul.addr %s1222, 8
        %s1224 = scalar_lea.vmem %s8, %s1223
      $region64: #{squeezeformer_block.10} parent=59 // pred_fallthru
        _
    $region60: #{squeezeformer_block.10} parent=5 // pred_fallthru
      _
  $region6: #{squeezeformer_block.10} parent=0 // loop_footer
    %s18 = sadd.s32 1, %s14
  $region7: #{squeezeformer_block.10} parent=0 // loop_footer_branch
    %13 = sbr.rel target = $region3
  $region8: #{squeezeformer_block.10} parent=0 // loop_exit
    _

// kernel: squeezeformer_block.12
$region0: #{squeezeformer_block.12}
  #allocation0 [shape = 'u32[]', space=smem, size = 0x4, offset = 0x4, fixed_abs, tag = 'smem constant byte address 0x4 - core index']
  #allocation1 [shape = 'u32[144,128]{1,0:T(1,128)}', space=vmem, size = 0x12000, scoped, tag = 'internal scratch']
  %s0 = inlined_call_operand.vmem [shape: bf16[32,256], index: 0, kind: input, shape index: {}]
  %s1 = inlined_call_operand.vmem [shape: bf16[256,64], index: 1, kind: input, shape index: {}]
  %s2 = inlined_call_operand.vmem [shape: f32[1,64], index: 2, kind: input, shape index: {}]
  %s3 = inlined_call_operand.vmem [shape: f32[32,64], index: 3, kind: input, shape index: {}]
  %s4 = inlined_call_operand.vmem [shape: f32[1,64], index: 4, kind: input, shape index: {}]
  %s5 = inlined_call_operand.vmem [shape: f32[1,64], index: 5, kind: input, shape index: {}]
  %s6 = inlined_call_operand.vmem [shape: f32[32,64], index: 6, kind: output, shape index: {}]
  %s7 = sld [smem:[#allocation0]]
  $region34: #{squeezeformer_block.12} parent=0
    _
  %s9 = ssub.s32 1, %s7
  %s10 = scalar_select 0, %s9, %s7
  // Predicated region
  $region2: #{squeezeformer_block.12} parent=0 // pred_check
    _
  $region3: #{squeezeformer_block.12} parent=0 // pred_check_branch
    %12 = sbr.rel (0) target = $region5
  $region4: #{squeezeformer_block.12} parent=0 // pred_region
    _
  $region5: #{squeezeformer_block.12} parent=0 // pred_fallthru
    _
  // Predicated region
  $region6: #{squeezeformer_block.12} parent=0 // pred_check
    _
  $region7: #{squeezeformer_block.12} parent=0 // pred_check_branch
    %14 = sbr.rel (0) target = $region9
  $region8: #{squeezeformer_block.12} parent=0 // pred_region
    _
  $region9: #{squeezeformer_block.12} parent=0 // pred_fallthru
    _
  // Predicated region
  $region10: #{squeezeformer_block.12} parent=0 // pred_check
    _
  $region11: #{squeezeformer_block.12} parent=0 // pred_check_branch
    %16 = sbr.rel (0) target = $region13
  $region12: #{squeezeformer_block.12} parent=0 // pred_region
    _
  $region13: #{squeezeformer_block.12} parent=0 // pred_fallthru
    _
  // Predicated region
  $region14: #{squeezeformer_block.12} parent=0 // pred_check
    _
  $region15: #{squeezeformer_block.12} parent=0 // pred_check_branch
    %18 = sbr.rel (0) target = $region17
  $region16: #{squeezeformer_block.12} parent=0 // pred_region
    _
  $region17: #{squeezeformer_block.12} parent=0 // pred_fallthru
    _
  // Predicated region
  $region18: #{squeezeformer_block.12} parent=0 // pred_check
    _
  $region19: #{squeezeformer_block.12} parent=0 // pred_check_branch
    %20 = sbr.rel (0) target = $region21
  $region20: #{squeezeformer_block.12} parent=0 // pred_region
    _
  $region21: #{squeezeformer_block.12} parent=0 // pred_fallthru
    _
  // Predicated region
  $region22: #{squeezeformer_block.12} parent=0 // pred_check
    _
  $region23: #{squeezeformer_block.12} parent=0 // pred_check_branch
    %22 = sbr.rel (0) target = $region25
  $region24: #{squeezeformer_block.12} parent=0 // pred_region
    _
  $region25: #{squeezeformer_block.12} parent=0 // pred_fallthru
    _
  %v24 = vld [vmem:[%s0] sm:$0xff]
  %v25 = vld [vmem:[%s0 + $0x8] sm:$0xff]
  %v26 = vld [vmem:[%s0 + $0x10] sm:$0xff]
  %v27 = vld [vmem:[%s0 + $0x18] sm:$0xff]
  %v28 = vld [vmem:[%s1] sm:$0xf]
  %v29 = vld [vmem:[%s1 + $0x4] sm:$0xf]
  %v30 = vld [vmem:[%s1 + $0x8] sm:$0xf]
  %v31 = vld [vmem:[%s1 + $0xc] sm:$0xf]
  %v32 = vld [vmem:[%s1 + $0x10] sm:$0xf]
  %v33 = vld [vmem:[%s1 + $0x14] sm:$0xf]
  %v34 = vld [vmem:[%s1 + $0x18] sm:$0xf]
  %v35 = vld [vmem:[%s1 + $0x1c] sm:$0xf]
  %v36 = vld [vmem:[%s1 + $0x20] sm:$0xf]
  %v37 = vld [vmem:[%s1 + $0x24] sm:$0xf]
  %v38 = vld [vmem:[%s1 + $0x28] sm:$0xf]
  %v39 = vld [vmem:[%s1 + $0x2c] sm:$0xf]
  %v40 = vld [vmem:[%s1 + $0x30] sm:$0xf]
  %v41 = vld [vmem:[%s1 + $0x34] sm:$0xf]
  %v42 = vld [vmem:[%s1 + $0x38] sm:$0xf]
  %v43 = vld [vmem:[%s1 + $0x3c] sm:$0xf]
  %v44 = vld [vmem:[%s1 + $0x40] sm:$0xf]
  %v45 = vld [vmem:[%s1 + $0x44] sm:$0xf]
  %v46 = vld [vmem:[%s1 + $0x48] sm:$0xf]
  %v47 = vld [vmem:[%s1 + $0x4c] sm:$0xf]
  %v48 = vld [vmem:[%s1 + $0x50] sm:$0xf]
  %v49 = vld [vmem:[%s1 + $0x54] sm:$0xf]
  %v50 = vld [vmem:[%s1 + $0x58] sm:$0xf]
  %v51 = vld [vmem:[%s1 + $0x5c] sm:$0xf]
  %v52 = vld [vmem:[%s1 + $0x60] sm:$0xf]
  %v53 = vld [vmem:[%s1 + $0x64] sm:$0xf]
  %v54 = vld [vmem:[%s1 + $0x68] sm:$0xf]
  %v55 = vld [vmem:[%s1 + $0x6c] sm:$0xf]
  %v56 = vld [vmem:[%s1 + $0x70] sm:$0xf]
  %v57 = vld [vmem:[%s1 + $0x74] sm:$0xf]
  %v58 = vld [vmem:[%s1 + $0x78] sm:$0xf]
  %v59 = vld [vmem:[%s1 + $0x7c] sm:$0xf]
  %v60 = vld [vmem:[%s2] sm:$0x1]
  %v62 = vlaneseq
  %v63 = vshrl.u32 %v62, 7
  %v64 = vsub.s32 0, %v63
  %v65 = vrot.slane %v60, %v64
  %v71 = vunpack.c.l.b16 %v24
  %v72 = vunpack.c.h.b16 %v24
  %v73 = vunpack.c.l.b16 %v25
  %v74 = vunpack.c.h.b16 %v25
  %v75 = vunpack.c.l.b16 %v26
  %v76 = vunpack.c.h.b16 %v26
  %v77 = vunpack.c.l.b16 %v27
  %v78 = vunpack.c.h.b16 %v27
  %v79 = vpack.c.b16 %v73, %v71
  %v80 = vpack.c.b16 %v74, %v72
  %v81 = vpack.c.b16 %v77, %v75
  %v82 = vpack.c.b16 %v78, %v76
  %v119 = vunpack.c.l.b16 %v28
  %v120 = vunpack.c.l.b16 %v29
  %v121 = vunpack.c.l.b16 %v30
  %v122 = vunpack.c.l.b16 %v31
  %v123 = vunpack.c.l.b16 %v32
  %v124 = vunpack.c.l.b16 %v33
  %v125 = vunpack.c.l.b16 %v34
  %v126 = vunpack.c.l.b16 %v35
  %v127 = vunpack.c.l.b16 %v36
  %v128 = vunpack.c.l.b16 %v37
  %v129 = vunpack.c.l.b16 %v38
  %v130 = vunpack.c.l.b16 %v39
  %v131 = vunpack.c.l.b16 %v40
  %v132 = vunpack.c.l.b16 %v41
  %v133 = vunpack.c.l.b16 %v42
  %v134 = vunpack.c.l.b16 %v43
  %v135 = vunpack.c.l.b16 %v44
  %v136 = vunpack.c.l.b16 %v45
  %v137 = vunpack.c.l.b16 %v46
  %v138 = vunpack.c.l.b16 %v47
  %v139 = vunpack.c.l.b16 %v48
  %v140 = vunpack.c.l.b16 %v49
  %v141 = vunpack.c.l.b16 %v50
  %v142 = vunpack.c.l.b16 %v51
  %v143 = vunpack.c.l.b16 %v52
  %v144 = vunpack.c.l.b16 %v53
  %v145 = vunpack.c.l.b16 %v54
  %v146 = vunpack.c.l.b16 %v55
  %v147 = vunpack.c.l.b16 %v56
  %v148 = vunpack.c.l.b16 %v57
  %v149 = vunpack.c.l.b16 %v58
  %v150 = vunpack.c.l.b16 %v59
  %v151 = vpack.c.b16 %v120, %v119
  %v152 = vpack.c.b16 %v122, %v121
  %v153 = vpack.c.b16 %v124, %v123
  %v154 = vpack.c.b16 %v126, %v125
  %v155 = vpack.c.b16 %v128, %v127
  %v156 = vpack.c.b16 %v130, %v129
  %v157 = vpack.c.b16 %v132, %v131
  %v158 = vpack.c.b16 %v134, %v133
  %v159 = vpack.c.b16 %v136, %v135
  %v160 = vpack.c.b16 %v138, %v137
  %v161 = vpack.c.b16 %v140, %v139
  %v162 = vpack.c.b16 %v142, %v141
  %v163 = vpack.c.b16 %v144, %v143
  %v164 = vpack.c.b16 %v146, %v145
  %v165 = vpack.c.b16 %v148, %v147
  %v166 = vpack.c.b16 %v150, %v149
  %183 = vmatprep.subr.bf16.mxu0 0
  %184 = vmatpush1.bf16.msra.mxu0 %v151
  %185 = vmatprep.subr.bf16.mxu0 0
  %186 = vmatpush1.bf16.msra.mxu0 %v152
  %187 = vmatprep.subr.bf16.mxu0 0
  %188 = vmatpush1.bf16.msra.mxu0 %v153
  %189 = vmatprep.subr.bf16.mxu0 0
  %190 = vmatpush1.bf16.msra.mxu0 %v154
  %191 = vmatprep.subr.bf16.mxu0 0
  %192 = vmatpush1.bf16.msra.mxu0 %v155
  %193 = vmatprep.subr.bf16.mxu0 0
  %194 = vmatpush1.bf16.msra.mxu0 %v156
  %195 = vmatprep.subr.bf16.mxu0 0
  %196 = vmatpush1.bf16.msra.mxu0 %v157
  %197 = vmatprep.subr.bf16.mxu0 0
  %198 = vmatpush1.bf16.msra.mxu0 %v158
  %199 = vmatprep.subr.bf16.mxu0 0
  %200 = vmatpush1.bf16.msra.mxu0 %v159
  %201 = vmatprep.subr.bf16.mxu0 0
  %202 = vmatpush1.bf16.msra.mxu0 %v160
  %203 = vmatprep.subr.bf16.mxu0 0
  %204 = vmatpush1.bf16.msra.mxu0 %v161
  %205 = vmatprep.subr.bf16.mxu0 0
  %206 = vmatpush1.bf16.msra.mxu0 %v162
  %207 = vmatprep.subr.bf16.mxu0 0
  %208 = vmatpush1.bf16.msra.mxu0 %v163
  %209 = vmatprep.subr.bf16.mxu0 0
  %210 = vmatpush1.bf16.msra.mxu0 %v164
  %211 = vmatprep.subr.bf16.mxu0 0
  %212 = vmatpush1.bf16.msra.mxu0 %v165
  %213 = vmatprep.subr.bf16.mxu0 0
  %214 = vmatpush1.bf16.msra.mxu0 %v166
  %215 = vmatprep.mubr.bf16.mxu0 %v80
  %216 = vmatmul.mubr.bf16.gmra.mrb[0].mxu0 %v79
  %v217 = vpop.f32.mrb[0].mxu0
  %v218 = vadd.f32 %v65, %v217
  %v219 = vpop.f32.mrb[0].mxu0
  %v220 = vpop.f32.mrb[0].mxu0
  %v221 = vadd.f32 %v65, %v220
  %v222 = vpop.f32.mrb[0].mxu0
  %223 = vmatprep.mubr.bf16.mxu0 %v82
  %224 = vmatmul.mubr.bf16.gmra.mrb[0].mxu0 %v81
  %v225 = vpop.f32.mrb[0].mxu0
  %v226 = vadd.f32 %v65, %v225
  %v227 = vpop.f32.mrb[0].mxu0
  %v228 = vpop.f32.mrb[0].mxu0
  %v229 = vadd.f32 %v65, %v228
  %v230 = vpop.f32.mrb[0].mxu0
  %231 = vdwg.mxu0
  %v232 = vld [vmem:[%s3] sm:$0xff]
  %v233 = vld [vmem:[%s3 + $0x8] sm:$0xff]
  %v234 = vld [vmem:[%s3 + $0x10] sm:$0xff]
  %v235 = vld [vmem:[%s3 + $0x18] sm:$0xff]
  %v236 = vadd.f32 %v218, %v232
  %v237 = vadd.f32 %v221, %v233
  %v238 = vadd.f32 %v226, %v234
  %v239 = vadd.f32 %v229, %v235
  %vm240 = vcmask 523264
  %v241 = vsel %vm240, %v236, 0.0
  %242 = vadd.xlane.f32.xlu0 %v241
  %v243 = vpop.xlane.xlu0 %242
  %v244 = vsel %vm240, %v237, 0.0
  %245 = vadd.xlane.f32.xlu0 %v244
  %v246 = vpop.xlane.xlu0 %245
  %v247 = vsel %vm240, %v238, 0.0
  %248 = vadd.xlane.f32.xlu0 %v247
  %v249 = vpop.xlane.xlu0 %248
  %v250 = vsel %vm240, %v239, 0.0
  %251 = vadd.xlane.f32.xlu0 %v250
  %v252 = vpop.xlane.xlu0 %251
  %v253 = vrcp.pop 64.0
  %v254 = vmul.f32 %v243, %v253
  %v255 = vmul.f32 %v246, %v253
  %v256 = vmul.f32 %v249, %v253
  %v257 = vmul.f32 %v252, %v253
  %v258 = vsub.f32 %v236, %v254
  %v259 = vsub.f32 %v237, %v255
  %v260 = vsub.f32 %v238, %v256
  %v261 = vsub.f32 %v239, %v257
  %v262 = vmul.f32 %v258, %v258
  %v263 = vmul.f32 %v259, %v259
  %v264 = vmul.f32 %v260, %v260
  %v265 = vmul.f32 %v261, %v261
  %v266 = vsel %vm240, %v262, 0.0
  %267 = vadd.xlane.f32.xlu0 %v266
  %v268 = vpop.xlane.xlu0 %267
  %v269 = vsel %vm240, %v263, 0.0
  %270 = vadd.xlane.f32.xlu0 %v269
  %v271 = vpop.xlane.xlu0 %270
  %v272 = vsel %vm240, %v264, 0.0
  %273 = vadd.xlane.f32.xlu0 %v272
  %v274 = vpop.xlane.xlu0 %273
  %v275 = vsel %vm240, %v265, 0.0
  %276 = vadd.xlane.f32.xlu0 %v275
  %v277 = vpop.xlane.xlu0 %276
  %v278 = vmul.f32 %v268, %v253
  %v279 = vmul.f32 %v271, %v253
  %v280 = vmul.f32 %v274, %v253
  %v281 = vmul.f32 %v277, %v253
  %v282 = vadd.f32 %v278, 1e-05
  %v283 = vadd.f32 %v279, 1e-05
  %v284 = vadd.f32 %v280, 1e-05
  %v285 = vadd.f32 %v281, 1e-05
  %v286 = vrsqrt.pop %v282
  %v287 = vrsqrt.pop %v283
  %v288 = vrsqrt.pop %v284
  %v289 = vrsqrt.pop %v285
  %v290 = vmul.f32 %v258, %v286
  %v291 = vmul.f32 %v259, %v287
  %v292 = vmul.f32 %v260, %v288
  %v293 = vmul.f32 %v261, %v289
  %v294 = vld [vmem:[%s4] sm:$0x1]
  %v296 = vlaneseq
  %v297 = vshrl.u32 %v296, 7
  %v298 = vsub.s32 0, %v297
  %v299 = vrot.slane %v294, %v298
  %v301 = vmul.f32 %v290, %v299
  %v302 = vmul.f32 %v291, %v299
  %v303 = vmul.f32 %v292, %v299
  %v304 = vmul.f32 %v293, %v299
  %v305 = vld [vmem:[%s5] sm:$0x1]
  %v307 = vlaneseq
  %v308 = vshrl.u32 %v307, 7
  %v309 = vsub.s32 0, %v308
  %v310 = vrot.slane %v305, %v309
  %v312 = vadd.f32 %v301, %v310
  %v313 = vadd.f32 %v302, %v310
  %v314 = vadd.f32 %v303, %v310
  %v315 = vadd.f32 %v304, %v310
  %316 = vst.msk [vmem:[%s6] sm:$0xff] %vm240, %v312
  %317 = vst.msk [vmem:[%s6 + $0x8] sm:$0xff] %vm240, %v313
  %318 = vst.msk [vmem:[%s6 + $0x10] sm:$0xff] %vm240, %v314
  %319 = vst.msk [vmem:[%s6 + $0x18] sm:$0xff] %vm240, %v315
  // Predicated region
  $region26: #{squeezeformer_block.12} parent=0 // pred_check
    _
  $region27: #{squeezeformer_block.12} parent=0 // pred_check_branch
    %321 = sbr.rel (0) target = $region29
  $region28: #{squeezeformer_block.12} parent=0 // pred_region
    _
  $region29: #{squeezeformer_block.12} parent=0 // pred_fallthru
    _
  // Predicated region
  $region30: #{squeezeformer_block.12} parent=0 // pred_check
    _
  $region31: #{squeezeformer_block.12} parent=0 // pred_check_branch
    %323 = sbr.rel (0) target = $region33
  $region32: #{squeezeformer_block.12} parent=0 // pred_region
    _
  $region33: #{squeezeformer_block.12} parent=0 // pred_fallthru
    _

// kernel: squeezeformer_block.15
$region0: #{squeezeformer_block.15}
  #allocation0 [shape = 'u32[]', space=smem, size = 0x4, offset = 0x4, fixed_abs, tag = 'smem constant byte address 0x4 - core index']
  #allocation1 [shape = 'u32[144,128]{1,0:T(1,128)}', space=vmem, size = 0x12000, scoped, tag = 'internal scratch']
  %s0 = inlined_call_operand.vmem [shape: bf16[32,256], index: 0, kind: input, shape index: {}]
  %s1 = inlined_call_operand.vmem [shape: bf16[256,64], index: 1, kind: input, shape index: {}]
  %s2 = inlined_call_operand.vmem [shape: f32[1,64], index: 2, kind: input, shape index: {}]
  %s3 = inlined_call_operand.vmem [shape: f32[32,64], index: 3, kind: input, shape index: {}]
  %s4 = inlined_call_operand.vmem [shape: f32[1,64], index: 4, kind: input, shape index: {}]
  %s5 = inlined_call_operand.vmem [shape: f32[1,64], index: 5, kind: input, shape index: {}]
  %s6 = inlined_call_operand.hbm [shape: f32[32,64], index: 6, kind: output, shape index: {}]
  %s7 = sld [smem:[#allocation0]]
  $region34: #{squeezeformer_block.15} parent=0
    _
  %s9 = ssub.s32 1, %s7
  %s10 = scalar_select 0, %s9, %s7
  $region1: #{squeezeformer_block.15} parent=0
    #allocation2 [shape = 'u8[16384]{0}', space=vmem, size = 0x4000, scoped, tag = 'output window, operand 0, single buffered']
    #allocation3 [shape = 's32[1]{0}', space=sflag, size = 0x4, scoped, tag = 'scoped memory for squeezeformer_block.15']
    %11 = vsyncpa [#allocation3], 0
    // Predicated region
    $region2: #{squeezeformer_block.15} parent=1 // pred_check
      _
    $region3: #{squeezeformer_block.15} parent=1 // pred_check_branch
      %13 = sbr.rel (0) target = $region5
    $region4: #{squeezeformer_block.15} parent=1 // pred_region
      _
    $region5: #{squeezeformer_block.15} parent=1 // pred_fallthru
      _
    // Predicated region
    $region6: #{squeezeformer_block.15} parent=1 // pred_check
      _
    $region7: #{squeezeformer_block.15} parent=1 // pred_check_branch
      %15 = sbr.rel (0) target = $region9
    $region8: #{squeezeformer_block.15} parent=1 // pred_region
      _
    $region9: #{squeezeformer_block.15} parent=1 // pred_fallthru
      _
    // Predicated region
    $region10: #{squeezeformer_block.15} parent=1 // pred_check
      _
    $region11: #{squeezeformer_block.15} parent=1 // pred_check_branch
      %17 = sbr.rel (0) target = $region13
    $region12: #{squeezeformer_block.15} parent=1 // pred_region
      _
    $region13: #{squeezeformer_block.15} parent=1 // pred_fallthru
      _
    // Predicated region
    $region14: #{squeezeformer_block.15} parent=1 // pred_check
      _
    $region15: #{squeezeformer_block.15} parent=1 // pred_check_branch
      %19 = sbr.rel (0) target = $region17
    $region16: #{squeezeformer_block.15} parent=1 // pred_region
      _
    $region17: #{squeezeformer_block.15} parent=1 // pred_fallthru
      _
    // Predicated region
    $region18: #{squeezeformer_block.15} parent=1 // pred_check
      _
    $region19: #{squeezeformer_block.15} parent=1 // pred_check_branch
      %21 = sbr.rel (0) target = $region21
    $region20: #{squeezeformer_block.15} parent=1 // pred_region
      _
    $region21: #{squeezeformer_block.15} parent=1 // pred_fallthru
      _
    // Predicated region
    $region22: #{squeezeformer_block.15} parent=1 // pred_check
      _
    $region23: #{squeezeformer_block.15} parent=1 // pred_check_branch
      %23 = sbr.rel (0) target = $region25
    $region24: #{squeezeformer_block.15} parent=1 // pred_region
      _
    $region25: #{squeezeformer_block.15} parent=1 // pred_fallthru
      _
    %v25 = vld [vmem:[%s0] sm:$0xff]
    %v26 = vld [vmem:[%s0 + $0x8] sm:$0xff]
    %v27 = vld [vmem:[%s0 + $0x10] sm:$0xff]
    %v28 = vld [vmem:[%s0 + $0x18] sm:$0xff]
    %v29 = vld [vmem:[%s1] sm:$0xf]
    %v30 = vld [vmem:[%s1 + $0x4] sm:$0xf]
    %v31 = vld [vmem:[%s1 + $0x8] sm:$0xf]
    %v32 = vld [vmem:[%s1 + $0xc] sm:$0xf]
    %v33 = vld [vmem:[%s1 + $0x10] sm:$0xf]
    %v34 = vld [vmem:[%s1 + $0x14] sm:$0xf]
    %v35 = vld [vmem:[%s1 + $0x18] sm:$0xf]
    %v36 = vld [vmem:[%s1 + $0x1c] sm:$0xf]
    %v37 = vld [vmem:[%s1 + $0x20] sm:$0xf]
    %v38 = vld [vmem:[%s1 + $0x24] sm:$0xf]
    %v39 = vld [vmem:[%s1 + $0x28] sm:$0xf]
    %v40 = vld [vmem:[%s1 + $0x2c] sm:$0xf]
    %v41 = vld [vmem:[%s1 + $0x30] sm:$0xf]
    %v42 = vld [vmem:[%s1 + $0x34] sm:$0xf]
    %v43 = vld [vmem:[%s1 + $0x38] sm:$0xf]
    %v44 = vld [vmem:[%s1 + $0x3c] sm:$0xf]
    %v45 = vld [vmem:[%s1 + $0x40] sm:$0xf]
    %v46 = vld [vmem:[%s1 + $0x44] sm:$0xf]
    %v47 = vld [vmem:[%s1 + $0x48] sm:$0xf]
    %v48 = vld [vmem:[%s1 + $0x4c] sm:$0xf]
    %v49 = vld [vmem:[%s1 + $0x50] sm:$0xf]
    %v50 = vld [vmem:[%s1 + $0x54] sm:$0xf]
    %v51 = vld [vmem:[%s1 + $0x58] sm:$0xf]
    %v52 = vld [vmem:[%s1 + $0x5c] sm:$0xf]
    %v53 = vld [vmem:[%s1 + $0x60] sm:$0xf]
    %v54 = vld [vmem:[%s1 + $0x64] sm:$0xf]
    %v55 = vld [vmem:[%s1 + $0x68] sm:$0xf]
    %v56 = vld [vmem:[%s1 + $0x6c] sm:$0xf]
    %v57 = vld [vmem:[%s1 + $0x70] sm:$0xf]
    %v58 = vld [vmem:[%s1 + $0x74] sm:$0xf]
    %v59 = vld [vmem:[%s1 + $0x78] sm:$0xf]
    %v60 = vld [vmem:[%s1 + $0x7c] sm:$0xf]
    %v61 = vld [vmem:[%s2] sm:$0x1]
    %v63 = vlaneseq
    %v64 = vshrl.u32 %v63, 7
    %v65 = vsub.s32 0, %v64
    %v66 = vrot.slane %v61, %v65
    %v72 = vunpack.c.l.b16 %v25
    %v73 = vunpack.c.h.b16 %v25
    %v74 = vunpack.c.l.b16 %v26
    %v75 = vunpack.c.h.b16 %v26
    %v76 = vunpack.c.l.b16 %v27
    %v77 = vunpack.c.h.b16 %v27
    %v78 = vunpack.c.l.b16 %v28
    %v79 = vunpack.c.h.b16 %v28
    %v80 = vpack.c.b16 %v74, %v72
    %v81 = vpack.c.b16 %v75, %v73
    %v82 = vpack.c.b16 %v78, %v76
    %v83 = vpack.c.b16 %v79, %v77
    %v120 = vunpack.c.l.b16 %v29
    %v121 = vunpack.c.l.b16 %v30
    %v122 = vunpack.c.l.b16 %v31
    %v123 = vunpack.c.l.b16 %v32
    %v124 = vunpack.c.l.b16 %v33
    %v125 = vunpack.c.l.b16 %v34
    %v126 = vunpack.c.l.b16 %v35
    %v127 = vunpack.c.l.b16 %v36
    %v128 = vunpack.c.l.b16 %v37
    %v129 = vunpack.c.l.b16 %v38
    %v130 = vunpack.c.l.b16 %v39
    %v131 = vunpack.c.l.b16 %v40
    %v132 = vunpack.c.l.b16 %v41
    %v133 = vunpack.c.l.b16 %v42
    %v134 = vunpack.c.l.b16 %v43
    %v135 = vunpack.c.l.b16 %v44
    %v136 = vunpack.c.l.b16 %v45
    %v137 = vunpack.c.l.b16 %v46
    %v138 = vunpack.c.l.b16 %v47
    %v139 = vunpack.c.l.b16 %v48
    %v140 = vunpack.c.l.b16 %v49
    %v141 = vunpack.c.l.b16 %v50
    %v142 = vunpack.c.l.b16 %v51
    %v143 = vunpack.c.l.b16 %v52
    %v144 = vunpack.c.l.b16 %v53
    %v145 = vunpack.c.l.b16 %v54
    %v146 = vunpack.c.l.b16 %v55
    %v147 = vunpack.c.l.b16 %v56
    %v148 = vunpack.c.l.b16 %v57
    %v149 = vunpack.c.l.b16 %v58
    %v150 = vunpack.c.l.b16 %v59
    %v151 = vunpack.c.l.b16 %v60
    %v152 = vpack.c.b16 %v121, %v120
    %v153 = vpack.c.b16 %v123, %v122
    %v154 = vpack.c.b16 %v125, %v124
    %v155 = vpack.c.b16 %v127, %v126
    %v156 = vpack.c.b16 %v129, %v128
    %v157 = vpack.c.b16 %v131, %v130
    %v158 = vpack.c.b16 %v133, %v132
    %v159 = vpack.c.b16 %v135, %v134
    %v160 = vpack.c.b16 %v137, %v136
    %v161 = vpack.c.b16 %v139, %v138
    %v162 = vpack.c.b16 %v141, %v140
    %v163 = vpack.c.b16 %v143, %v142
    %v164 = vpack.c.b16 %v145, %v144
    %v165 = vpack.c.b16 %v147, %v146
    %v166 = vpack.c.b16 %v149, %v148
    %v167 = vpack.c.b16 %v151, %v150
    %184 = vmatprep.subr.bf16.mxu0 0
    %185 = vmatpush1.bf16.msra.mxu0 %v152
    %186 = vmatprep.subr.bf16.mxu0 0
    %187 = vmatpush1.bf16.msra.mxu0 %v153
    %188 = vmatprep.subr.bf16.mxu0 0
    %189 = vmatpush1.bf16.msra.mxu0 %v154
    %190 = vmatprep.subr.bf16.mxu0 0
    %191 = vmatpush1.bf16.msra.mxu0 %v155
    %192 = vmatprep.subr.bf16.mxu0 0
    %193 = vmatpush1.bf16.msra.mxu0 %v156
    %194 = vmatprep.subr.bf16.mxu0 0
    %195 = vmatpush1.bf16.msra.mxu0 %v157
    %196 = vmatprep.subr.bf16.mxu0 0
    %197 = vmatpush1.bf16.msra.mxu0 %v158
    %198 = vmatprep.subr.bf16.mxu0 0
    %199 = vmatpush1.bf16.msra.mxu0 %v159
    %200 = vmatprep.subr.bf16.mxu0 0
    %201 = vmatpush1.bf16.msra.mxu0 %v160
    %202 = vmatprep.subr.bf16.mxu0 0
    %203 = vmatpush1.bf16.msra.mxu0 %v161
    %204 = vmatprep.subr.bf16.mxu0 0
    %205 = vmatpush1.bf16.msra.mxu0 %v162
    %206 = vmatprep.subr.bf16.mxu0 0
    %207 = vmatpush1.bf16.msra.mxu0 %v163
    %208 = vmatprep.subr.bf16.mxu0 0
    %209 = vmatpush1.bf16.msra.mxu0 %v164
    %210 = vmatprep.subr.bf16.mxu0 0
    %211 = vmatpush1.bf16.msra.mxu0 %v165
    %212 = vmatprep.subr.bf16.mxu0 0
    %213 = vmatpush1.bf16.msra.mxu0 %v166
    %214 = vmatprep.subr.bf16.mxu0 0
    %215 = vmatpush1.bf16.msra.mxu0 %v167
    %216 = vmatprep.mubr.bf16.mxu0 %v81
    %217 = vmatmul.mubr.bf16.gmra.mrb[0].mxu0 %v80
    %v218 = vpop.f32.mrb[0].mxu0
    %v219 = vadd.f32 %v66, %v218
    %v220 = vpop.f32.mrb[0].mxu0
    %v221 = vpop.f32.mrb[0].mxu0
    %v222 = vadd.f32 %v66, %v221
    %v223 = vpop.f32.mrb[0].mxu0
    %224 = vmatprep.mubr.bf16.mxu0 %v83
    %225 = vmatmul.mubr.bf16.gmra.mrb[0].mxu0 %v82
    %v226 = vpop.f32.mrb[0].mxu0
    %v227 = vadd.f32 %v66, %v226
    %v228 = vpop.f32.mrb[0].mxu0
    %v229 = vpop.f32.mrb[0].mxu0
    %v230 = vadd.f32 %v66, %v229
    %v231 = vpop.f32.mrb[0].mxu0
    %232 = vdwg.mxu0
    %v233 = vld [vmem:[%s3] sm:$0xff]
    %v234 = vld [vmem:[%s3 + $0x8] sm:$0xff]
    %v235 = vld [vmem:[%s3 + $0x10] sm:$0xff]
    %v236 = vld [vmem:[%s3 + $0x18] sm:$0xff]
    %v237 = vadd.f32 %v219, %v233
    %v238 = vadd.f32 %v222, %v234
    %v239 = vadd.f32 %v227, %v235
    %v240 = vadd.f32 %v230, %v236
    %vm241 = vcmask 523264
    %v242 = vsel %vm241, %v237, 0.0
    %243 = vadd.xlane.f32.xlu0 %v242
    %v244 = vpop.xlane.xlu0 %243
    %v245 = vsel %vm241, %v238, 0.0
    %246 = vadd.xlane.f32.xlu0 %v245
    %v247 = vpop.xlane.xlu0 %246
    %v248 = vsel %vm241, %v239, 0.0
    %249 = vadd.xlane.f32.xlu0 %v248
    %v250 = vpop.xlane.xlu0 %249
    %v251 = vsel %vm241, %v240, 0.0
    %252 = vadd.xlane.f32.xlu0 %v251
    %v253 = vpop.xlane.xlu0 %252
    %v254 = vrcp.pop 64.0
    %v255 = vmul.f32 %v244, %v254
    %v256 = vmul.f32 %v247, %v254
    %v257 = vmul.f32 %v250, %v254
    %v258 = vmul.f32 %v253, %v254
    %v259 = vsub.f32 %v237, %v255
    %v260 = vsub.f32 %v238, %v256
    %v261 = vsub.f32 %v239, %v257
    %v262 = vsub.f32 %v240, %v258
    %v263 = vmul.f32 %v259, %v259
    %v264 = vmul.f32 %v260, %v260
    %v265 = vmul.f32 %v261, %v261
    %v266 = vmul.f32 %v262, %v262
    %v267 = vsel %vm241, %v263, 0.0
    %268 = vadd.xlane.f32.xlu0 %v267
    %v269 = vpop.xlane.xlu0 %268
    %v270 = vsel %vm241, %v264, 0.0
    %271 = vadd.xlane.f32.xlu0 %v270
    %v272 = vpop.xlane.xlu0 %271
    %v273 = vsel %vm241, %v265, 0.0
    %274 = vadd.xlane.f32.xlu0 %v273
    %v275 = vpop.xlane.xlu0 %274
    %v276 = vsel %vm241, %v266, 0.0
    %277 = vadd.xlane.f32.xlu0 %v276
    %v278 = vpop.xlane.xlu0 %277
    %v279 = vmul.f32 %v269, %v254
    %v280 = vmul.f32 %v272, %v254
    %v281 = vmul.f32 %v275, %v254
    %v282 = vmul.f32 %v278, %v254
    %v283 = vadd.f32 %v279, 1e-05
    %v284 = vadd.f32 %v280, 1e-05
    %v285 = vadd.f32 %v281, 1e-05
    %v286 = vadd.f32 %v282, 1e-05
    %v287 = vrsqrt.pop %v283
    %v288 = vrsqrt.pop %v284
    %v289 = vrsqrt.pop %v285
    %v290 = vrsqrt.pop %v286
    %v291 = vmul.f32 %v259, %v287
    %v292 = vmul.f32 %v260, %v288
    %v293 = vmul.f32 %v261, %v289
    %v294 = vmul.f32 %v262, %v290
    %v295 = vld [vmem:[%s4] sm:$0x1]
    %v297 = vlaneseq
    %v298 = vshrl.u32 %v297, 7
    %v299 = vsub.s32 0, %v298
    %v300 = vrot.slane %v295, %v299
    %v302 = vmul.f32 %v291, %v300
    %v303 = vmul.f32 %v292, %v300
    %v304 = vmul.f32 %v293, %v300
    %v305 = vmul.f32 %v294, %v300
    %v306 = vld [vmem:[%s5] sm:$0x1]
    %v308 = vlaneseq
    %v309 = vshrl.u32 %v308, 7
    %v310 = vsub.s32 0, %v309
    %v311 = vrot.slane %v306, %v310
    %v313 = vadd.f32 %v302, %v311
    %v314 = vadd.f32 %v303, %v311
    %v315 = vadd.f32 %v304, %v311
    %v316 = vadd.f32 %v305, %v311
    %317 = vst.msk [vmem:[#allocation2] sm:$0xff] %vm241, %v313
    %318 = vst.msk [vmem:[#allocation2 + $0x8] sm:$0xff] %vm241, %v314
    %319 = vst.msk [vmem:[#allocation2 + $0x10] sm:$0xff] %vm241, %v315
    %320 = vst.msk [vmem:[#allocation2 + $0x18] sm:$0xff] %vm241, %v316
    // Predicated region
    $region26: #{squeezeformer_block.15} parent=1 // pred_check
      _
    $region27: #{squeezeformer_block.15} parent=1 // pred_check_branch
      %322 = sbr.rel (0) target = $region29
    $region28: #{squeezeformer_block.15} parent=1 // pred_region
      %s324 = ssub.s32 512, 512
      %325 = vsyncadd [#allocation3], %s324
      %s326 = sshll.u32 [#allocation2], 4
      %s327 = int_to_ptr.vmem [resolvable:$true] %s326
      %332 = dma.vmem_to_hbm [thread:$0]  %s327, 512, %s6, [#allocation3], 128, 128, 8
    $region29: #{squeezeformer_block.15} parent=1 // pred_fallthru
      _
    // Predicated region
    $region30: #{squeezeformer_block.15} parent=1 // pred_check
      _
    $region31: #{squeezeformer_block.15} parent=1 // pred_check_branch
      %334 = sbr.rel (0) target = $region33
    $region32: #{squeezeformer_block.15} parent=1 // pred_region
      %335 = dma.done [#allocation3], 512
    $region33: #{squeezeformer_block.15} parent=1 // pred_fallthru
      _
    %336 = vsyncpa [#allocation3], 1

// kernel: squeezeformer_block.13
$region0: #{squeezeformer_block.13}
  #allocation0 [shape = 'u32[]', space=smem, size = 0x4, offset = 0x4, fixed_abs, tag = 'smem constant byte address 0x4 - core index']
  #allocation1 [shape = 'u32[144,128]{1,0:T(1,128)}', space=vmem, size = 0x12000, scoped, tag = 'internal scratch']
  %s0 = inlined_call_operand.vmem [shape: f32[2,16,64], index: 0, kind: input, shape index: {}]
  %s1 = inlined_call_operand.vmem [shape: f32[2,16,1], index: 1, kind: input, shape index: {}]
  %s2 = inlined_call_operand.vmem [shape: bf16[64,128], index: 2, kind: input, shape index: {}]
  %s3 = inlined_call_operand.vmem [shape: f32[1,128], index: 3, kind: input, shape index: {}]
  %s4 = inlined_call_operand.vmem [shape: f32[7,64], index: 4, kind: input, shape index: {}]
  %s5 = inlined_call_operand.vmem [shape: f32[1,64], index: 5, kind: input, shape index: {}]
  %s6 = inlined_call_operand.vmem [shape: f32[1,64], index: 6, kind: input, shape index: {}]
  %s7 = inlined_call_operand.vmem [shape: bf16[64,64], index: 7, kind: input, shape index: {}]
  %s8 = inlined_call_operand.vmem [shape: f32[1,64], index: 8, kind: input, shape index: {}]
  %s9 = inlined_call_operand.vmem [shape: f32[1,64], index: 9, kind: input, shape index: {}]
  %s10 = inlined_call_operand.vmem [shape: f32[1,64], index: 10, kind: input, shape index: {}]
  %s11 = inlined_call_operand.vmem [shape: f32[2,16,64], index: 11, kind: output, shape index: {}]
  %s12 = sld [smem:[#allocation0]]
  $region77: #{squeezeformer_block.13} parent=0
    _
  %s14 = ssub.s32 1, %s12
  %s15 = scalar_select 0, %s14, %s12
  loop: start=0, step=1, limit=4
  $region2: #{squeezeformer_block.13} parent=0 // loop_pre_header
    _
  $region3: #{squeezeformer_block.13} parent=0 // loop_header
    %s17 = sphi 0, %s21
    %p18 = scmp.ge.s32.totalorder %s17, 4
    %s27 = sphi 0, %s29
    %s30 = sphi 0, %s27
    %s31 = sphi 0, %s30
    %s47 = sphi 0, %s31
    %s53 = sphi 0, %s55
    %s56 = sphi 0, %s53
    %s57 = sphi 0, %s56
    %s73 = sphi 0, %s57
    %s77 = sphi 0, %s77
    %s79 = sphi 0, %s77
    %s80 = sphi 0, %s79
    %s94 = sphi 0, %s80
    %s98 = sphi 0, %s98
    %s100 = sphi 0, %s98
    %s101 = sphi 0, %s100
    %s115 = sphi 0, %s101
    %s119 = sphi 0, %s119
    %s121 = sphi 0, %s119
    %s122 = sphi 0, %s121
    %s136 = sphi 0, %s122
    %s140 = sphi 0, %s140
    %s142 = sphi 0, %s140
    %s143 = sphi 0, %s142
    %s157 = sphi 0, %s143
    %s161 = sphi 0, %s161
    %s163 = sphi 0, %s161
    %s164 = sphi 0, %s163
    %s178 = sphi 0, %s164
    %s182 = sphi 0, %s182
    %s184 = sphi 0, %s182
    %s185 = sphi 0, %s184
    %s199 = sphi 0, %s185
    %s203 = sphi 0, %s203
    %s205 = sphi 0, %s203
    %s206 = sphi 0, %s205
    %s220 = sphi 0, %s206
    %s224 = sphi 0, %s224
    %s226 = sphi 0, %s224
    %s227 = sphi 0, %s226
    %s241 = sphi 0, %s227
    %s245 = sphi 0, %s245
    %s247 = sphi 0, %s245
    %s248 = sphi 0, %s247
    %s262 = sphi 0, %s248
    %s268 = sphi 0, %s270
    %s271 = sphi 0, %s268
    %s272 = sphi 0, %s271
    %s288 = sphi 0, %s272
  $region4: #{squeezeformer_block.13} parent=0 // loop_header_branch
    %20 = sbr.rel (%p18) target = $region8
  $region5: #{squeezeformer_block.13} parent=0 // loop_body
    %s22 = ssub.s32 %s17, 1
    %s23 = ssub.s32 %s17, 2
    %s24 = sadd.s32 %s17, 1
    %s25 = ssub.s32 %s17, %s24
    %p26 = scmp.eq.s32.totalorder %s25, 0
    %s28 = sadd.s32 %s27, 1
    %s29 = scalar_select %p26, %s27, %s28
    %p32 = pneg %p26
    %p33 = scmp.eq.s32.totalorder %s17, 1
    %p34 = por %p32, %p33
    %p35 = scmp.ne.s32.totalorder %s27, %s30
    %p36 = scmp.eq.s32.totalorder %s17, 0
    %p37 = por %p35, %p36
    %p38 = scmp.ne.s32.totalorder %s27, %s30
    %p39 = scmp.eq.s32.totalorder %s22, 1
    %p40 = por %p38, %p39
    %p41 = scmp.ne.s32.totalorder %s30, %s31
    %p42 = scmp.eq.s32.totalorder %s22, 0
    %p43 = por %p41, %p42
    %p44 = scmp.ne.s32.totalorder %s30, %s31
    %p45 = scmp.eq.s32.totalorder %s23, 1
    %p46 = por %p44, %p45
    %p48 = scmp.ne.s32.totalorder %s31, %s47
    %p49 = scmp.eq.s32.totalorder %s23, 0
    %p50 = por %p48, %p49
    %s51 = ssub.s32 %s17, %s24
    %p52 = scmp.eq.s32.totalorder %s51, 0
    %s54 = sadd.s32 %s53, 1
    %s55 = scalar_select %p52, %s53, %s54
    %p58 = pneg %p52
    %p59 = scmp.eq.s32.totalorder %s17, 1
    %p60 = por %p58, %p59
    %p61 = scmp.ne.s32.totalorder %s53, %s56
    %p62 = scmp.eq.s32.totalorder %s17, 0
    %p63 = por %p61, %p62
    %p64 = scmp.ne.s32.totalorder %s53, %s56
    %p65 = scmp.eq.s32.totalorder %s22, 1
    %p66 = por %p64, %p65
    %p67 = scmp.ne.s32.totalorder %s56, %s57
    %p68 = scmp.eq.s32.totalorder %s22, 0
    %p69 = por %p67, %p68
    %p70 = scmp.ne.s32.totalorder %s56, %s57
    %p71 = scmp.eq.s32.totalorder %s23, 1
    %p72 = por %p70, %p71
    %p74 = scmp.ne.s32.totalorder %s57, %s73
    %p75 = scmp.eq.s32.totalorder %s23, 0
    %p76 = por %p74, %p75
    %s78 = sadd.s32 %s77, 1
    %p81 = scmp.eq.s32.totalorder %s17, 1
    %p82 = scmp.ne.s32.totalorder %s77, %s79
    %p83 = scmp.eq.s32.totalorder %s17, 0
    %p84 = por %p82, %p83
    %p85 = scmp.ne.s32.totalorder %s77, %s79
    %p86 = scmp.eq.s32.totalorder %s22, 1
    %p87 = por %p85, %p86
    %p88 = scmp.ne.s32.totalorder %s79, %s80
    %p89 = scmp.eq.s32.totalorder %s22, 0
    %p90 = por %p88, %p89
    %p91 = scmp.ne.s32.totalorder %s79, %s80
    %p92 = scmp.eq.s32.totalorder %s23, 1
    %p93 = por %p91, %p92
    %p95 = scmp.ne.s32.totalorder %s80, %s94
    %p96 = scmp.eq.s32.totalorder %s23, 0
    %p97 = por %p95, %p96
    %s99 = sadd.s32 %s98, 1
    %p102 = scmp.eq.s32.totalorder %s17, 1
    %p103 = scmp.ne.s32.totalorder %s98, %s100
    %p104 = scmp.eq.s32.totalorder %s17, 0
    %p105 = por %p103, %p104
    %p106 = scmp.ne.s32.totalorder %s98, %s100
    %p107 = scmp.eq.s32.totalorder %s22, 1
    %p108 = por %p106, %p107
    %p109 = scmp.ne.s32.totalorder %s100, %s101
    %p110 = scmp.eq.s32.totalorder %s22, 0
    %p111 = por %p109, %p110
    %p112 = scmp.ne.s32.totalorder %s100, %s101
    %p113 = scmp.eq.s32.totalorder %s23, 1
    %p114 = por %p112, %p113
    %p116 = scmp.ne.s32.totalorder %s101, %s115
    %p117 = scmp.eq.s32.totalorder %s23, 0
    %p118 = por %p116, %p117
    %s120 = sadd.s32 %s119, 1
    %p123 = scmp.eq.s32.totalorder %s17, 1
    %p124 = scmp.ne.s32.totalorder %s119, %s121
    %p125 = scmp.eq.s32.totalorder %s17, 0
    %p126 = por %p124, %p125
    %p127 = scmp.ne.s32.totalorder %s119, %s121
    %p128 = scmp.eq.s32.totalorder %s22, 1
    %p129 = por %p127, %p128
    %p130 = scmp.ne.s32.totalorder %s121, %s122
    %p131 = scmp.eq.s32.totalorder %s22, 0
    %p132 = por %p130, %p131
    %p133 = scmp.ne.s32.totalorder %s121, %s122
    %p134 = scmp.eq.s32.totalorder %s23, 1
    %p135 = por %p133, %p134
    %p137 = scmp.ne.s32.totalorder %s122, %s136
    %p138 = scmp.eq.s32.totalorder %s23, 0
    %p139 = por %p137, %p138
    %s141 = sadd.s32 %s140, 1
    %p144 = scmp.eq.s32.totalorder %s17, 1
    %p145 = scmp.ne.s32.totalorder %s140, %s142
    %p146 = scmp.eq.s32.totalorder %s17, 0
    %p147 = por %p145, %p146
    %p148 = scmp.ne.s32.totalorder %s140, %s142
    %p149 = scmp.eq.s32.totalorder %s22, 1
    %p150 = por %p148, %p149
    %p151 = scmp.ne.s32.totalorder %s142, %s143
    %p152 = scmp.eq.s32.totalorder %s22, 0
    %p153 = por %p151, %p152
    %p154 = scmp.ne.s32.totalorder %s142, %s143
    %p155 = scmp.eq.s32.totalorder %s23, 1
    %p156 = por %p154, %p155
    %p158 = scmp.ne.s32.totalorder %s143, %s157
    %p159 = scmp.eq.s32.totalorder %s23, 0
    %p160 = por %p158, %p159
    %s162 = sadd.s32 %s161, 1
    %p165 = scmp.eq.s32.totalorder %s17, 1
    %p166 = scmp.ne.s32.totalorder %s161, %s163
    %p167 = scmp.eq.s32.totalorder %s17, 0
    %p168 = por %p166, %p167
    %p169 = scmp.ne.s32.totalorder %s161, %s163
    %p170 = scmp.eq.s32.totalorder %s22, 1
    %p171 = por %p169, %p170
    %p172 = scmp.ne.s32.totalorder %s163, %s164
    %p173 = scmp.eq.s32.totalorder %s22, 0
    %p174 = por %p172, %p173
    %p175 = scmp.ne.s32.totalorder %s163, %s164
    %p176 = scmp.eq.s32.totalorder %s23, 1
    %p177 = por %p175, %p176
    %p179 = scmp.ne.s32.totalorder %s164, %s178
    %p180 = scmp.eq.s32.totalorder %s23, 0
    %p181 = por %p179, %p180
    %s183 = sadd.s32 %s182, 1
    %p186 = scmp.eq.s32.totalorder %s17, 1
    %p187 = scmp.ne.s32.totalorder %s182, %s184
    %p188 = scmp.eq.s32.totalorder %s17, 0
    %p189 = por %p187, %p188
    %p190 = scmp.ne.s32.totalorder %s182, %s184
    %p191 = scmp.eq.s32.totalorder %s22, 1
    %p192 = por %p190, %p191
    %p193 = scmp.ne.s32.totalorder %s184, %s185
    %p194 = scmp.eq.s32.totalorder %s22, 0
    %p195 = por %p193, %p194
    %p196 = scmp.ne.s32.totalorder %s184, %s185
    %p197 = scmp.eq.s32.totalorder %s23, 1
    %p198 = por %p196, %p197
    %p200 = scmp.ne.s32.totalorder %s185, %s199
    %p201 = scmp.eq.s32.totalorder %s23, 0
    %p202 = por %p200, %p201
    %s204 = sadd.s32 %s203, 1
    %p207 = scmp.eq.s32.totalorder %s17, 1
    %p208 = scmp.ne.s32.totalorder %s203, %s205
    %p209 = scmp.eq.s32.totalorder %s17, 0
    %p210 = por %p208, %p209
    %p211 = scmp.ne.s32.totalorder %s203, %s205
    %p212 = scmp.eq.s32.totalorder %s22, 1
    %p213 = por %p211, %p212
    %p214 = scmp.ne.s32.totalorder %s205, %s206
    %p215 = scmp.eq.s32.totalorder %s22, 0
    %p216 = por %p214, %p215
    %p217 = scmp.ne.s32.totalorder %s205, %s206
    %p218 = scmp.eq.s32.totalorder %s23, 1
    %p219 = por %p217, %p218
    %p221 = scmp.ne.s32.totalorder %s206, %s220
    %p222 = scmp.eq.s32.totalorder %s23, 0
    %p223 = por %p221, %p222
    %s225 = sadd.s32 %s224, 1
    %p228 = scmp.eq.s32.totalorder %s17, 1
    %p229 = scmp.ne.s32.totalorder %s224, %s226
    %p230 = scmp.eq.s32.totalorder %s17, 0
    %p231 = por %p229, %p230
    %p232 = scmp.ne.s32.totalorder %s224, %s226
    %p233 = scmp.eq.s32.totalorder %s22, 1
    %p234 = por %p232, %p233
    %p235 = scmp.ne.s32.totalorder %s226, %s227
    %p236 = scmp.eq.s32.totalorder %s22, 0
    %p237 = por %p235, %p236
    %p238 = scmp.ne.s32.totalorder %s226, %s227
    %p239 = scmp.eq.s32.totalorder %s23, 1
    %p240 = por %p238, %p239
    %p242 = scmp.ne.s32.totalorder %s227, %s241
    %p243 = scmp.eq.s32.totalorder %s23, 0
    %p244 = por %p242, %p243
    %s246 = sadd.s32 %s245, 1
    %p249 = scmp.eq.s32.totalorder %s17, 1
    %p250 = scmp.ne.s32.totalorder %s245, %s247
    %p251 = scmp.eq.s32.totalorder %s17, 0
    %p252 = por %p250, %p251
    %p253 = scmp.ne.s32.totalorder %s245, %s247
    %p254 = scmp.eq.s32.totalorder %s22, 1
    %p255 = por %p253, %p254
    %p256 = scmp.ne.s32.totalorder %s247, %s248
    %p257 = scmp.eq.s32.totalorder %s22, 0
    %p258 = por %p256, %p257
    %p259 = scmp.ne.s32.totalorder %s247, %s248
    %p260 = scmp.eq.s32.totalorder %s23, 1
    %p261 = por %p259, %p260
    %p263 = scmp.ne.s32.totalorder %s248, %s262
    %p264 = scmp.eq.s32.totalorder %s23, 0
    %p265 = por %p263, %p264
    %s266 = ssub.s32 %s17, %s24
    %p267 = scmp.eq.s32.totalorder %s266, 0
    %s269 = sadd.s32 %s268, 1
    %s270 = scalar_select %p267, %s268, %s269
    %p273 = pneg %p267
    %p274 = scmp.eq.s32.totalorder %s17, 1
    %p275 = por %p273, %p274
    %p276 = scmp.ne.s32.totalorder %s268, %s271
    %p277 = scmp.eq.s32.totalorder %s17, 0
    %p278 = por %p276, %p277
    %p279 = scmp.ne.s32.totalorder %s268, %s271
    %p280 = scmp.eq.s32.totalorder %s22, 1
    %p281 = por %p279, %p280
    %p282 = scmp.ne.s32.totalorder %s271, %s272
    %p283 = scmp.eq.s32.totalorder %s22, 0
    %p284 = por %p282, %p283
    %p285 = scmp.ne.s32.totalorder %s271, %s272
    %p286 = scmp.eq.s32.totalorder %s23, 1
    %p287 = por %p285, %p286
    %p289 = scmp.ne.s32.totalorder %s272, %s288
    %p290 = scmp.eq.s32.totalorder %s23, 0
    %p291 = por %p289, %p290
    %p292 = scmp.le.s32.totalorder 1, %s17
    %p293 = scmp.lt.s32.totalorder %s17, 3
    %p294 = pnand %p292, %p293
    %p295 = pneg %p294
    // Predicated region
    $region9: #{squeezeformer_block.13} parent=5 // pred_check
      _
    $region10: #{squeezeformer_block.13} parent=5 // pred_check_branch
      %297 = sbr.rel (%p294) target = $region12
    $region11: #{squeezeformer_block.13} parent=5 // pred_region
      %s298 = ssub.s32 %s17, 1
      // Predicated region
      $region13: #{squeezeformer_block.13} parent=11 // pred_check
        %p299 = pneg %p90
      $region14: #{squeezeformer_block.13} parent=11 // pred_check_branch
        %301 = sbr.rel (%p299) target = $region16
      $region15: #{squeezeformer_block.13} parent=11 // pred_region
        _
      $region16: #{squeezeformer_block.13} parent=11 // pred_fallthru
        _
      // Predicated region
      $region17: #{squeezeformer_block.13} parent=11 // pred_check
        %p302 = pneg %p111
      $region18: #{squeezeformer_block.13} parent=11 // pred_check_branch
        %304 = sbr.rel (%p302) target = $region20
      $region19: #{squeezeformer_block.13} parent=11 // pred_region
        _
      $region20: #{squeezeformer_block.13} parent=11 // pred_fallthru
        _
      // Predicated region
      $region21: #{squeezeformer_block.13} parent=11 // pred_check
        %p305 = pneg %p132
      $region22: #{squeezeformer_block.13} parent=11 // pred_check_branch
        %307 = sbr.rel (%p305) target = $region24
      $region23: #{squeezeformer_block.13} parent=11 // pred_region
        _
      $region24: #{squeezeformer_block.13} parent=11 // pred_fallthru
        _
      // Predicated region
      $region25: #{squeezeformer_block.13} parent=11 // pred_check
        %p308 = pneg %p153
      $region26: #{squeezeformer_block.13} parent=11 // pred_check_branch
        %310 = sbr.rel (%p308) target = $region28
      $region27: #{squeezeformer_block.13} parent=11 // pred_region
        _
      $region28: #{squeezeformer_block.13} parent=11 // pred_fallthru
        _
      // Predicated region
      $region29: #{squeezeformer_block.13} parent=11 // pred_check
        %p311 = pneg %p174
      $region30: #{squeezeformer_block.13} parent=11 // pred_check_branch
        %313 = sbr.rel (%p311) target = $region32
      $region31: #{squeezeformer_block.13} parent=11 // pred_region
        _
      $region32: #{squeezeformer_block.13} parent=11 // pred_fallthru
        _
      // Predicated region
      $region33: #{squeezeformer_block.13} parent=11 // pred_check
        %p314 = pneg %p195
      $region34: #{squeezeformer_block.13} parent=11 // pred_check_branch
        %316 = sbr.rel (%p314) target = $region36
      $region35: #{squeezeformer_block.13} parent=11 // pred_region
        _
      $region36: #{squeezeformer_block.13} parent=11 // pred_fallthru
        _
      // Predicated region
      $region37: #{squeezeformer_block.13} parent=11 // pred_check
        %p317 = pneg %p216
      $region38: #{squeezeformer_block.13} parent=11 // pred_check_branch
        %319 = sbr.rel (%p317) target = $region40
      $region39: #{squeezeformer_block.13} parent=11 // pred_region
        _
      $region40: #{squeezeformer_block.13} parent=11 // pred_fallthru
        _
      // Predicated region
      $region41: #{squeezeformer_block.13} parent=11 // pred_check
        %p320 = pneg %p237
      $region42: #{squeezeformer_block.13} parent=11 // pred_check_branch
        %322 = sbr.rel (%p320) target = $region44
      $region43: #{squeezeformer_block.13} parent=11 // pred_region
        _
      $region44: #{squeezeformer_block.13} parent=11 // pred_fallthru
        _
      // Predicated region
      $region45: #{squeezeformer_block.13} parent=11 // pred_check
        %p323 = pneg %p258
      $region46: #{squeezeformer_block.13} parent=11 // pred_check_branch
        %325 = sbr.rel (%p323) target = $region48
      $region47: #{squeezeformer_block.13} parent=11 // pred_region
        _
      $region48: #{squeezeformer_block.13} parent=11 // pred_fallthru
        _
    $region12: #{squeezeformer_block.13} parent=5 // pred_fallthru
      _
    %p326 = scmp.lt.s32.totalorder %s17, 2
    // Predicated region
    $region49: #{squeezeformer_block.13} parent=5 // pred_check
      %p327 = pneg %p326
    $region50: #{squeezeformer_block.13} parent=5 // pred_check_branch
      %329 = sbr.rel (%p327) target = $region52
    $region51: #{squeezeformer_block.13} parent=5 // pred_region
      // Predicated region
      $region53: #{squeezeformer_block.13} parent=51 // pred_check
        %p330 = pneg %p37
      $region54: #{squeezeformer_block.13} parent=51 // pred_check_branch
        %332 = sbr.rel (%p330) target = $region56
      $region55: #{squeezeformer_block.13} parent=51 // pred_region
        %p333 = scmp.lt.s32.totalorder %s17, 1
        %s334 = scalar_select %p333, %s17, 1
        %s335 = smul.addr %s334, 2
        %s336 = smul.addr %s335, 8
        %s337 = scalar_lea.vmem %s0, %s336
      $region56: #{squeezeformer_block.13} parent=51 // pred_fallthru
        _
      // Predicated region
      $region57: #{squeezeformer_block.13} parent=51 // pred_check
        %p338 = pneg %p63
      $region58: #{squeezeformer_block.13} parent=51 // pred_check_branch
        %340 = sbr.rel (%p338) target = $region60
      $region59: #{squeezeformer_block.13} parent=51 // pred_region
        %p341 = scmp.lt.s32.totalorder %s17, 1
        %s342 = scalar_select %p341, %s17, 1
        %s343 = smul.addr %s342, 2
        %s344 = smul.addr %s343, 8
        %s345 = scalar_lea.vmem %s1, %s344
      $region60: #{squeezeformer_block.13} parent=51 // pred_fallthru
        _
    $region52: #{squeezeformer_block.13} parent=5 // pred_fallthru
      _
    %p346 = scmp.le.s32.totalorder 1, %s17
    %p347 = scmp.lt.s32.totalorder %s17, 3
    %p348 = pnand %p346, %p347
    %p349 = pneg %p348
    // Predicated region
    $region61: #{squeezeformer_block.13} parent=5 // pred_check
      _
    $region62: #{squeezeformer_block.13} parent=5 // pred_check_branch
      %351 = sbr.rel (%p348) target = $region64
    $region63: #{squeezeformer_block.13} parent=5 // pred_region
      %s352 = ssub.s32 %s17, 1
      %p353 = scmp.lt.s32.totalorder %s22, 1
      %s354 = scalar_select %p353, %s22, 1
      %s355 = smul.addr %s354, 2
      %s356 = smul.addr %s355, 8
      %s357 = scalar_lea.vmem %s0, %s356
      %p358 = pneg %p43
      %p359 = pneg %p40
      %p360 = scmp.lt.s32.totalorder %s22, 1
      %s361 = scalar_select %p360, %s22, 1
      %s362 = smul.addr %s361, 2
      %s363 = smul.addr %s362, 8
      %s364 = scalar_lea.vmem %s1, %s363
      %p365 = pneg %p69
      %p366 = pneg %p66
      %p367 = pneg %p90
      %p368 = pneg %p87
      %p369 = pneg %p111
      %p370 = pneg %p108
      %p371 = pneg %p132
      %p372 = pneg %p129
      %p373 = pneg %p153
      %p374 = pneg %p150
      %p375 = pneg %p174
      %p376 = pneg %p171
      %p377 = pneg %p195
      %p378 = pneg %p192
      %p379 = pneg %p216
      %p380 = pneg %p213
      %p381 = pneg %p237
      %p382 = pneg %p234
      %p383 = pneg %p258
      %p384 = pneg %p255
      %p385 = pneg %p284
      %p386 = pneg %p281
      %p387 = scmp.lt.s32.totalorder %s22, 1
      %s388 = scalar_select %p387, %s22, 1
      %s389 = smul.addr %s388, 2
      %s390 = smul.addr %s389, 8
      %s391 = scalar_lea.vmem %s11, %s390
      %p392 = scmp.lt.s32.totalorder %s22, 1
      %s393 = scalar_select %p392, %s22, 1
      %s394 = smul.addr %s393, 2
      %s395 = smul.addr %s394, 8
      %s396 = scalar_lea.vmem %s0, %s395
      %p397 = scmp.lt.s32.totalorder %s22, 1
      %s398 = scalar_select %p397, %s22, 1
      %s399 = smul.addr %s398, 2
      %s400 = smul.addr %s399, 8
      %s401 = scalar_lea.vmem %s1, %s400
      %p402 = scmp.lt.s32.totalorder %s22, 1
      %s403 = scalar_select %p402, %s22, 1
      %s404 = smul.addr %s403, 2
      %s405 = smul.addr %s404, 8
      %s406 = scalar_lea.vmem %s11, %s405
      %v408 = vld [vmem:[%s396] sm:$0xff]
      %v409 = vld [vmem:[%s396 + $0x8] sm:$0xff]
      %v410 = vld [vmem:[%s401] sm:$0xff]
      %v411 = vld [vmem:[%s401 + $0x8] sm:$0xff]
      %413 = vset.pattern.permute.xlu0 0
      %414 = vperm.xlu0 %413, %v410
      %v415 = vpop.permute.xlu0 %414
      %418 = vset.pattern.permute.xlu0 0
      %419 = vperm.xlu0 %418, %v411
      %v420 = vpop.permute.xlu0 %419
      %v422 = vmul.f32 %v408, %v415
      %v423 = vmul.f32 %v409, %v420
      %v424 = vpack.c.bf16 %v423, %v422
      %v425 = vld [vmem:[%s2] sm:$0xf]
      %v426 = vld [vmem:[%s2 + $0x4] sm:$0xf]
      %v427 = vld [vmem:[%s2 + $0x8] sm:$0xf]
      %v428 = vld [vmem:[%s2 + $0xc] sm:$0xf]
      %v429 = vld [vmem:[%s2 + $0x10] sm:$0xf]
      %v430 = vld [vmem:[%s2 + $0x14] sm:$0xf]
      %v431 = vld [vmem:[%s2 + $0x18] sm:$0xf]
      %v432 = vld [vmem:[%s2 + $0x1c] sm:$0xf]
      %v433 = vld [vmem:[%s3] sm:$0x1]
      %v435 = vlaneseq
      %v436 = vshrl.u32 %v435, 7
      %v437 = vsub.s32 0, %v436
      %v438 = vrot.slane %v433, %v437
      %v448 = vunpack.c.l.b16 %v425
      %v449 = vunpack.c.l.b16 %v426
      %v450 = vunpack.c.l.b16 %v427
      %v451 = vunpack.c.l.b16 %v428
      %v452 = vunpack.c.l.b16 %v429
      %v453 = vunpack.c.l.b16 %v430
      %v454 = vunpack.c.l.b16 %v431
      %v455 = vunpack.c.l.b16 %v432
      %v456 = vpack.c.b16 %v449, %v448
      %v457 = vpack.c.b16 %v451, %v450
      %v458 = vpack.c.b16 %v453, %v452
      %v459 = vpack.c.b16 %v455, %v454
      %vm464 = vcmask 523264
      %v466 = vsel %vm464, %v424, 0
      %468 = vmatprep.subr.bf16.mxu0 0
      %469 = vmatpush1.bf16.msra.mxu0 %v456
      %470 = vmatprep.subr.bf16.mxu0 0
      %471 = vmatpush1.bf16.msra.mxu0 %v457
      %472 = vmatprep.subr.bf16.mxu0 0
      %473 = vmatpush1.bf16.msra.mxu0 %v458
      %474 = vmatprep.subr.bf16.mxu0 0
      %475 = vmatpush1.bf16.msra.mxu0 %v459
      %476 = vmatprep.subr.bf16.mxu0 0
      %477 = vmatpush1.bf16.msra.mxu0 0
      %478 = vmatprep.subr.bf16.mxu0 0
      %479 = vmatpush1.bf16.msra.mxu0 0
      %480 = vmatprep.subr.bf16.mxu0 0
      %481 = vmatpush1.bf16.msra.mxu0 0
      %482 = vmatprep.subr.bf16.mxu0 0
      %483 = vmatpush1.bf16.msra.mxu0 0
      %484 = vmatprep.subr.bf16.mxu0 0
      %485 = vmatpush1.bf16.msra.mxu0 0
      %486 = vmatprep.subr.bf16.mxu0 0
      %487 = vmatpush1.bf16.msra.mxu0 0
      %488 = vmatprep.subr.bf16.mxu0 0
      %489 = vmatpush1.bf16.msra.mxu0 0
      %490 = vmatprep.subr.bf16.mxu0 0
      %491 = vmatpush1.bf16.msra.mxu0 0
      %492 = vmatprep.subr.bf16.mxu0 0
      %493 = vmatpush1.bf16.msra.mxu0 0
      %494 = vmatprep.subr.bf16.mxu0 0
      %495 = vmatpush1.bf16.msra.mxu0 0
      %496 = vmatprep.subr.bf16.mxu0 0
      %497 = vmatpush1.bf16.msra.mxu0 0
      %498 = vmatprep.subr.bf16.mxu0 0
      %499 = vmatpush1.bf16.msra.mxu0 0
      %500 = vmatprep.mubr.bf16.mxu0 0
      %501 = vmatmul.mubr.bf16.gmra.mrb[0].mxu0 %v466
      %v502 = vpop.f32.mrb[0].mxu0
      %v503 = vadd.f32 %v438, %v502
      %v504 = vpop.f32.mrb[0].mxu0
      %v505 = vpop.f32.mrb[0].mxu0
      %v506 = vadd.f32 %v438, %v505
      %v507 = vpop.f32.mrb[0].mxu0
      %508 = vdwg.mxu0
      %v509 = vxor.u32 %v503, 2147483648
      %v510 = vxor.u32 %v506, 2147483648
      %v511 = vmul.f32 %v509, 1.442695
      %v512 = vpow.pop %v511
      %v513 = vmul.f32 %v510, 1.442695
      %v514 = vpow.pop %v513
      %v515 = vadd.f32 %v512, 1.0
      %v516 = vadd.f32 %v514, 1.0
      %v517 = vrcp.pop %v515
      %v518 = vmul.f32 1.0, %v517
      %v519 = vrcp.pop %v516
      %v520 = vmul.f32 1.0, %v519
      %523 = vrot.lane.b32.xlu0 %v518, 64
      %v524 = vpop.permute.xlu0 %523
      %525 = vrot.lane.b32.xlu0 %v520, 64
      %v526 = vpop.permute.xlu0 %525
      %v529 = vmul.f32 %v503, %v524
      %v530 = vmul.f32 %v506, %v526
      %v531 = vlaneseq
      %v532 = vshrl.u32 %v531, 7
      %v533 = vadd.s32 %v532, 8
      %v534 = vld [vmem:[%s4] sm:$0x1]
      %v535 = vrot.slane %v529, 5
      %v536 = vrot.slane %v530, 5
      %vm537 = vcmp.lt.s32.totalorder %v532, 3
      %v538 = vsel %vm537, %v535, %v536
      %v539 = vsel %vm537, %v536, %v535
      %vm540 = vcmp.ge.s32.totalorder %v532, 3
      %vm541 = vcmp.ge.s32.totalorder %v533, 3
      %vm542 = vcmp.lt.s32.totalorder %v532, 16
      %vm543 = vcmp.lt.s32.totalorder %v533, 16
      %vm544 = vmand %vm540, %vm542
      %vm545 = vmand %vm541, %vm543
      %v546 = vsel %vm544, 1, 0
      %v547 = vsel %vm545, 1, 0
      %v548 = vcvt.s32.f32 %v546
      %v549 = vcvt.s32.f32 %v547
      %v550 = vmul.f32 %v539, %v548
      %v551 = vmul.f32 %v538, %v549
      %v552 = vlaneseq
      %v553 = vshrl.u32 %v552, 7
      %v554 = vsub.s32 0, %v553
      %v555 = vrot.slane %v534, %v554
      %v556 = vmul.f32 %v550, %v555
      %v557 = vmul.f32 %v551, %v555
      %v558 = vadd.f32 %v556, 0.0
      %v559 = vadd.f32 %v557, 0.0
      %v560 = vld [vmem:[%s4 + $0x1] sm:$0x1]
      %v561 = vrot.slane %v529, 6
      %v562 = vrot.slane %v530, 6
      %vm563 = vcmp.lt.s32.totalorder %v532, 2
      %v564 = vsel %vm563, %v561, %v562
      %v565 = vsel %vm563, %v562, %v561
      %vm566 = vcmp.ge.s32.totalorder %v532, 2
      %vm567 = vcmp.ge.s32.totalorder %v533, 2
      %vm568 = vmand %vm566, %vm542
      %vm569 = vmand %vm567, %vm543
      %v570 = vsel %vm568, 1, 0
      %v571 = vsel %vm569, 1, 0
      %v572 = vcvt.s32.f32 %v570
      %v573 = vcvt.s32.f32 %v571
      %v574 = vmul.f32 %v565, %v572
      %v575 = vmul.f32 %v564, %v573
      %v576 = vlaneseq
      %v577 = vshrl.u32 %v576, 7
      %v578 = vsub.s32 0, %v577
      %v579 = vrot.slane %v560, %v578
      %v580 = vmul.f32 %v574, %v579
      %v581 = vmul.f32 %v575, %v579
      %v582 = vadd.f32 %v558, %v580
      %v583 = vadd.f32 %v559, %v581
      %v584 = vld [vmem:[%s4 + $0x2] sm:$0x1]
      %v585 = vrot.slane %v529, 7
      %v586 = vrot.slane %v530, 7
      %vm587 = vcmp.lt.s32.totalorder %v532, 1
      %v588 = vsel %vm587, %v585, %v586
      %v589 = vsel %vm587, %v586, %v585
      %vm590 = vcmp.ge.s32.totalorder %v532, 1
      %vm591 = vcmp.ge.s32.totalorder %v533, 1
      %vm592 = vmand %vm590, %vm542
      %vm593 = vmand %vm591, %vm543
      %v594 = vsel %vm592, 1, 0
      %v595 = vsel %vm593, 1, 0
      %v596 = vcvt.s32.f32 %v594
      %v597 = vcvt.s32.f32 %v595
      %v598 = vmul.f32 %v589, %v596
      %v599 = vmul.f32 %v588, %v597
      %v600 = vlaneseq
      %v601 = vshrl.u32 %v600, 7
      %v602 = vsub.s32 0, %v601
      %v603 = vrot.slane %v584, %v602
      %v604 = vmul.f32 %v598, %v603
      %v605 = vmul.f32 %v599, %v603
      %v606 = vadd.f32 %v582, %v604
      %v607 = vadd.f32 %v583, %v605
      %v608 = vld [vmem:[%s4 + $0x3] sm:$0x1]
      %v609 = vlaneseq
      %v610 = vshrl.u32 %v609, 7
      %v611 = vsub.s32 0, %v610
      %v612 = vrot.slane %v608, %v611
      %v613 = vmul.f32 %v529, %v612
      %v614 = vmul.f32 %v530, %v612
      %v615 = vadd.f32 %v606, %v613
      %v616 = vadd.f32 %v607, %v614
      %v617 = vld [vmem:[%s4 + $0x4] sm:$0x1]
      %v618 = vrot.slane %v529, 1
      %v619 = vrot.slane %v530, 1
      %vm620 = vcmp.lt.s32.totalorder %v532, 7
      %v621 = vsel %vm620, %v618, %v619
      %v622 = vsel %vm620, %v619, %v618
      %vm623 = vcmp.ge.s32.totalorder %v532, 0
      %vm624 = vcmp.ge.s32.totalorder %v533, 0
      %vm625 = vcmp.lt.s32.totalorder %v532, 15
      %vm626 = vcmp.lt.s32.totalorder %v533, 15
      %vm627 = vmand %vm623, %vm625
      %vm628 = vmand %vm624, %vm626
      %v629 = vsel %vm627, 1, 0
      %v630 = vsel %vm628, 1, 0
      %v631 = vcvt.s32.f32 %v629
      %v632 = vcvt.s32.f32 %v630
      %v633 = vmul.f32 %v621, %v631
      %v634 = vmul.f32 %v622, %v632
      %v635 = vlaneseq
      %v636 = vshrl.u32 %v635, 7
      %v637 = vsub.s32 0, %v636
      %v638 = vrot.slane %v617, %v637
      %v639 = vmul.f32 %v633, %v638
      %v640 = vmul.f32 %v634, %v638
      %v641 = vadd.f32 %v615, %v639
      %v642 = vadd.f32 %v616, %v640
      %v643 = vld [vmem:[%s4 + $0x5] sm:$0x1]
      %v644 = vrot.slane %v529, 2
      %v645 = vrot.slane %v530, 2
      %vm646 = vcmp.lt.s32.totalorder %v532, 6
      %v647 = vsel %vm646, %v644, %v645
      %v648 = vsel %vm646, %v645, %v644
      %vm649 = vcmp.lt.s32.totalorder %v532, 14
      %vm650 = vcmp.lt.s32.totalorder %v533, 14
      %vm651 = vmand %vm623, %vm649
      %vm652 = vmand %vm624, %vm650
      %v653 = vsel %vm651, 1, 0
      %v654 = vsel %vm652, 1, 0
      %v655 = vcvt.s32.f32 %v653
      %v656 = vcvt.s32.f32 %v654
      %v657 = vmul.f32 %v647, %v655
      %v658 = vmul.f32 %v648, %v656
      %v659 = vlaneseq
      %v660 = vshrl.u32 %v659, 7
      %v661 = vsub.s32 0, %v660
      %v662 = vrot.slane %v643, %v661
      %v663 = vmul.f32 %v657, %v662
      %v664 = vmul.f32 %v658, %v662
      %v665 = vadd.f32 %v641, %v663
      %v666 = vadd.f32 %v642, %v664
      %v667 = vld [vmem:[%s4 + $0x6] sm:$0x1]
      %v668 = vrot.slane %v529, 3
      %v669 = vrot.slane %v530, 3
      %vm670 = vcmp.lt.s32.totalorder %v532, 5
      %v671 = vsel %vm670, %v668, %v669
      %v672 = vsel %vm670, %v669, %v668
      %vm673 = vcmp.lt.s32.totalorder %v532, 13
      %vm674 = vcmp.lt.s32.totalorder %v533, 13
      %vm675 = vmand %vm623, %vm673
      %vm676 = vmand %vm624, %vm674
      %v677 = vsel %vm675, 1, 0
      %v678 = vsel %vm676, 1, 0
      %v679 = vcvt.s32.f32 %v677
      %v680 = vcvt.s32.f32 %v678
      %v681 = vmul.f32 %v671, %v679
      %v682 = vmul.f32 %v672, %v680
      %v683 = vlaneseq
      %v684 = vshrl.u32 %v683, 7
      %v685 = vsub.s32 0, %v684
      %v686 = vrot.slane %v667, %v685
      %v687 = vmul.f32 %v681, %v686
      %v688 = vmul.f32 %v682, %v686
      %v689 = vadd.f32 %v665, %v687
      %v690 = vadd.f32 %v666, %v688
      %v691 = vld [vmem:[%s5] sm:$0x1]
      %v693 = vlaneseq
      %v694 = vshrl.u32 %v693, 7
      %v695 = vsub.s32 0, %v694
      %v696 = vrot.slane %v691, %v695
      %v698 = vmul.f32 %v689, %v696
      %v699 = vmul.f32 %v690, %v696
      %v700 = vld [vmem:[%s6] sm:$0x1]
      %v702 = vlaneseq
      %v703 = vshrl.u32 %v702, 7
      %v704 = vsub.s32 0, %v703
      %v705 = vrot.slane %v700, %v704
      %v707 = vadd.f32 %v698, %v705
      %v708 = vadd.f32 %v699, %v705
      %v709 = vxor.u32 %v707, 2147483648
      %v710 = vxor.u32 %v708, 2147483648
      %v711 = vmul.f32 %v709, 1.442695
      %v712 = vpow.pop %v711
      %v713 = vmul.f32 %v710, 1.442695
      %v714 = vpow.pop %v713
      %v715 = vadd.f32 %v712, 1.0
      %v716 = vadd.f32 %v714, 1.0
      %v717 = vrcp.pop %v715
      %v718 = vmul.f32 1.0, %v717
      %v719 = vrcp.pop %v716
      %v720 = vmul.f32 1.0, %v719
      %v721 = vmul.f32 %v707, %v718
      %v722 = vmul.f32 %v708, %v720
      %v723 = vpack.c.bf16 %v722, %v721
      %v724 = vld [vmem:[%s7] sm:$0xf]
      %v725 = vld [vmem:[%s7 + $0x4] sm:$0xf]
      %v726 = vld [vmem:[%s7 + $0x8] sm:$0xf]
      %v727 = vld [vmem:[%s7 + $0xc] sm:$0xf]
      %v728 = vld [vmem:[%s7 + $0x10] sm:$0xf]
      %v729 = vld [vmem:[%s7 + $0x14] sm:$0xf]
      %v730 = vld [vmem:[%s7 + $0x18] sm:$0xf]
      %v731 = vld [vmem:[%s7 + $0x1c] sm:$0xf]
      %v732 = vld [vmem:[%s8] sm:$0x1]
      %v734 = vlaneseq
      %v735 = vshrl.u32 %v734, 7
      %v736 = vsub.s32 0, %v735
      %v737 = vrot.slane %v732, %v736
      %v747 = vunpack.c.l.b16 %v724
      %v748 = vunpack.c.l.b16 %v725
      %v749 = vunpack.c.l.b16 %v726
      %v750 = vunpack.c.l.b16 %v727
      %v751 = vunpack.c.l.b16 %v728
      %v752 = vunpack.c.l.b16 %v729
      %v753 = vunpack.c.l.b16 %v730
      %v754 = vunpack.c.l.b16 %v731
      %v755 = vpack.c.b16 %v748, %v747
      %v756 = vpack.c.b16 %v750, %v749
      %v757 = vpack.c.b16 %v752, %v751
      %v758 = vpack.c.b16 %v754, %v753
      %v764 = vsel %vm464, %v723, 0
      %766 = vmatprep.subr.bf16.mxu0 0
      %767 = vmatpush1.bf16.msra.mxu0 %v755
      %768 = vmatprep.subr.bf16.mxu0 0
      %769 = vmatpush1.bf16.msra.mxu0 %v756
      %770 = vmatprep.subr.bf16.mxu0 0
      %771 = vmatpush1.bf16.msra.mxu0 %v757
      %772 = vmatprep.subr.bf16.mxu0 0
      %773 = vmatpush1.bf16.msra.mxu0 %v758
      %774 = vmatprep.subr.bf16.mxu0 0
      %775 = vmatpush1.bf16.msra.mxu0 0
      %776 = vmatprep.subr.bf16.mxu0 0
      %777 = vmatpush1.bf16.msra.mxu0 0
      %778 = vmatprep.subr.bf16.mxu0 0
      %779 = vmatpush1.bf16.msra.mxu0 0
      %780 = vmatprep.subr.bf16.mxu0 0
      %781 = vmatpush1.bf16.msra.mxu0 0
      %782 = vmatprep.subr.bf16.mxu0 0
      %783 = vmatpush1.bf16.msra.mxu0 0
      %784 = vmatprep.subr.bf16.mxu0 0
      %785 = vmatpush1.bf16.msra.mxu0 0
      %786 = vmatprep.subr.bf16.mxu0 0
      %787 = vmatpush1.bf16.msra.mxu0 0
      %788 = vmatprep.subr.bf16.mxu0 0
      %789 = vmatpush1.bf16.msra.mxu0 0
      %790 = vmatprep.subr.bf16.mxu0 0
      %791 = vmatpush1.bf16.msra.mxu0 0
      %792 = vmatprep.subr.bf16.mxu0 0
      %793 = vmatpush1.bf16.msra.mxu0 0
      %794 = vmatprep.subr.bf16.mxu0 0
      %795 = vmatpush1.bf16.msra.mxu0 0
      %796 = vmatprep.subr.bf16.mxu0 0
      %797 = vmatpush1.bf16.msra.mxu0 0
      %798 = vmatprep.mubr.bf16.mxu0 0
      %799 = vmatmul.mubr.bf16.gmra.mrb[0].mxu0 %v764
      %v800 = vpop.f32.mrb[0].mxu0
      %v801 = vadd.f32 %v737, %v800
      %v802 = vpop.f32.mrb[0].mxu0
      %v803 = vpop.f32.mrb[0].mxu0
      %v804 = vadd.f32 %v737, %v803
      %v805 = vpop.f32.mrb[0].mxu0
      %806 = vdwg.mxu0
      %v807 = vadd.f32 %v801, %v408
      %v808 = vadd.f32 %v804, %v409
      %v809 = vsel %vm464, %v807, 0.0
      %810 = vadd.xlane.f32.xlu0 %v809
      %v811 = vpop.xlane.xlu0 %810
      %v812 = vsel %vm464, %v808, 0.0
      %813 = vadd.xlane.f32.xlu0 %v812
      %v814 = vpop.xlane.xlu0 %813
      %v815 = vrcp.pop 64.0
      %v816 = vmul.f32 %v811, %v815
      %v817 = vmul.f32 %v814, %v815
      %v818 = vsub.f32 %v807, %v816
      %v819 = vsub.f32 %v808, %v817
      %v820 = vmul.f32 %v818, %v818
      %v821 = vmul.f32 %v819, %v819
      %v822 = vsel %vm464, %v820, 0.0
      %823 = vadd.xlane.f32.xlu0 %v822
      %v824 = vpop.xlane.xlu0 %823
      %v825 = vsel %vm464, %v821, 0.0
      %826 = vadd.xlane.f32.xlu0 %v825
      %v827 = vpop.xlane.xlu0 %826
      %v828 = vmul.f32 %v824, %v815
      %v829 = vmul.f32 %v827, %v815
      %v830 = vadd.f32 %v828, 1e-05
      %v831 = vadd.f32 %v829, 1e-05
      %v832 = vrsqrt.pop %v830
      %v833 = vrsqrt.pop %v831
      %v834 = vmul.f32 %v818, %v832
      %v835 = vmul.f32 %v819, %v833
      %v836 = vld [vmem:[%s9] sm:$0x1]
      %v838 = vlaneseq
      %v839 = vshrl.u32 %v838, 7
      %v840 = vsub.s32 0, %v839
      %v841 = vrot.slane %v836, %v840
      %v843 = vmul.f32 %v834, %v841
      %v844 = vmul.f32 %v835, %v841
      %v845 = vld [vmem:[%s10] sm:$0x1]
      %v847 = vlaneseq
      %v848 = vshrl.u32 %v847, 7
      %v849 = vsub.s32 0, %v848
      %v850 = vrot.slane %v845, %v849
      %v852 = vadd.f32 %v843, %v850
      %v853 = vadd.f32 %v844, %v850
      %854 = vst.msk [vmem:[%s406] sm:$0xff] %vm464, %v852
      %855 = vst.msk [vmem:[%s406 + $0x8] sm:$0xff] %vm464, %v853
      %p856 = scmp.lt.s32.totalorder %s22, 1
      %s857 = scalar_select %p856, %s22, 1
      %s858 = smul.addr %s857, 2
      %s859 = smul.addr %s858, 8
      %s860 = scalar_lea.vmem %s11, %s859
      // Predicated region
      $region65: #{squeezeformer_block.13} parent=63 // pred_check
        %p861 = pneg %p281
      $region66: #{squeezeformer_block.13} parent=63 // pred_check_branch
        %863 = sbr.rel (%p861) target = $region68
      $region67: #{squeezeformer_block.13} parent=63 // pred_region
        _
      $region68: #{squeezeformer_block.13} parent=63 // pred_fallthru
        _
    $region64: #{squeezeformer_block.13} parent=5 // pred_fallthru
      _
    %p864 = scmp.le.s32.totalorder 2, %s17
    // Predicated region
    $region69: #{squeezeformer_block.13} parent=5 // pred_check
      %p865 = pneg %p864
    $region70: #{squeezeformer_block.13} parent=5 // pred_check_branch
      %867 = sbr.rel (%p865) target = $region72
    $region71: #{squeezeformer_block.13} parent=5 // pred_region
      %s868 = ssub.s32 %s17, 2
      // Predicated region
      $region73: #{squeezeformer_block.13} parent=71 // pred_check
        %p869 = pneg %p287
      $region74: #{squeezeformer_block.13} parent=71 // pred_check_branch
        %871 = sbr.rel (%p869) target = $region76
      $region75: #{squeezeformer_block.13} parent=71 // pred_region
        %p872 = scmp.lt.s32.totalorder %s23, 1
        %s873 = scalar_select %p872, %s23, 1
        %s874 = smul.addr %s873, 2
        %s875 = smul.addr %s874, 8
        %s876 = scalar_lea.vmem %s11, %s875
      $region76: #{squeezeformer_block.13} parent=71 // pred_fallthru
        _
    $region72: #{squeezeformer_block.13} parent=5 // pred_fallthru
      _
  $region6: #{squeezeformer_block.13} parent=0 // loop_footer
    %s21 = sadd.s32 1, %s17
  $region7: #{squeezeformer_block.13} parent=0 // loop_footer_branch
    %16 = sbr.rel target = $region3
  $region8: #{squeezeformer_block.13} parent=0 // loop_exit
    _

</llo_original>
